<compile_context>
chip_gen: v7x
topology: tpu7x:2x2x1
jax: 0.10.0
libtpu: 0.0.40
codegen_flags: <defaults>
</compile_context>

<pallas_src>
import functools

import jax
import jax.numpy as jnp
from jax.experimental import pallas as pl
from jax.experimental.pallas import tpu as pltpu


def _round_up(x, m):
    return (x + m - 1) // m * m


# ----------------------------------------------------------------------------
# Fused Conv3x3(pad=1) + bias + ReLU + MaxPool2x2 stage
# ----------------------------------------------------------------------------

def _pick_row_chunk(H):
    """Even divisor of H: conv rows processed per grid step (M = rc*Cout per dot)."""
    for cand in (8, 16, 10, 4, 6, 2):
        if H % cand == 0:
            return cand
    raise ValueError(f"H={H} must be even for MaxPool2d(2,2)")


def _banded_weights(w_oihw, rc, dtype):
    """Block-banded weights, shape (3, rc*Cout, (rc+2)*Cin), indexed by kx.

    wb[kx, r*Cout+co, (r+ky)*Cin+ci] = w[co, ci, ky, kx].  One dot with this LHS
    computes all `rc` conv rows of a chunk for a single kx tap.
    """
    Cout, Cin, _, _ = w_oihw.shape
    kc = (rc + 2) * Cin
    wb = jnp.zeros((3, rc * Cout, kc), jnp.float32)
    for kx in range(3):
        for ky in range(3):
            blk = w_oihw[:, :, ky, kx].astype(jnp.float32)          # (Cout, Cin)
            for r in range(rc):
                wb = wb.at[kx,
                           r * Cout:(r + 1) * Cout,
                           (r + ky) * Cin:(r + ky + 1) * Cin].set(blk)
    return wb.astype(dtype)


def _conv_stage_kernel(x_ref, w_ref, b_ref, o_ref, *, rc, cin, cout, wh):
    # x_ref : (1, 2, (H+2)*Cin, Wh+1) bf16  -- [even cols, odd cols] of the padded image,
    #                                          rows ordered (padded_row, channel)
    # w_ref : (3, rc*Cout, (rc+2)*Cin) bf16 -- block-banded weights per kx
    # b_ref : (rc//2 * Cout, 1) f32         -- bias tiled over pooled rows of a chunk
    # o_ref : (1, rc//2 * Cout, Wh) bf16    -- pooled rows of this chunk, (y2, co) x x2
    kc = (rc + 2) * cin
    trp = rc // 2
    c = pl.program_id(1)
    rs = pl.multiple_of(c * (rc * cin), rc * cin)

    re = x_ref[0, 0, pl.ds(rs, kc), :]            # (kc, wh+1) even padded columns
    ro = x_ref[0, 1, pl.ds(rs, kc), :]            # (kc, wh+1) odd  padded columns
    re0, re1 = re[:, :wh], re[:, 1:]
    ro0, ro1 = ro[:, :wh], ro[:, 1:]
    w0, w1, w2 = w_ref[0], w_ref[1], w_ref[2]
    dot = functools.partial(jnp.dot, preferred_element_type=jnp.float32)

    # Conv at even / odd output columns; register (f32) accumulation, no scratch.
    c_even = dot(w0, re0) + dot(w1, ro0) + dot(w2, re1)   # (rc*cout, wh)
    c_odd = dot(w0, ro0) + dot(w1, re1) + dot(w2, ro1)    # (rc*cout, wh)

    # 2x2 max-pool: horizontal = elementwise max of parities, vertical = max of the
    # two conv-row halves (tile-aligned sublane slice).  bias/ReLU commute with max.
    ph = jnp.maximum(c_even, c_odd)                       # (rc*cout, wh)
    ph = ph.reshape(trp, 2 * cout, wh)
    pv = jnp.maximum(ph[:, :cout, :], ph[:, cout:, :])    # (trp, cout, wh)
    pv = pv.reshape(trp * cout, wh)
    o_ref[0] = jnp.maximum(pv + b_ref[...], 0.0).astype(o_ref.dtype)


def conv3x3_relu_pool(x_ycw, w_oihw, b, H, W):
    """Conv2d(k=3, s=1, p=1) + ReLU + MaxPool2d(2,2) on a (rows=(y,c), lanes=x) layout.

    x_ycw : (N, H*Cin, W)  -- row index = y*Cin + ci
    w_oihw: (Cout, Cin, 3, 3), b: (Cout,)
    returns (N, (H//2)*Cout, W//2) bf16 -- row index = y2*Cout + co (stage-2-ready layout)
    """
    N = x_ycw.shape[0]
    Cout, Cin = w_oihw.shape[0], w_oihw.shape[1]
    assert x_ycw.shape == (N, H * Cin, W)
    assert H % 2 == 0 and W % 2 == 0, "MaxPool2d(2,2) needs even H and W"
    Hh, Wh = H // 2, W // 2

    rc = _pick_row_chunk(H)                     # conv rows per grid step
    trp = rc // 2                               # pooled rows per grid step
    trpc = trp * Cout
    kc = (rc + 2) * Cin
    n_chunks = H // rc

    # Pad (1 row of zeros above/below = Cin ref-rows, 1 col left/right), cast bf16,
    # and split padded columns into even/odd planes (one cheap XLA pass).
    xp = jnp.pad(x_ycw.astype(jnp.bfloat16), ((0, 0), (Cin, Cin), (1, 1)))
    x_eo = jnp.stack([xp[:, :, 0::2], xp[:, :, 1::2]], axis=1)   # (N, 2, (H+2)*Cin, Wh+1)

    wb = _banded_weights(w_oihw, rc, jnp.bfloat16)               # (3, rc*Cout, kc)
    b_tiled = jnp.tile(b.astype(jnp.float32), trp).reshape(trpc, 1)

    kernel = functools.partial(_conv_stage_kernel, rc=rc, cin=Cin, cout=Cout, wh=Wh)
    return pl.pallas_call(
        kernel,
        out_shape=jax.ShapeDtypeStruct((N, Hh * Cout, Wh), jnp.bfloat16),
        grid_spec=pltpu.PrefetchScalarGridSpec(
            num_scalar_prefetch=0,
            grid=(N, n_chunks),
            in_specs=[
                pl.BlockSpec((1, 2, (H + 2) * Cin, Wh + 1), lambda n, c: (n, 0, 0, 0)),
                pl.BlockSpec((3, rc * Cout, kc), lambda n, c: (0, 0, 0)),
                pl.BlockSpec((trpc, 1), lambda n, c: (0, 0)),
            ],
            out_specs=pl.BlockSpec((1, trpc, Wh), lambda n, c: (n, c, 0)),
        ),
        compiler_params=pltpu.CompilerParams(
            dimension_semantics=("parallel", "parallel")),
    )(x_eo, wb, b_tiled)


# ----------------------------------------------------------------------------
# Linear + ReLU head: N-parallel, K-tiled matmul with f32 accumulator
# ----------------------------------------------------------------------------

def _linear_kernel(x_ref, w_ref, b_ref, o_ref, acc_ref):
    k = pl.program_id(1)

    @pl.when(k == 0)
    def _():
        acc_ref[...] = jnp.zeros_like(acc_ref)

    acc_ref[...] += jnp.dot(x_ref[...], w_ref[...],
                            preferred_element_type=jnp.float32)

    @pl.when(k == pl.num_programs(1) - 1)
    def _():
        o_ref[...] = jnp.maximum(acc_ref[...] + b_ref[...], 0.0).astype(o_ref.dtype)


def prepare_head(w3, b3, C, Hh, Wh, max_block_bytes=2 * 1024 * 1024):
    """One-time (outside jit) head-weight prep.

    - Folds the PyTorch NCHW flatten order (c, y, x) into a permutation of w3's
      columns so the kernel consumes features in our (y, c, x) layout directly.
    - Zero-pads K to a multiple of a real tile tk (<=8192, multiple of 512) so the
      weight streams in ~2 MB blocks (fits v7x 64 MiB VMEM, pipelines on v5e/v6e).
    """
    out_dim, K = w3.shape
    assert K == C * Hh * Wh
    yy, cc, xx = jnp.meshgrid(jnp.arange(Hh), jnp.arange(C), jnp.arange(Wh),
                              indexing="ij")
    torch_idx = (cc * (Hh * Wh) + yy * Wh + xx).reshape(-1)      # our j -> torch index
    w_kn = w3[:, torch_idx].T                                    # (K, out_dim)

    tn = 128 if out_dim % 128 == 0 else out_dim
    tk_cap = max(512, (max_block_bytes // (tn * 2)) // 512 * 512)
    tk = min(tk_cap, _round_up(K, 512))
    K_pad = _round_up(K, tk)
    w_kn = jnp.pad(w_kn, ((0, K_pad - K), (0, 0))).astype(jnp.bfloat16)
    return {"w_kn": w_kn, "b": b3.astype(jnp.float32).reshape(1, out_dim),
            "K": K, "K_pad": K_pad, "tk": tk, "tn": tn}


def linear_bias_relu(feats, head):
    """relu(feats @ w_kn + b) with an (N-parallel, K-arbitrary) grid."""
    M = feats.shape[0]
    K, K_pad, tk, tn = head["K"], head["K_pad"], head["tk"], head["tn"]
    w, b = head["w_kn"], head["b"]
    Nout = w.shape[1]

    x = feats.astype(jnp.bfloat16)
    if K_pad != K:
        x = jnp.pad(x, ((0, 0), (0, K_pad - K)))

    return pl.pallas_call(
        _linear_kernel,
        out_shape=jax.ShapeDtypeStruct((M, Nout), jnp.float32),
        grid_spec=pltpu.PrefetchScalarGridSpec(
            num_scalar_prefetch=0,
            grid=(Nout // tn, K_pad // tk),
            in_specs=[
                pl.BlockSpec((M, tk), lambda n, k: (0, k)),
                pl.BlockSpec((tk, tn), lambda n, k: (k, n)),
                pl.BlockSpec((1, tn), lambda n, k: (0, n)),
            ],
            out_specs=pl.BlockSpec((M, tn), lambda n, k: (0, n)),
            scratch_shapes=[pltpu.VMEM((M, tn), jnp.float32)],
        ),
        compiler_params=pltpu.CompilerParams(
            dimension_semantics=("parallel", "arbitrary"),
            vmem_limit_bytes=64 * 1024 * 1024),
    )(x, w, b)


# ----------------------------------------------------------------------------
# Model
# ----------------------------------------------------------------------------

def init_params(key, output_dim, flat_features):
    k1, k2, k3, k4, k5, k6 = jax.random.split(key, 6)
    return {
        "w1": 0.10 * jax.random.normal(k1, (16, 3, 3, 3), jnp.float32),
        "b1": 0.10 * jax.random.normal(k2, (16,), jnp.float32),
        "w2": 0.05 * jax.random.normal(k3, (32, 16, 3, 3), jnp.float32),
        "b2": 0.05 * jax.random.normal(k4, (32,), jnp.float32),
        "w3": 0.02 * jax.random.normal(k5, (output_dim, flat_features), jnp.float32),
        "b3": 0.02 * jax.random.normal(k6, (output_dim,), jnp.float32),
    }


def cnn_feature_extractor(params, head, x_nchw):
    """Forward pass matching the PyTorch nn.Sequential (inference mode)."""
    N, Cin, H, W = x_nchw.shape
    assert H % 4 == 0 and W % 4 == 0, "two MaxPool2d(2,2) stages need H,W % 4 == 0"
    # NCHW -> (rows = y*Cin + ci, lanes = x): the only activation transpose in the net.
    x = jnp.transpose(x_nchw, (0, 2, 1, 3)).reshape(N, H * Cin, W)
    x = conv3x3_relu_pool(x, params["w1"], params["b1"], H, W)            # (N, H/2*16, W/2)
    x = conv3x3_relu_pool(x, params["w2"], params["b2"], H // 2, W // 2)  # (N, H/4*32, W/4)
    # Dropout(0.5) is identity in eval/inference mode.
    # TODO(synk): training-mode dropout (pltpu.prng_seed + stateful_bernoulli) not implemented.
    feats = x.reshape(N, -1)          # (y, c, x) order; NCHW order folded into head weights
    return linear_bias_relu(feats, head)


# ----------------------------------------------------------------------------
# Pure-JAX reference (bf16 MXU tolerance)
# ----------------------------------------------------------------------------

def _reference_forward(params, x_nchw):
    dn = ("NCHW", "OIHW", "NCHW")
    y = jax.lax.conv_general_dilated(x_nchw, params["w1"], (1, 1),
                                     ((1, 1), (1, 1)), dimension_numbers=dn)
    y = jax.nn.relu(y + params["b1"][None, :, None, None])
    y = jax.lax.reduce_window(y, -jnp.inf, jax.lax.max,
                              (1, 1, 2, 2), (1, 1, 2, 2), "VALID")
    y = jax.lax.conv_general_dilated(y, params["w2"], (1, 1),
                                     ((1, 1), (1, 1)), dimension_numbers=dn)
    y = jax.nn.relu(y + params["b2"][None, :, None, None])
    y = jax.lax.reduce_window(y, -jnp.inf, jax.lax.max,
                              (1, 1, 2, 2), (1, 1, 2, 2), "VALID")
    feats = y.reshape(y.shape[0], -1)
    return jax.nn.relu(feats @ params["w3"].T + params["b3"])


# ----------------------------------------------------------------------------
# Main
# ----------------------------------------------------------------------------

if __name__ == "__main__":
    # Small synthetic input (the reference hard-codes a 200x300 input via
    # Linear(32*50*75, .); we size the Linear to the actual input instead).
    N, C, H, W = 2, 3, 16, 24
    output_dim = 256
    flat_features = 32 * (H // 4) * (W // 4)

    key = jax.random.PRNGKey(0)
    kx, kp = jax.random.split(key)
    x = jax.random.normal(kx, (N, C, H, W), jnp.float32)
    params = init_params(kp, output_dim, flat_features)

    # One-time head-weight prep (flatten-order permutation + K padding), outside jit.
    head = prepare_head(params["w3"], params["b3"], 32, H // 4, W // 4)

    fwd = jax.jit(functools.partial(cnn_feature_extractor, params, head))
    out = fwd(x)
    jax.block_until_ready(out)

    assert out.shape == (N, output_dim), out.shape
    assert bool(jnp.all(jnp.isfinite(out)))
    assert bool(jnp.all(out >= 0.0))          # final ReLU

    ref = _reference_forward(params, x)
    err = float(jnp.max(jnp.abs(out - ref)))
    assert jnp.allclose(out, ref, rtol=5e-2, atol=5e-2), f"max abs err {err}"

    print("KERNEL_OK")
</pallas_src>

<mosaic_0001>
module attributes {stable_mosaic.version = 11 : i64} {
  func.func @_conv_stage_kernel(%arg0: i32, %arg1: i32, %arg2: memref<1x2x54x13xbf16, #tpu.memory_space<vmem>>, %arg3: memref<3x128x30xbf16, #tpu.memory_space<vmem>>, %arg4: memref<64x1xf32, #tpu.memory_space<vmem>>, %arg5: memref<1x64x12xbf16, #tpu.memory_space<vmem>>) attributes {dimension_semantics = [#tpu.dimension_semantics<parallel>, #tpu.dimension_semantics<parallel>], iteration_bounds = array<i64: 2, 2>, scalar_prefetch = 0 : i64, scratch_operands = 0 : i64, tpu.core_type = #tpu.core_type<tc>, window_params = [{transform_indices = @transform_0, window_bounds = array<i64: 1, 2, 54, 13>}, {pipeline_mode = #tpu.pipeline_mode<synchronous>, transform_indices = @transform_1, window_bounds = array<i64: 3, 128, 30>}, {pipeline_mode = #tpu.pipeline_mode<synchronous>, transform_indices = @transform_2, window_bounds = array<i64: 64, 1>}, {transform_indices = @transform_3, window_bounds = array<i64: 1, 64, 12>}]} {
    %c24_i32 = arith.constant 24 : i32
    %0 = arith.muli %arg1, %c24_i32 : i32
    %1 = tpu.assume_multiple %0, 24 : i32
    %c0 = arith.constant 0 : index
    %c0_0 = arith.constant 0 : index
    %2 = arith.index_cast %1 : i32 to index
    %c0_1 = arith.constant 0 : index
    %3 = vector.load %arg2[%c0, %c0_0, %2, %c0_1] : memref<1x2x54x13xbf16, #tpu.memory_space<vmem>>, vector<1x1x30x13xbf16>
    %4 = vector.shape_cast %3 : vector<1x1x30x13xbf16> to vector<30x13xbf16>
    %c0_2 = arith.constant 0 : index
    %c1 = arith.constant 1 : index
    %5 = arith.index_cast %1 : i32 to index
    %c0_3 = arith.constant 0 : index
    %6 = vector.load %arg2[%c0_2, %c1, %5, %c0_3] : memref<1x2x54x13xbf16, #tpu.memory_space<vmem>>, vector<1x1x30x13xbf16>
    %7 = vector.shape_cast %6 : vector<1x1x30x13xbf16> to vector<30x13xbf16>
    %8 = vector.extract_strided_slice %4 {offsets = [0, 0], sizes = [30, 12], strides = [1, 1]} : vector<30x13xbf16> to vector<30x12xbf16>
    %9 = vector.extract_strided_slice %4 {offsets = [0, 1], sizes = [30, 12], strides = [1, 1]} : vector<30x13xbf16> to vector<30x12xbf16>
    %10 = vector.extract_strided_slice %7 {offsets = [0, 0], sizes = [30, 12], strides = [1, 1]} : vector<30x13xbf16> to vector<30x12xbf16>
    %11 = vector.extract_strided_slice %7 {offsets = [0, 1], sizes = [30, 12], strides = [1, 1]} : vector<30x13xbf16> to vector<30x12xbf16>
    %c0_4 = arith.constant 0 : index
    %c0_5 = arith.constant 0 : index
    %c0_6 = arith.constant 0 : index
    %12 = vector.load %arg3[%c0_4, %c0_5, %c0_6] : memref<3x128x30xbf16, #tpu.memory_space<vmem>>, vector<1x128x30xbf16>
    %13 = vector.shape_cast %12 : vector<1x128x30xbf16> to vector<128x30xbf16>
    %c1_7 = arith.constant 1 : index
    %c0_8 = arith.constant 0 : index
    %c0_9 = arith.constant 0 : index
    %14 = vector.load %arg3[%c1_7, %c0_8, %c0_9] : memref<3x128x30xbf16, #tpu.memory_space<vmem>>, vector<1x128x30xbf16>
    %15 = vector.shape_cast %14 : vector<1x128x30xbf16> to vector<128x30xbf16>
    %c2 = arith.constant 2 : index
    %c0_10 = arith.constant 0 : index
    %c0_11 = arith.constant 0 : index
    %16 = vector.load %arg3[%c2, %c0_10, %c0_11] : memref<3x128x30xbf16, #tpu.memory_space<vmem>>, vector<1x128x30xbf16>
    %17 = vector.shape_cast %16 : vector<1x128x30xbf16> to vector<128x30xbf16>
    %cst = arith.constant dense<0.000000e+00> : vector<128x12xf32>
    %18 = tpu.matmul %13, %8, %cst {dimension_numbers = #tpu.dot_dimension_numbers<[1], [0], [0], [1], [0, 0, 1, 1], [], []>} : vector<128x30xbf16>, vector<30x12xbf16>, vector<128x12xf32> -> vector<128x12xf32>
    %cst_12 = arith.constant dense<0.000000e+00> : vector<128x12xf32>
    %19 = tpu.matmul %15, %10, %cst_12 {dimension_numbers = #tpu.dot_dimension_numbers<[1], [0], [0], [1], [0, 0, 1, 1], [], []>} : vector<128x30xbf16>, vector<30x12xbf16>, vector<128x12xf32> -> vector<128x12xf32>
    %20 = arith.addf %18, %19 : vector<128x12xf32>
    %cst_13 = arith.constant dense<0.000000e+00> : vector<128x12xf32>
    %21 = tpu.matmul %17, %9, %cst_13 {dimension_numbers = #tpu.dot_dimension_numbers<[1], [0], [0], [1], [0, 0, 1, 1], [], []>} : vector<128x30xbf16>, vector<30x12xbf16>, vector<128x12xf32> -> vector<128x12xf32>
    %22 = arith.addf %20, %21 : vector<128x12xf32>
    %cst_14 = arith.constant dense<0.000000e+00> : vector<128x12xf32>
    %23 = tpu.matmul %13, %10, %cst_14 {dimension_numbers = #tpu.dot_dimension_numbers<[1], [0], [0], [1], [0, 0, 1, 1], [], []>} : vector<128x30xbf16>, vector<30x12xbf16>, vector<128x12xf32> -> vector<128x12xf32>
    %cst_15 = arith.constant dense<0.000000e+00> : vector<128x12xf32>
    %24 = tpu.matmul %15, %9, %cst_15 {dimension_numbers = #tpu.dot_dimension_numbers<[1], [0], [0], [1], [0, 0, 1, 1], [], []>} : vector<128x30xbf16>, vector<30x12xbf16>, vector<128x12xf32> -> vector<128x12xf32>
    %25 = arith.addf %23, %24 : vector<128x12xf32>
    %cst_16 = arith.constant dense<0.000000e+00> : vector<128x12xf32>
    %26 = tpu.matmul %17, %11, %cst_16 {dimension_numbers = #tpu.dot_dimension_numbers<[1], [0], [0], [1], [0, 0, 1, 1], [], []>} : vector<128x30xbf16>, vector<30x12xbf16>, vector<128x12xf32> -> vector<128x12xf32>
    %27 = arith.addf %25, %26 : vector<128x12xf32>
    %28 = arith.maximumf %22, %27 : vector<128x12xf32>
    %29 = vector.shape_cast %28 : vector<128x12xf32> to vector<4x32x12xf32>
    %30 = vector.extract_strided_slice %29 {offsets = [0, 0, 0], sizes = [4, 16, 12], strides = [1, 1, 1]} : vector<4x32x12xf32> to vector<4x16x12xf32>
    %31 = vector.extract_strided_slice %29 {offsets = [0, 16, 0], sizes = [4, 16, 12], strides = [1, 1, 1]} : vector<4x32x12xf32> to vector<4x16x12xf32>
    %32 = arith.maximumf %30, %31 : vector<4x16x12xf32>
    %33 = vector.shape_cast %32 : vector<4x16x12xf32> to vector<64x12xf32>
    %c0_17 = arith.constant 0 : index
    %c0_18 = arith.constant 0 : index
    %34 = vector.load %arg4[%c0_17, %c0_18] : memref<64x1xf32, #tpu.memory_space<vmem>>, vector<64x1xf32>
    %35 = vector.broadcast %34 : vector<64x1xf32> to vector<64x12xf32>
    %36 = arith.addf %33, %35 : vector<64x12xf32>
    %cst_19 = arith.constant 0.000000e+00 : f32
    %37 = vector.broadcast %cst_19 : f32 to vector<64x12xf32>
    %38 = arith.maximumf %36, %37 : vector<64x12xf32>
    %39 = arith.truncf %38 : vector<64x12xf32> to vector<64x12xbf16>
    %c0_20 = arith.constant 0 : index
    %c0_21 = arith.constant 0 : index
    %c0_22 = arith.constant 0 : index
    %40 = vector.load %arg5[%c0_20, %c0_21, %c0_22] : memref<1x64x12xbf16, #tpu.memory_space<vmem>>, vector<1x64x12xbf16>
    %41 = vector.shape_cast %40 : vector<1x64x12xbf16> to vector<64x12xbf16>
    %42 = vector.shape_cast %39 : vector<64x12xbf16> to vector<1x64x12xbf16>
    tpu.vector_store %arg5[%c0_20, %c0_21, %c0_22], %42 {strides = array<i32>} : memref<1x64x12xbf16, #tpu.memory_space<vmem>>, vector<1x64x12xbf16>,
    return
  }
  func.func @transform_0(%arg0: i32, %arg1: i32) -> (i32, i32, i32, i32) {
    %c0_i32 = arith.constant 0 : i32
    %c0_i32_0 = arith.constant 0 : i32
    %c0_i32_1 = arith.constant 0 : i32
    %c0_i32_2 = arith.constant 0 : i32
    return %arg0, %c0_i32, %c0_i32_0, %c0_i32_1 : i32, i32, i32, i32
  }
  func.func @transform_1(%arg0: i32, %arg1: i32) -> (i32, i32, i32) {
    %c0_i32 = arith.constant 0 : i32
    %c0_i32_0 = arith.constant 0 : i32
    %c0_i32_1 = arith.constant 0 : i32
    %c0_i32_2 = arith.constant 0 : i32
    return %c0_i32, %c0_i32_0, %c0_i32_1 : i32, i32, i32
  }
  func.func @transform_2(%arg0: i32, %arg1: i32) -> (i32, i32) {
    %c0_i32 = arith.constant 0 : i32
    %c0_i32_0 = arith.constant 0 : i32
    %c0_i32_1 = arith.constant 0 : i32
    return %c0_i32, %c0_i32_0 : i32, i32
  }
  func.func @transform_3(%arg0: i32, %arg1: i32) -> (i32, i32, i32) {
    %c0_i32 = arith.constant 0 : i32
    %c0_i32_0 = arith.constant 0 : i32
    return %arg0, %arg1, %c0_i32 : i32, i32, i32
  }
}

module attributes {stable_mosaic.version = 11 : i64} {
  func.func @_conv_stage_kernel(%arg0: i32, %arg1: i32, %arg2: memref<1x2x160x7xbf16, #tpu.memory_space<vmem>>, %arg3: memref<3x256x160xbf16, #tpu.memory_space<vmem>>, %arg4: memref<128x1xf32, #tpu.memory_space<vmem>>, %arg5: memref<1x128x6xbf16, #tpu.memory_space<vmem>>) attributes {dimension_semantics = [#tpu.dimension_semantics<parallel>, #tpu.dimension_semantics<parallel>], iteration_bounds = array<i64: 2, 1>, scalar_prefetch = 0 : i64, scratch_operands = 0 : i64, tpu.core_type = #tpu.core_type<tc>, window_params = [{transform_indices = @transform_0, window_bounds = array<i64: 1, 2, 160, 7>}, {pipeline_mode = #tpu.pipeline_mode<synchronous>, transform_indices = @transform_1, window_bounds = array<i64: 3, 256, 160>}, {pipeline_mode = #tpu.pipeline_mode<synchronous>, transform_indices = @transform_2, window_bounds = array<i64: 128, 1>}, {transform_indices = @transform_3, window_bounds = array<i64: 1, 128, 6>}]} {
    %c128_i32 = arith.constant 128 : i32
    %0 = arith.muli %arg1, %c128_i32 : i32
    %1 = tpu.assume_multiple %0, 128 : i32
    %c0 = arith.constant 0 : index
    %c0_0 = arith.constant 0 : index
    %2 = arith.index_cast %1 : i32 to index
    %c0_1 = arith.constant 0 : index
    %3 = vector.load %arg2[%c0, %c0_0, %2, %c0_1] : memref<1x2x160x7xbf16, #tpu.memory_space<vmem>>, vector<1x1x160x7xbf16>
    %4 = vector.shape_cast %3 : vector<1x1x160x7xbf16> to vector<160x7xbf16>
    %c0_2 = arith.constant 0 : index
    %c1 = arith.constant 1 : index
    %5 = arith.index_cast %1 : i32 to index
    %c0_3 = arith.constant 0 : index
    %6 = vector.load %arg2[%c0_2, %c1, %5, %c0_3] : memref<1x2x160x7xbf16, #tpu.memory_space<vmem>>, vector<1x1x160x7xbf16>
    %7 = vector.shape_cast %6 : vector<1x1x160x7xbf16> to vector<160x7xbf16>
    %8 = vector.extract_strided_slice %4 {offsets = [0, 0], sizes = [160, 6], strides = [1, 1]} : vector<160x7xbf16> to vector<160x6xbf16>
    %9 = vector.extract_strided_slice %4 {offsets = [0, 1], sizes = [160, 6], strides = [1, 1]} : vector<160x7xbf16> to vector<160x6xbf16>
    %10 = vector.extract_strided_slice %7 {offsets = [0, 0], sizes = [160, 6], strides = [1, 1]} : vector<160x7xbf16> to vector<160x6xbf16>
    %11 = vector.extract_strided_slice %7 {offsets = [0, 1], sizes = [160, 6], strides = [1, 1]} : vector<160x7xbf16> to vector<160x6xbf16>
    %c0_4 = arith.constant 0 : index
    %c0_5 = arith.constant 0 : index
    %c0_6 = arith.constant 0 : index
    %12 = vector.load %arg3[%c0_4, %c0_5, %c0_6] : memref<3x256x160xbf16, #tpu.memory_space<vmem>>, vector<1x256x160xbf16>
    %13 = vector.shape_cast %12 : vector<1x256x160xbf16> to vector<256x160xbf16>
    %c1_7 = arith.constant 1 : index
    %c0_8 = arith.constant 0 : index
    %c0_9 = arith.constant 0 : index
    %14 = vector.load %arg3[%c1_7, %c0_8, %c0_9] : memref<3x256x160xbf16, #tpu.memory_space<vmem>>, vector<1x256x160xbf16>
    %15 = vector.shape_cast %14 : vector<1x256x160xbf16> to vector<256x160xbf16>
    %c2 = arith.constant 2 : index
    %c0_10 = arith.constant 0 : index
    %c0_11 = arith.constant 0 : index
    %16 = vector.load %arg3[%c2, %c0_10, %c0_11] : memref<3x256x160xbf16, #tpu.memory_space<vmem>>, vector<1x256x160xbf16>
    %17 = vector.shape_cast %16 : vector<1x256x160xbf16> to vector<256x160xbf16>
    %cst = arith.constant dense<0.000000e+00> : vector<256x6xf32>
    %18 = tpu.matmul %13, %8, %cst {dimension_numbers = #tpu.dot_dimension_numbers<[1], [0], [0], [1], [0, 0, 1, 1], [], []>} : vector<256x160xbf16>, vector<160x6xbf16>, vector<256x6xf32> -> vector<256x6xf32>
    %cst_12 = arith.constant dense<0.000000e+00> : vector<256x6xf32>
    %19 = tpu.matmul %15, %10, %cst_12 {dimension_numbers = #tpu.dot_dimension_numbers<[1], [0], [0], [1], [0, 0, 1, 1], [], []>} : vector<256x160xbf16>, vector<160x6xbf16>, vector<256x6xf32> -> vector<256x6xf32>
    %20 = arith.addf %18, %19 : vector<256x6xf32>
    %cst_13 = arith.constant dense<0.000000e+00> : vector<256x6xf32>
    %21 = tpu.matmul %17, %9, %cst_13 {dimension_numbers = #tpu.dot_dimension_numbers<[1], [0], [0], [1], [0, 0, 1, 1], [], []>} : vector<256x160xbf16>, vector<160x6xbf16>, vector<256x6xf32> -> vector<256x6xf32>
    %22 = arith.addf %20, %21 : vector<256x6xf32>
    %cst_14 = arith.constant dense<0.000000e+00> : vector<256x6xf32>
    %23 = tpu.matmul %13, %10, %cst_14 {dimension_numbers = #tpu.dot_dimension_numbers<[1], [0], [0], [1], [0, 0, 1, 1], [], []>} : vector<256x160xbf16>, vector<160x6xbf16>, vector<256x6xf32> -> vector<256x6xf32>
    %cst_15 = arith.constant dense<0.000000e+00> : vector<256x6xf32>
    %24 = tpu.matmul %15, %9, %cst_15 {dimension_numbers = #tpu.dot_dimension_numbers<[1], [0], [0], [1], [0, 0, 1, 1], [], []>} : vector<256x160xbf16>, vector<160x6xbf16>, vector<256x6xf32> -> vector<256x6xf32>
    %25 = arith.addf %23, %24 : vector<256x6xf32>
    %cst_16 = arith.constant dense<0.000000e+00> : vector<256x6xf32>
    %26 = tpu.matmul %17, %11, %cst_16 {dimension_numbers = #tpu.dot_dimension_numbers<[1], [0], [0], [1], [0, 0, 1, 1], [], []>} : vector<256x160xbf16>, vector<160x6xbf16>, vector<256x6xf32> -> vector<256x6xf32>
    %27 = arith.addf %25, %26 : vector<256x6xf32>
    %28 = arith.maximumf %22, %27 : vector<256x6xf32>
    %29 = vector.shape_cast %28 : vector<256x6xf32> to vector<4x64x6xf32>
    %30 = vector.extract_strided_slice %29 {offsets = [0, 0, 0], sizes = [4, 32, 6], strides = [1, 1, 1]} : vector<4x64x6xf32> to vector<4x32x6xf32>
    %31 = vector.extract_strided_slice %29 {offsets = [0, 32, 0], sizes = [4, 32, 6], strides = [1, 1, 1]} : vector<4x64x6xf32> to vector<4x32x6xf32>
    %32 = arith.maximumf %30, %31 : vector<4x32x6xf32>
    %33 = vector.shape_cast %32 : vector<4x32x6xf32> to vector<128x6xf32>
    %c0_17 = arith.constant 0 : index
    %c0_18 = arith.constant 0 : index
    %34 = vector.load %arg4[%c0_17, %c0_18] : memref<128x1xf32, #tpu.memory_space<vmem>>, vector<128x1xf32>
    %35 = vector.broadcast %34 : vector<128x1xf32> to vector<128x6xf32>
    %36 = arith.addf %33, %35 : vector<128x6xf32>
    %cst_19 = arith.constant 0.000000e+00 : f32
    %37 = vector.broadcast %cst_19 : f32 to vector<128x6xf32>
    %38 = arith.maximumf %36, %37 : vector<128x6xf32>
    %39 = arith.truncf %38 : vector<128x6xf32> to vector<128x6xbf16>
    %c0_20 = arith.constant 0 : index
    %c0_21 = arith.constant 0 : index
    %c0_22 = arith.constant 0 : index
    %40 = vector.load %arg5[%c0_20, %c0_21, %c0_22] : memref<1x128x6xbf16, #tpu.memory_space<vmem>>, vector<1x128x6xbf16>
    %41 = vector.shape_cast %40 : vector<1x128x6xbf16> to vector<128x6xbf16>
    %42 = vector.shape_cast %39 : vector<128x6xbf16> to vector<1x128x6xbf16>
    tpu.vector_store %arg5[%c0_20, %c0_21, %c0_22], %42 {strides = array<i32>} : memref<1x128x6xbf16, #tpu.memory_space<vmem>>, vector<1x128x6xbf16>,
    return
  }
  func.func @transform_0(%arg0: i32, %arg1: i32) -> (i32, i32, i32, i32) {
    %c0_i32 = arith.constant 0 : i32
    %c0_i32_0 = arith.constant 0 : i32
    %c0_i32_1 = arith.constant 0 : i32
    %c0_i32_2 = arith.constant 0 : i32
    return %arg0, %c0_i32, %c0_i32_0, %c0_i32_1 : i32, i32, i32, i32
  }
  func.func @transform_1(%arg0: i32, %arg1: i32) -> (i32, i32, i32) {
    %c0_i32 = arith.constant 0 : i32
    %c0_i32_0 = arith.constant 0 : i32
    %c0_i32_1 = arith.constant 0 : i32
    %c0_i32_2 = arith.constant 0 : i32
    return %c0_i32, %c0_i32_0, %c0_i32_1 : i32, i32, i32
  }
  func.func @transform_2(%arg0: i32, %arg1: i32) -> (i32, i32) {
    %c0_i32 = arith.constant 0 : i32
    %c0_i32_0 = arith.constant 0 : i32
    %c0_i32_1 = arith.constant 0 : i32
    return %c0_i32, %c0_i32_0 : i32, i32
  }
  func.func @transform_3(%arg0: i32, %arg1: i32) -> (i32, i32, i32) {
    %c0_i32 = arith.constant 0 : i32
    %c0_i32_0 = arith.constant 0 : i32
    return %arg0, %arg1, %c0_i32 : i32, i32, i32
  }
}

module attributes {stable_mosaic.version = 11 : i64} {
  func.func @_linear_kernel(%arg0: i32, %arg1: i32, %arg2: memref<2x1024xbf16, #tpu.memory_space<vmem>>, %arg3: memref<1024x128xbf16, #tpu.memory_space<vmem>>, %arg4: memref<1x128xf32, #tpu.memory_space<vmem>>, %arg5: memref<2x128xf32, #tpu.memory_space<vmem>>, %arg6: memref<2x128xf32, #tpu.memory_space<vmem>>) attributes {dimension_semantics = [#tpu.dimension_semantics<parallel>, #tpu.dimension_semantics<arbitrary>], iteration_bounds = array<i64: 2, 1>, scalar_prefetch = 0 : i64, scratch_operands = 1 : i64, tpu.core_type = #tpu.core_type<tc>, window_params = [{transform_indices = @transform_0, window_bounds = array<i64: 2, 1024>}, {transform_indices = @transform_1, window_bounds = array<i64: 1024, 128>}, {transform_indices = @transform_2, window_bounds = array<i64: 1, 128>}, {transform_indices = @transform_3, window_bounds = array<i64: 2, 128>}]} {
    %c0_i32 = arith.constant 0 : i32
    %0 = arith.cmpi eq, %arg1, %c0_i32 : i32
    %1 = arith.extui %0 : i1 to i32
    %c0_i32_0 = arith.constant 0 : i32
    %2 = arith.cmpi ne, %1, %c0_i32_0 : i32
    scf.if %2 {
      %cst_10 = arith.constant 0.000000e+00 : f32
      %12 = vector.broadcast %cst_10 : f32 to vector<2x128xf32>
      %c0_11 = arith.constant 0 : index
      %c0_12 = arith.constant 0 : index
      %13 = vector.load %arg6[%c0_11, %c0_12] : memref<2x128xf32, #tpu.memory_space<vmem>>, vector<2x128xf32>
      tpu.vector_store %arg6[%c0_11, %c0_12], %12 {strides = array<i32>} : memref<2x128xf32, #tpu.memory_space<vmem>>, vector<2x128xf32>,
    } else {
    }
    %c0 = arith.constant 0 : index
    %c0_1 = arith.constant 0 : index
    %3 = vector.load %arg6[%c0, %c0_1] : memref<2x128xf32, #tpu.memory_space<vmem>>, vector<2x128xf32>
    %c0_2 = arith.constant 0 : index
    %c0_3 = arith.constant 0 : index
    %4 = vector.load %arg2[%c0_2, %c0_3] : memref<2x1024xbf16, #tpu.memory_space<vmem>>, vector<2x1024xbf16>
    %c0_4 = arith.constant 0 : index
    %c0_5 = arith.constant 0 : index
    %5 = vector.load %arg3[%c0_4, %c0_5] : memref<1024x128xbf16, #tpu.memory_space<vmem>>, vector<1024x128xbf16>
    %cst = arith.constant dense<0.000000e+00> : vector<2x128xf32>
    %6 = tpu.matmul %4, %5, %cst {dimension_numbers = #tpu.dot_dimension_numbers<[1], [0], [0], [1], [0, 0, 1, 1], [], []>} : vector<2x1024xbf16>, vector<1024x128xbf16>, vector<2x128xf32> -> vector<2x128xf32>
    %7 = arith.addf %3, %6 : vector<2x128xf32>
    %c0_6 = arith.constant 0 : index
    %c0_7 = arith.constant 0 : index
    %8 = vector.load %arg6[%c0_6, %c0_7] : memref<2x128xf32, #tpu.memory_space<vmem>>, vector<2x128xf32>
    tpu.vector_store %arg6[%c0_6, %c0_7], %7 {strides = array<i32>} : memref<2x128xf32, #tpu.memory_space<vmem>>, vector<2x128xf32>,
    %c0_i32_8 = arith.constant 0 : i32
    %9 = arith.cmpi eq, %arg1, %c0_i32_8 : i32
    %10 = arith.extui %9 : i1 to i32
    %c0_i32_9 = arith.constant 0 : i32
    %11 = arith.cmpi ne, %10, %c0_i32_9 : i32
    scf.if %11 {
      %c0_10 = arith.constant 0 : index
      %c0_11 = arith.constant 0 : index
      %12 = vector.load %arg6[%c0_10, %c0_11] : memref<2x128xf32, #tpu.memory_space<vmem>>, vector<2x128xf32>
      %c0_12 = arith.constant 0 : index
      %c0_13 = arith.constant 0 : index
      %13 = vector.load %arg4[%c0_12, %c0_13] : memref<1x128xf32, #tpu.memory_space<vmem>>, vector<1x128xf32>
      %14 = vector.broadcast %13 : vector<1x128xf32> to vector<2x128xf32>
      %15 = arith.addf %12, %14 : vector<2x128xf32>
      %cst_14 = arith.constant 0.000000e+00 : f32
      %16 = vector.broadcast %cst_14 : f32 to vector<2x128xf32>
      %17 = arith.maximumf %15, %16 : vector<2x128xf32>
      %c0_15 = arith.constant 0 : index
      %c0_16 = arith.constant 0 : index
      %18 = vector.load %arg5[%c0_15, %c0_16] : memref<2x128xf32, #tpu.memory_space<vmem>>, vector<2x128xf32>
      tpu.vector_store %arg5[%c0_15, %c0_16], %17 {strides = array<i32>} : memref<2x128xf32, #tpu.memory_space<vmem>>, vector<2x128xf32>,
    } else {
    }
    return
  }
  func.func @transform_0(%arg0: i32, %arg1: i32) -> (i32, i32) {
    %c0_i32 = arith.constant 0 : i32
    %c0_i32_0 = arith.constant 0 : i32
    return %c0_i32, %arg1 : i32, i32
  }
  func.func @transform_1(%arg0: i32, %arg1: i32) -> (i32, i32) {
    %c0_i32 = arith.constant 0 : i32
    return %arg1, %arg0 : i32, i32
  }
  func.func @transform_2(%arg0: i32, %arg1: i32) -> (i32, i32) {
    %c0_i32 = arith.constant 0 : i32
    %c0_i32_0 = arith.constant 0 : i32
    return %c0_i32, %arg0 : i32, i32
  }
  func.func @transform_3(%arg0: i32, %arg1: i32) -> (i32, i32) {
    %c0_i32 = arith.constant 0 : i32
    %c0_i32_0 = arith.constant 0 : i32
    return %c0_i32, %arg0 : i32, i32
  }
}

</mosaic_0001>

<llo_original>
// kernel: tile.10
$region0: #{tile.10}
  #allocation0 [shape = 's32[1]{0}', space=sflag, size = 0x4, scoped, tag = 'scoped memory for tile.10']
  %s0 = inlined_call_operand.vmem [shape: f32[16], index: 0, kind: input, shape index: {}]
  %s1 = inlined_call_operand.vmem [shape: f32[4,16], index: 1, kind: output, shape index: {}]
  // Predicated region
  $region2: #{tile.10} parent=0 // pred_check
    _
  $region3: #{tile.10} parent=0 // pred_check_branch
    %3 = sbr.rel (0) target = $region5
  $region4: #{tile.10} parent=0 // pred_region
    _
  $region5: #{tile.10} parent=0 // pred_fallthru
    _
  %v4 = vld [vmem:[%s0] ss:$0 sm:$0xff]
  %5 = vst [vmem:[%s1] sm:$0xf] %v4

// kernel: tile.0
$region0: #{tile.0}
  %s0 = inlined_call_operand.vmem [shape: f32[4,16], index: 0, kind: input, shape index: {}]
  %s1 = inlined_call_operand.vmem [shape: f32[64,1], index: 1, kind: output, shape index: {}]
  $region1: #{tile.0} parent=0
    #allocation0 [shape = 'u8[4096]{0}', space=vmem, size = 0x1000, scoped, tag = 'scoped mem for input reshape']
    %s3 = sshllo.u32 0, 4
    %v4 = vld [vmem:[%s0] sm:%s3]
    %5 = vst [vmem:[#allocation0] sm:%s3] %v4
    %v6 = vld [vmem:[#allocation0] sm:$0xf]
    %vm7 = vcmask 7168
    %8 = vst.msk [vmem:[%s1] ss:$16 sm:$0x3] %vm7, %v6
    %9 = vst.msk [vmem:[%s1] ss:$16 sm:$0xc] %vm7, %v6
    %v10 = vld [vmem:[#allocation0] sm:$0xf]
    %11 = vrot.lane.b32.xlu0 %v10, 127
    %v12 = vpop.permute.xlu0 %11
    %vm13 = vcmask 7168
    %s14 = scalar_lea.vmem %s1, 1
    %15 = vst.msk [vmem:[%s14] ss:$16 sm:$0x3] %vm13, %v12
    %s16 = scalar_lea.vmem %s1, 1
    %17 = vst.msk [vmem:[%s16] ss:$16 sm:$0xc] %vm13, %v12
    %v18 = vld [vmem:[#allocation0] sm:$0xf]
    %19 = vrot.lane.b32.xlu0 %v18, 126
    %v20 = vpop.permute.xlu0 %19
    %vm21 = vcmask 7168
    %s22 = scalar_lea.vmem %s1, 2
    %23 = vst.msk [vmem:[%s22] ss:$16 sm:$0x3] %vm21, %v20
    %s24 = scalar_lea.vmem %s1, 2
    %25 = vst.msk [vmem:[%s24] ss:$16 sm:$0xc] %vm21, %v20
    %v26 = vld [vmem:[#allocation0] sm:$0xf]
    %27 = vrot.lane.b32.xlu0 %v26, 125
    %v28 = vpop.permute.xlu0 %27
    %vm29 = vcmask 7168
    %s30 = scalar_lea.vmem %s1, 3
    %31 = vst.msk [vmem:[%s30] ss:$16 sm:$0x3] %vm29, %v28
    %s32 = scalar_lea.vmem %s1, 3
    %33 = vst.msk [vmem:[%s32] ss:$16 sm:$0xc] %vm29, %v28
    %v34 = vld [vmem:[#allocation0] sm:$0xf]
    %35 = vrot.lane.b32.xlu0 %v34, 124
    %v36 = vpop.permute.xlu0 %35
    %vm37 = vcmask 7168
    %s38 = scalar_lea.vmem %s1, 4
    %39 = vst.msk [vmem:[%s38] ss:$16 sm:$0x3] %vm37, %v36
    %s40 = scalar_lea.vmem %s1, 4
    %41 = vst.msk [vmem:[%s40] ss:$16 sm:$0xc] %vm37, %v36
    %v42 = vld [vmem:[#allocation0] sm:$0xf]
    %43 = vrot.lane.b32.xlu0 %v42, 123
    %v44 = vpop.permute.xlu0 %43
    %vm45 = vcmask 7168
    %s46 = scalar_lea.vmem %s1, 5
    %47 = vst.msk [vmem:[%s46] ss:$16 sm:$0x3] %vm45, %v44
    %s48 = scalar_lea.vmem %s1, 5
    %49 = vst.msk [vmem:[%s48] ss:$16 sm:$0xc] %vm45, %v44
    %v50 = vld [vmem:[#allocation0] sm:$0xf]
    %51 = vrot.lane.b32.xlu0 %v50, 122
    %v52 = vpop.permute.xlu0 %51
    %vm53 = vcmask 7168
    %s54 = scalar_lea.vmem %s1, 6
    %55 = vst.msk [vmem:[%s54] ss:$16 sm:$0x3] %vm53, %v52
    %s56 = scalar_lea.vmem %s1, 6
    %57 = vst.msk [vmem:[%s56] ss:$16 sm:$0xc] %vm53, %v52
    %v58 = vld [vmem:[#allocation0] sm:$0xf]
    %59 = vrot.lane.b32.xlu0 %v58, 121
    %v60 = vpop.permute.xlu0 %59
    %vm61 = vcmask 7168
    %s62 = scalar_lea.vmem %s1, 7
    %63 = vst.msk [vmem:[%s62] ss:$16 sm:$0x3] %vm61, %v60
    %s64 = scalar_lea.vmem %s1, 7
    %65 = vst.msk [vmem:[%s64] ss:$16 sm:$0xc] %vm61, %v60
    %v66 = vld [vmem:[#allocation0] sm:$0xf]
    %67 = vrot.lane.b32.xlu0 %v66, 120
    %v68 = vpop.permute.xlu0 %67
    %vm69 = vcmask 7168
    %s70 = scalar_lea.vmem %s1, 8
    %71 = vst.msk [vmem:[%s70] ss:$16 sm:$0x3] %vm69, %v68
    %s72 = scalar_lea.vmem %s1, 8
    %73 = vst.msk [vmem:[%s72] ss:$16 sm:$0xc] %vm69, %v68
    %v74 = vld [vmem:[#allocation0] sm:$0xf]
    %75 = vrot.lane.b32.xlu0 %v74, 119
    %v76 = vpop.permute.xlu0 %75
    %vm77 = vcmask 7168
    %s78 = scalar_lea.vmem %s1, 9
    %79 = vst.msk [vmem:[%s78] ss:$16 sm:$0x3] %vm77, %v76
    %s80 = scalar_lea.vmem %s1, 9
    %81 = vst.msk [vmem:[%s80] ss:$16 sm:$0xc] %vm77, %v76
    %v82 = vld [vmem:[#allocation0] sm:$0xf]
    %83 = vrot.lane.b32.xlu0 %v82, 118
    %v84 = vpop.permute.xlu0 %83
    %vm85 = vcmask 7168
    %s86 = scalar_lea.vmem %s1, 10
    %87 = vst.msk [vmem:[%s86] ss:$16 sm:$0x3] %vm85, %v84
    %s88 = scalar_lea.vmem %s1, 10
    %89 = vst.msk [vmem:[%s88] ss:$16 sm:$0xc] %vm85, %v84
    %v90 = vld [vmem:[#allocation0] sm:$0xf]
    %91 = vrot.lane.b32.xlu0 %v90, 117
    %v92 = vpop.permute.xlu0 %91
    %vm93 = vcmask 7168
    %s94 = scalar_lea.vmem %s1, 11
    %95 = vst.msk [vmem:[%s94] ss:$16 sm:$0x3] %vm93, %v92
    %s96 = scalar_lea.vmem %s1, 11
    %97 = vst.msk [vmem:[%s96] ss:$16 sm:$0xc] %vm93, %v92
    %v98 = vld [vmem:[#allocation0] sm:$0xf]
    %99 = vrot.lane.b32.xlu0 %v98, 116
    %v100 = vpop.permute.xlu0 %99
    %vm101 = vcmask 7168
    %s102 = scalar_lea.vmem %s1, 12
    %103 = vst.msk [vmem:[%s102] ss:$16 sm:$0x3] %vm101, %v100
    %s104 = scalar_lea.vmem %s1, 12
    %105 = vst.msk [vmem:[%s104] ss:$16 sm:$0xc] %vm101, %v100
    %v106 = vld [vmem:[#allocation0] sm:$0xf]
    %107 = vrot.lane.b32.xlu0 %v106, 115
    %v108 = vpop.permute.xlu0 %107
    %vm109 = vcmask 7168
    %s110 = scalar_lea.vmem %s1, 13
    %111 = vst.msk [vmem:[%s110] ss:$16 sm:$0x3] %vm109, %v108
    %s112 = scalar_lea.vmem %s1, 13
    %113 = vst.msk [vmem:[%s112] ss:$16 sm:$0xc] %vm109, %v108
    %v114 = vld [vmem:[#allocation0] sm:$0xf]
    %115 = vrot.lane.b32.xlu0 %v114, 114
    %v116 = vpop.permute.xlu0 %115
    %vm117 = vcmask 7168
    %s118 = scalar_lea.vmem %s1, 14
    %119 = vst.msk [vmem:[%s118] ss:$16 sm:$0x3] %vm117, %v116
    %s120 = scalar_lea.vmem %s1, 14
    %121 = vst.msk [vmem:[%s120] ss:$16 sm:$0xc] %vm117, %v116
    %v122 = vld [vmem:[#allocation0] sm:$0xf]
    %123 = vrot.lane.b32.xlu0 %v122, 113
    %v124 = vpop.permute.xlu0 %123
    %vm125 = vcmask 7168
    %s126 = scalar_lea.vmem %s1, 15
    %127 = vst.msk [vmem:[%s126] ss:$16 sm:$0x3] %vm125, %v124
    %s128 = scalar_lea.vmem %s1, 15
    %129 = vst.msk [vmem:[%s128] ss:$16 sm:$0xc] %vm125, %v124

// kernel: tile.14
$region0: #{tile.14}
  #allocation0 [shape = 's32[1]{0}', space=sflag, size = 0x4, scoped, tag = 'scoped memory for tile.14']
  %s0 = inlined_call_operand.vmem [shape: f32[32], index: 0, kind: input, shape index: {}]
  %s1 = inlined_call_operand.vmem [shape: f32[4,32], index: 1, kind: output, shape index: {}]
  // Predicated region
  $region2: #{tile.14} parent=0 // pred_check
    _
  $region3: #{tile.14} parent=0 // pred_check_branch
    %3 = sbr.rel (0) target = $region5
  $region4: #{tile.14} parent=0 // pred_region
    _
  $region5: #{tile.14} parent=0 // pred_fallthru
    _
  %v4 = vld [vmem:[%s0] ss:$0 sm:$0xff]
  %5 = vst [vmem:[%s1] sm:$0xf] %v4

// kernel: tile.1
$region0: #{tile.1}
  %s0 = inlined_call_operand.vmem [shape: f32[4,32], index: 0, kind: input, shape index: {}]
  %s1 = inlined_call_operand.vmem [shape: f32[128,1], index: 1, kind: output, shape index: {}]
  $region1: #{tile.1} parent=0
    #allocation0 [shape = 'u8[4096]{0}', space=vmem, size = 0x1000, scoped, tag = 'scoped mem for input reshape']
    %s3 = sshllo.u32 0, 4
    %v4 = vld [vmem:[%s0] sm:%s3]
    %5 = vst [vmem:[#allocation0] sm:%s3] %v4
    %v6 = vld [vmem:[#allocation0] sm:$0xf]
    %vm7 = vcmask 7168
    %8 = vst.msk [vmem:[%s1] sm:$0x1] %vm7, %v6
    %s9 = scalar_lea.vmem %s1, 31
    %10 = vst.msk [vmem:[%s9] sm:$0x2] %vm7, %v6
    %s11 = scalar_lea.vmem %s1, 62
    %12 = vst.msk [vmem:[%s11] sm:$0x4] %vm7, %v6
    %s13 = scalar_lea.vmem %s1, 93
    %14 = vst.msk [vmem:[%s13] sm:$0x8] %vm7, %v6
    %v15 = vld [vmem:[#allocation0] sm:$0xf]
    %16 = vrot.lane.b32.xlu0 %v15, 127
    %v17 = vpop.permute.xlu0 %16
    %vm18 = vcmask 7168
    %s19 = scalar_lea.vmem %s1, 1
    %20 = vst.msk [vmem:[%s19] sm:$0x1] %vm18, %v17
    %s21 = scalar_lea.vmem %s1, 32
    %22 = vst.msk [vmem:[%s21] sm:$0x2] %vm18, %v17
    %s23 = scalar_lea.vmem %s1, 63
    %24 = vst.msk [vmem:[%s23] sm:$0x4] %vm18, %v17
    %s25 = scalar_lea.vmem %s1, 94
    %26 = vst.msk [vmem:[%s25] sm:$0x8] %vm18, %v17
    %v27 = vld [vmem:[#allocation0] sm:$0xf]
    %28 = vrot.lane.b32.xlu0 %v27, 126
    %v29 = vpop.permute.xlu0 %28
    %vm30 = vcmask 7168
    %s31 = scalar_lea.vmem %s1, 2
    %32 = vst.msk [vmem:[%s31] sm:$0x1] %vm30, %v29
    %s33 = scalar_lea.vmem %s1, 33
    %34 = vst.msk [vmem:[%s33] sm:$0x2] %vm30, %v29
    %s35 = scalar_lea.vmem %s1, 64
    %36 = vst.msk [vmem:[%s35] sm:$0x4] %vm30, %v29
    %s37 = scalar_lea.vmem %s1, 95
    %38 = vst.msk [vmem:[%s37] sm:$0x8] %vm30, %v29
    %v39 = vld [vmem:[#allocation0] sm:$0xf]
    %40 = vrot.lane.b32.xlu0 %v39, 125
    %v41 = vpop.permute.xlu0 %40
    %vm42 = vcmask 7168
    %s43 = scalar_lea.vmem %s1, 3
    %44 = vst.msk [vmem:[%s43] sm:$0x1] %vm42, %v41
    %s45 = scalar_lea.vmem %s1, 34
    %46 = vst.msk [vmem:[%s45] sm:$0x2] %vm42, %v41
    %s47 = scalar_lea.vmem %s1, 65
    %48 = vst.msk [vmem:[%s47] sm:$0x4] %vm42, %v41
    %s49 = scalar_lea.vmem %s1, 96
    %50 = vst.msk [vmem:[%s49] sm:$0x8] %vm42, %v41
    %v51 = vld [vmem:[#allocation0] sm:$0xf]
    %52 = vrot.lane.b32.xlu0 %v51, 124
    %v53 = vpop.permute.xlu0 %52
    %vm54 = vcmask 7168
    %s55 = scalar_lea.vmem %s1, 4
    %56 = vst.msk [vmem:[%s55] sm:$0x1] %vm54, %v53
    %s57 = scalar_lea.vmem %s1, 35
    %58 = vst.msk [vmem:[%s57] sm:$0x2] %vm54, %v53
    %s59 = scalar_lea.vmem %s1, 66
    %60 = vst.msk [vmem:[%s59] sm:$0x4] %vm54, %v53
    %s61 = scalar_lea.vmem %s1, 97
    %62 = vst.msk [vmem:[%s61] sm:$0x8] %vm54, %v53
    %v63 = vld [vmem:[#allocation0] sm:$0xf]
    %64 = vrot.lane.b32.xlu0 %v63, 123
    %v65 = vpop.permute.xlu0 %64
    %vm66 = vcmask 7168
    %s67 = scalar_lea.vmem %s1, 5
    %68 = vst.msk [vmem:[%s67] sm:$0x1] %vm66, %v65
    %s69 = scalar_lea.vmem %s1, 36
    %70 = vst.msk [vmem:[%s69] sm:$0x2] %vm66, %v65
    %s71 = scalar_lea.vmem %s1, 67
    %72 = vst.msk [vmem:[%s71] sm:$0x4] %vm66, %v65
    %s73 = scalar_lea.vmem %s1, 98
    %74 = vst.msk [vmem:[%s73] sm:$0x8] %vm66, %v65
    %v75 = vld [vmem:[#allocation0] sm:$0xf]
    %76 = vrot.lane.b32.xlu0 %v75, 122
    %v77 = vpop.permute.xlu0 %76
    %vm78 = vcmask 7168
    %s79 = scalar_lea.vmem %s1, 6
    %80 = vst.msk [vmem:[%s79] sm:$0x1] %vm78, %v77
    %s81 = scalar_lea.vmem %s1, 37
    %82 = vst.msk [vmem:[%s81] sm:$0x2] %vm78, %v77
    %s83 = scalar_lea.vmem %s1, 68
    %84 = vst.msk [vmem:[%s83] sm:$0x4] %vm78, %v77
    %s85 = scalar_lea.vmem %s1, 99
    %86 = vst.msk [vmem:[%s85] sm:$0x8] %vm78, %v77
    %v87 = vld [vmem:[#allocation0] sm:$0xf]
    %88 = vrot.lane.b32.xlu0 %v87, 121
    %v89 = vpop.permute.xlu0 %88
    %vm90 = vcmask 7168
    %s91 = scalar_lea.vmem %s1, 7
    %92 = vst.msk [vmem:[%s91] sm:$0x1] %vm90, %v89
    %s93 = scalar_lea.vmem %s1, 38
    %94 = vst.msk [vmem:[%s93] sm:$0x2] %vm90, %v89
    %s95 = scalar_lea.vmem %s1, 69
    %96 = vst.msk [vmem:[%s95] sm:$0x4] %vm90, %v89
    %s97 = scalar_lea.vmem %s1, 100
    %98 = vst.msk [vmem:[%s97] sm:$0x8] %vm90, %v89
    %v99 = vld [vmem:[#allocation0] sm:$0xf]
    %100 = vrot.lane.b32.xlu0 %v99, 120
    %v101 = vpop.permute.xlu0 %100
    %vm102 = vcmask 7168
    %s103 = scalar_lea.vmem %s1, 8
    %104 = vst.msk [vmem:[%s103] sm:$0x1] %vm102, %v101
    %s105 = scalar_lea.vmem %s1, 39
    %106 = vst.msk [vmem:[%s105] sm:$0x2] %vm102, %v101
    %s107 = scalar_lea.vmem %s1, 70
    %108 = vst.msk [vmem:[%s107] sm:$0x4] %vm102, %v101
    %s109 = scalar_lea.vmem %s1, 101
    %110 = vst.msk [vmem:[%s109] sm:$0x8] %vm102, %v101
    %v111 = vld [vmem:[#allocation0] sm:$0xf]
    %112 = vrot.lane.b32.xlu0 %v111, 119
    %v113 = vpop.permute.xlu0 %112
    %vm114 = vcmask 7168
    %s115 = scalar_lea.vmem %s1, 9
    %116 = vst.msk [vmem:[%s115] sm:$0x1] %vm114, %v113
    %s117 = scalar_lea.vmem %s1, 40
    %118 = vst.msk [vmem:[%s117] sm:$0x2] %vm114, %v113
    %s119 = scalar_lea.vmem %s1, 71
    %120 = vst.msk [vmem:[%s119] sm:$0x4] %vm114, %v113
    %s121 = scalar_lea.vmem %s1, 102
    %122 = vst.msk [vmem:[%s121] sm:$0x8] %vm114, %v113
    %v123 = vld [vmem:[#allocation0] sm:$0xf]
    %124 = vrot.lane.b32.xlu0 %v123, 118
    %v125 = vpop.permute.xlu0 %124
    %vm126 = vcmask 7168
    %s127 = scalar_lea.vmem %s1, 10
    %128 = vst.msk [vmem:[%s127] sm:$0x1] %vm126, %v125
    %s129 = scalar_lea.vmem %s1, 41
    %130 = vst.msk [vmem:[%s129] sm:$0x2] %vm126, %v125
    %s131 = scalar_lea.vmem %s1, 72
    %132 = vst.msk [vmem:[%s131] sm:$0x4] %vm126, %v125
    %s133 = scalar_lea.vmem %s1, 103
    %134 = vst.msk [vmem:[%s133] sm:$0x8] %vm126, %v125
    %v135 = vld [vmem:[#allocation0] sm:$0xf]
    %136 = vrot.lane.b32.xlu0 %v135, 117
    %v137 = vpop.permute.xlu0 %136
    %vm138 = vcmask 7168
    %s139 = scalar_lea.vmem %s1, 11
    %140 = vst.msk [vmem:[%s139] sm:$0x1] %vm138, %v137
    %s141 = scalar_lea.vmem %s1, 42
    %142 = vst.msk [vmem:[%s141] sm:$0x2] %vm138, %v137
    %s143 = scalar_lea.vmem %s1, 73
    %144 = vst.msk [vmem:[%s143] sm:$0x4] %vm138, %v137
    %s145 = scalar_lea.vmem %s1, 104
    %146 = vst.msk [vmem:[%s145] sm:$0x8] %vm138, %v137
    %v147 = vld [vmem:[#allocation0] sm:$0xf]
    %148 = vrot.lane.b32.xlu0 %v147, 116
    %v149 = vpop.permute.xlu0 %148
    %vm150 = vcmask 7168
    %s151 = scalar_lea.vmem %s1, 12
    %152 = vst.msk [vmem:[%s151] sm:$0x1] %vm150, %v149
    %s153 = scalar_lea.vmem %s1, 43
    %154 = vst.msk [vmem:[%s153] sm:$0x2] %vm150, %v149
    %s155 = scalar_lea.vmem %s1, 74
    %156 = vst.msk [vmem:[%s155] sm:$0x4] %vm150, %v149
    %s157 = scalar_lea.vmem %s1, 105
    %158 = vst.msk [vmem:[%s157] sm:$0x8] %vm150, %v149
    %v159 = vld [vmem:[#allocation0] sm:$0xf]
    %160 = vrot.lane.b32.xlu0 %v159, 115
    %v161 = vpop.permute.xlu0 %160
    %vm162 = vcmask 7168
    %s163 = scalar_lea.vmem %s1, 13
    %164 = vst.msk [vmem:[%s163] sm:$0x1] %vm162, %v161
    %s165 = scalar_lea.vmem %s1, 44
    %166 = vst.msk [vmem:[%s165] sm:$0x2] %vm162, %v161
    %s167 = scalar_lea.vmem %s1, 75
    %168 = vst.msk [vmem:[%s167] sm:$0x4] %vm162, %v161
    %s169 = scalar_lea.vmem %s1, 106
    %170 = vst.msk [vmem:[%s169] sm:$0x8] %vm162, %v161
    %v171 = vld [vmem:[#allocation0] sm:$0xf]
    %172 = vrot.lane.b32.xlu0 %v171, 114
    %v173 = vpop.permute.xlu0 %172
    %vm174 = vcmask 7168
    %s175 = scalar_lea.vmem %s1, 14
    %176 = vst.msk [vmem:[%s175] sm:$0x1] %vm174, %v173
    %s177 = scalar_lea.vmem %s1, 45
    %178 = vst.msk [vmem:[%s177] sm:$0x2] %vm174, %v173
    %s179 = scalar_lea.vmem %s1, 76
    %180 = vst.msk [vmem:[%s179] sm:$0x4] %vm174, %v173
    %s181 = scalar_lea.vmem %s1, 107
    %182 = vst.msk [vmem:[%s181] sm:$0x8] %vm174, %v173
    %v183 = vld [vmem:[#allocation0] sm:$0xf]
    %184 = vrot.lane.b32.xlu0 %v183, 113
    %v185 = vpop.permute.xlu0 %184
    %vm186 = vcmask 7168
    %s187 = scalar_lea.vmem %s1, 15
    %188 = vst.msk [vmem:[%s187] sm:$0x1] %vm186, %v185
    %s189 = scalar_lea.vmem %s1, 46
    %190 = vst.msk [vmem:[%s189] sm:$0x2] %vm186, %v185
    %s191 = scalar_lea.vmem %s1, 77
    %192 = vst.msk [vmem:[%s191] sm:$0x4] %vm186, %v185
    %s193 = scalar_lea.vmem %s1, 108
    %194 = vst.msk [vmem:[%s193] sm:$0x8] %vm186, %v185
    %v195 = vld [vmem:[#allocation0] sm:$0xf]
    %196 = vrot.lane.b32.xlu0 %v195, 112
    %v197 = vpop.permute.xlu0 %196
    %vm198 = vcmask 7168
    %s199 = scalar_lea.vmem %s1, 16
    %200 = vst.msk [vmem:[%s199] sm:$0x1] %vm198, %v197
    %s201 = scalar_lea.vmem %s1, 47
    %202 = vst.msk [vmem:[%s201] sm:$0x2] %vm198, %v197
    %s203 = scalar_lea.vmem %s1, 78
    %204 = vst.msk [vmem:[%s203] sm:$0x4] %vm198, %v197
    %s205 = scalar_lea.vmem %s1, 109
    %206 = vst.msk [vmem:[%s205] sm:$0x8] %vm198, %v197
    %v207 = vld [vmem:[#allocation0] sm:$0xf]
    %208 = vrot.lane.b32.xlu0 %v207, 111
    %v209 = vpop.permute.xlu0 %208
    %vm210 = vcmask 7168
    %s211 = scalar_lea.vmem %s1, 17
    %212 = vst.msk [vmem:[%s211] sm:$0x1] %vm210, %v209
    %s213 = scalar_lea.vmem %s1, 48
    %214 = vst.msk [vmem:[%s213] sm:$0x2] %vm210, %v209
    %s215 = scalar_lea.vmem %s1, 79
    %216 = vst.msk [vmem:[%s215] sm:$0x4] %vm210, %v209
    %s217 = scalar_lea.vmem %s1, 110
    %218 = vst.msk [vmem:[%s217] sm:$0x8] %vm210, %v209
    %v219 = vld [vmem:[#allocation0] sm:$0xf]
    %220 = vrot.lane.b32.xlu0 %v219, 110
    %v221 = vpop.permute.xlu0 %220
    %vm222 = vcmask 7168
    %s223 = scalar_lea.vmem %s1, 18
    %224 = vst.msk [vmem:[%s223] sm:$0x1] %vm222, %v221
    %s225 = scalar_lea.vmem %s1, 49
    %226 = vst.msk [vmem:[%s225] sm:$0x2] %vm222, %v221
    %s227 = scalar_lea.vmem %s1, 80
    %228 = vst.msk [vmem:[%s227] sm:$0x4] %vm222, %v221
    %s229 = scalar_lea.vmem %s1, 111
    %230 = vst.msk [vmem:[%s229] sm:$0x8] %vm222, %v221
    %v231 = vld [vmem:[#allocation0] sm:$0xf]
    %232 = vrot.lane.b32.xlu0 %v231, 109
    %v233 = vpop.permute.xlu0 %232
    %vm234 = vcmask 7168
    %s235 = scalar_lea.vmem %s1, 19
    %236 = vst.msk [vmem:[%s235] sm:$0x1] %vm234, %v233
    %s237 = scalar_lea.vmem %s1, 50
    %238 = vst.msk [vmem:[%s237] sm:$0x2] %vm234, %v233
    %s239 = scalar_lea.vmem %s1, 81
    %240 = vst.msk [vmem:[%s239] sm:$0x4] %vm234, %v233
    %s241 = scalar_lea.vmem %s1, 112
    %242 = vst.msk [vmem:[%s241] sm:$0x8] %vm234, %v233
    %v243 = vld [vmem:[#allocation0] sm:$0xf]
    %244 = vrot.lane.b32.xlu0 %v243, 108
    %v245 = vpop.permute.xlu0 %244
    %vm246 = vcmask 7168
    %s247 = scalar_lea.vmem %s1, 20
    %248 = vst.msk [vmem:[%s247] sm:$0x1] %vm246, %v245
    %s249 = scalar_lea.vmem %s1, 51
    %250 = vst.msk [vmem:[%s249] sm:$0x2] %vm246, %v245
    %s251 = scalar_lea.vmem %s1, 82
    %252 = vst.msk [vmem:[%s251] sm:$0x4] %vm246, %v245
    %s253 = scalar_lea.vmem %s1, 113
    %254 = vst.msk [vmem:[%s253] sm:$0x8] %vm246, %v245
    %v255 = vld [vmem:[#allocation0] sm:$0xf]
    %256 = vrot.lane.b32.xlu0 %v255, 107
    %v257 = vpop.permute.xlu0 %256
    %vm258 = vcmask 7168
    %s259 = scalar_lea.vmem %s1, 21
    %260 = vst.msk [vmem:[%s259] sm:$0x1] %vm258, %v257
    %s261 = scalar_lea.vmem %s1, 52
    %262 = vst.msk [vmem:[%s261] sm:$0x2] %vm258, %v257
    %s263 = scalar_lea.vmem %s1, 83
    %264 = vst.msk [vmem:[%s263] sm:$0x4] %vm258, %v257
    %s265 = scalar_lea.vmem %s1, 114
    %266 = vst.msk [vmem:[%s265] sm:$0x8] %vm258, %v257
    %v267 = vld [vmem:[#allocation0] sm:$0xf]
    %268 = vrot.lane.b32.xlu0 %v267, 106
    %v269 = vpop.permute.xlu0 %268
    %vm270 = vcmask 7168
    %s271 = scalar_lea.vmem %s1, 22
    %272 = vst.msk [vmem:[%s271] sm:$0x1] %vm270, %v269
    %s273 = scalar_lea.vmem %s1, 53
    %274 = vst.msk [vmem:[%s273] sm:$0x2] %vm270, %v269
    %s275 = scalar_lea.vmem %s1, 84
    %276 = vst.msk [vmem:[%s275] sm:$0x4] %vm270, %v269
    %s277 = scalar_lea.vmem %s1, 115
    %278 = vst.msk [vmem:[%s277] sm:$0x8] %vm270, %v269
    %v279 = vld [vmem:[#allocation0] sm:$0xf]
    %280 = vrot.lane.b32.xlu0 %v279, 105
    %v281 = vpop.permute.xlu0 %280
    %vm282 = vcmask 7168
    %s283 = scalar_lea.vmem %s1, 23
    %284 = vst.msk [vmem:[%s283] sm:$0x1] %vm282, %v281
    %s285 = scalar_lea.vmem %s1, 54
    %286 = vst.msk [vmem:[%s285] sm:$0x2] %vm282, %v281
    %s287 = scalar_lea.vmem %s1, 85
    %288 = vst.msk [vmem:[%s287] sm:$0x4] %vm282, %v281
    %s289 = scalar_lea.vmem %s1, 116
    %290 = vst.msk [vmem:[%s289] sm:$0x8] %vm282, %v281
    %v291 = vld [vmem:[#allocation0] sm:$0xf]
    %292 = vrot.lane.b32.xlu0 %v291, 104
    %v293 = vpop.permute.xlu0 %292
    %vm294 = vcmask 7168
    %s295 = scalar_lea.vmem %s1, 24
    %296 = vst.msk [vmem:[%s295] sm:$0x1] %vm294, %v293
    %s297 = scalar_lea.vmem %s1, 55
    %298 = vst.msk [vmem:[%s297] sm:$0x2] %vm294, %v293
    %s299 = scalar_lea.vmem %s1, 86
    %300 = vst.msk [vmem:[%s299] sm:$0x4] %vm294, %v293
    %s301 = scalar_lea.vmem %s1, 117
    %302 = vst.msk [vmem:[%s301] sm:$0x8] %vm294, %v293
    %v303 = vld [vmem:[#allocation0] sm:$0xf]
    %304 = vrot.lane.b32.xlu0 %v303, 103
    %v305 = vpop.permute.xlu0 %304
    %vm306 = vcmask 7168
    %s307 = scalar_lea.vmem %s1, 25
    %308 = vst.msk [vmem:[%s307] sm:$0x1] %vm306, %v305
    %s309 = scalar_lea.vmem %s1, 56
    %310 = vst.msk [vmem:[%s309] sm:$0x2] %vm306, %v305
    %s311 = scalar_lea.vmem %s1, 87
    %312 = vst.msk [vmem:[%s311] sm:$0x4] %vm306, %v305
    %s313 = scalar_lea.vmem %s1, 118
    %314 = vst.msk [vmem:[%s313] sm:$0x8] %vm306, %v305
    %v315 = vld [vmem:[#allocation0] sm:$0xf]
    %316 = vrot.lane.b32.xlu0 %v315, 102
    %v317 = vpop.permute.xlu0 %316
    %vm318 = vcmask 7168
    %s319 = scalar_lea.vmem %s1, 26
    %320 = vst.msk [vmem:[%s319] sm:$0x1] %vm318, %v317
    %s321 = scalar_lea.vmem %s1, 57
    %322 = vst.msk [vmem:[%s321] sm:$0x2] %vm318, %v317
    %s323 = scalar_lea.vmem %s1, 88
    %324 = vst.msk [vmem:[%s323] sm:$0x4] %vm318, %v317
    %s325 = scalar_lea.vmem %s1, 119
    %326 = vst.msk [vmem:[%s325] sm:$0x8] %vm318, %v317
    %v327 = vld [vmem:[#allocation0] sm:$0xf]
    %328 = vrot.lane.b32.xlu0 %v327, 101
    %v329 = vpop.permute.xlu0 %328
    %vm330 = vcmask 7168
    %s331 = scalar_lea.vmem %s1, 27
    %332 = vst.msk [vmem:[%s331] sm:$0x1] %vm330, %v329
    %s333 = scalar_lea.vmem %s1, 58
    %334 = vst.msk [vmem:[%s333] sm:$0x2] %vm330, %v329
    %s335 = scalar_lea.vmem %s1, 89
    %336 = vst.msk [vmem:[%s335] sm:$0x4] %vm330, %v329
    %s337 = scalar_lea.vmem %s1, 120
    %338 = vst.msk [vmem:[%s337] sm:$0x8] %vm330, %v329
    %v339 = vld [vmem:[#allocation0] sm:$0xf]
    %340 = vrot.lane.b32.xlu0 %v339, 100
    %v341 = vpop.permute.xlu0 %340
    %vm342 = vcmask 7168
    %s343 = scalar_lea.vmem %s1, 28
    %344 = vst.msk [vmem:[%s343] sm:$0x1] %vm342, %v341
    %s345 = scalar_lea.vmem %s1, 59
    %346 = vst.msk [vmem:[%s345] sm:$0x2] %vm342, %v341
    %s347 = scalar_lea.vmem %s1, 90
    %348 = vst.msk [vmem:[%s347] sm:$0x4] %vm342, %v341
    %s349 = scalar_lea.vmem %s1, 121
    %350 = vst.msk [vmem:[%s349] sm:$0x8] %vm342, %v341
    %v351 = vld [vmem:[#allocation0] sm:$0xf]
    %352 = vrot.lane.b32.xlu0 %v351, 99
    %v353 = vpop.permute.xlu0 %352
    %vm354 = vcmask 7168
    %s355 = scalar_lea.vmem %s1, 29
    %356 = vst.msk [vmem:[%s355] sm:$0x1] %vm354, %v353
    %s357 = scalar_lea.vmem %s1, 60
    %358 = vst.msk [vmem:[%s357] sm:$0x2] %vm354, %v353
    %s359 = scalar_lea.vmem %s1, 91
    %360 = vst.msk [vmem:[%s359] sm:$0x4] %vm354, %v353
    %s361 = scalar_lea.vmem %s1, 122
    %362 = vst.msk [vmem:[%s361] sm:$0x8] %vm354, %v353
    %v363 = vld [vmem:[#allocation0] sm:$0xf]
    %364 = vrot.lane.b32.xlu0 %v363, 98
    %v365 = vpop.permute.xlu0 %364
    %vm366 = vcmask 7168
    %s367 = scalar_lea.vmem %s1, 30
    %368 = vst.msk [vmem:[%s367] sm:$0x1] %vm366, %v365
    %s369 = scalar_lea.vmem %s1, 61
    %370 = vst.msk [vmem:[%s369] sm:$0x2] %vm366, %v365
    %s371 = scalar_lea.vmem %s1, 92
    %372 = vst.msk [vmem:[%s371] sm:$0x4] %vm366, %v365
    %s373 = scalar_lea.vmem %s1, 123
    %374 = vst.msk [vmem:[%s373] sm:$0x8] %vm366, %v365
    %v375 = vld [vmem:[#allocation0] sm:$0xf]
    %376 = vrot.lane.b32.xlu0 %v375, 97
    %v377 = vpop.permute.xlu0 %376
    %vm378 = vcmask 7168
    %s379 = scalar_lea.vmem %s1, 31
    %380 = vst.msk [vmem:[%s379] sm:$0x1] %vm378, %v377
    %s381 = scalar_lea.vmem %s1, 62
    %382 = vst.msk [vmem:[%s381] sm:$0x2] %vm378, %v377
    %s383 = scalar_lea.vmem %s1, 93
    %384 = vst.msk [vmem:[%s383] sm:$0x4] %vm378, %v377
    %s385 = scalar_lea.vmem %s1, 124
    %386 = vst.msk [vmem:[%s385] sm:$0x8] %vm378, %v377

// kernel: cnn_feature_extractor.3
$region0: #{cnn_feature_extractor.3}
  #allocation0 [shape = 'u32[]', space=smem, size = 0x4, offset = 0x4, fixed_abs, tag = 'smem constant byte address 0x4 - core index']
  #allocation1 [shape = 'u32[144,128]{1,0:T(1,128)}', space=vmem, size = 0x12000, scoped, tag = 'internal scratch']
  %s0 = inlined_call_operand.vmem [shape: bf16[2,2,54,13], index: 0, kind: input, shape index: {}]
  %s1 = inlined_call_operand.vmem [shape: bf16[3,128,30], index: 1, kind: input, shape index: {}]
  %s2 = inlined_call_operand.vmem [shape: f32[64,1], index: 2, kind: input, shape index: {}]
  %s3 = inlined_call_operand.vmem [shape: bf16[2,128,12], index: 3, kind: output, shape index: {}]
  %s4 = sld [smem:[#allocation0]]
  $region45: #{cnn_feature_extractor.3} parent=0
    _
  %s6 = ssub.s32 1, %s4
  %s7 = scalar_select 0, %s6, %s4
  loop: start=0, step=1, limit=6
  $region2: #{cnn_feature_extractor.3} parent=0 // loop_pre_header
    _
  $region3: #{cnn_feature_extractor.3} parent=0 // loop_header
    %s9 = sphi 0, %s13
    %p10 = scmp.ge.s32.totalorder %s9, 6
    %s16 = sphi 0, %s28
    %s17 = sphi 0, %s24
    %s18 = sphi 0, %s16
    %s19 = sphi 0, %s17
    %s20 = sphi 0, %s18
    %s21 = sphi 0, %s19
    %s31 = sphi 0, %s33
    %s34 = sphi 0, %s31
    %s35 = sphi 0, %s34
    %s51 = sphi 0, %s35
    %s55 = sphi 0, %s55
    %s57 = sphi 0, %s55
    %s58 = sphi 0, %s57
    %s72 = sphi 0, %s58
    %s76 = sphi 0, %s76
    %s78 = sphi 0, %s76
    %s79 = sphi 0, %s78
    %s93 = sphi 0, %s79
    %s101 = sphi 0, %s103
    %s104 = sphi 0, %s101
    %s105 = sphi 0, %s104
    %s121 = sphi 0, %s105
  $region4: #{cnn_feature_extractor.3} parent=0 // loop_header_branch
    %12 = sbr.rel (%p10) target = $region8
  $region5: #{cnn_feature_extractor.3} parent=0 // loop_body
    %s14 = ssub.s32 %s9, 1
    %s15 = ssub.s32 %s9, 2
    %s22 = sadd.s32 1, %s17
    %p23 = scmp.ge.s32.totalorder %s22, 2
    %s24 = scalar_select %p23, 0, %s22
    %s25 = sadd.s32 1, %s16
    %s26 = scalar_select %p23, %s25, %s16
    %p27 = scmp.ge.s32.totalorder %s26, 2
    %s28 = scalar_select %p27, 0, %s26
    %s29 = ssub.s32 %s16, %s28
    %p30 = scmp.eq.s32.totalorder %s29, 0
    %s32 = sadd.s32 %s31, 1
    %s33 = scalar_select %p30, %s31, %s32
    %p36 = pneg %p30
    %p37 = scmp.eq.s32.totalorder %s9, 3
    %p38 = por %p36, %p37
    %p39 = scmp.ne.s32.totalorder %s31, %s34
    %p40 = scmp.eq.s32.totalorder %s9, 0
    %p41 = por %p39, %p40
    %p42 = scmp.ne.s32.totalorder %s31, %s34
    %p43 = scmp.eq.s32.totalorder %s14, 3
    %p44 = por %p42, %p43
    %p45 = scmp.ne.s32.totalorder %s34, %s35
    %p46 = scmp.eq.s32.totalorder %s14, 0
    %p47 = por %p45, %p46
    %p48 = scmp.ne.s32.totalorder %s34, %s35
    %p49 = scmp.eq.s32.totalorder %s15, 3
    %p50 = por %p48, %p49
    %p52 = scmp.ne.s32.totalorder %s35, %s51
    %p53 = scmp.eq.s32.totalorder %s15, 0
    %p54 = por %p52, %p53
    %s56 = sadd.s32 %s55, 1
    %p59 = scmp.eq.s32.totalorder %s9, 3
    %p60 = scmp.ne.s32.totalorder %s55, %s57
    %p61 = scmp.eq.s32.totalorder %s9, 0
    %p62 = por %p60, %p61
    %p63 = scmp.ne.s32.totalorder %s55, %s57
    %p64 = scmp.eq.s32.totalorder %s14, 3
    %p65 = por %p63, %p64
    %p66 = scmp.ne.s32.totalorder %s57, %s58
    %p67 = scmp.eq.s32.totalorder %s14, 0
    %p68 = por %p66, %p67
    %p69 = scmp.ne.s32.totalorder %s57, %s58
    %p70 = scmp.eq.s32.totalorder %s15, 3
    %p71 = por %p69, %p70
    %p73 = scmp.ne.s32.totalorder %s58, %s72
    %p74 = scmp.eq.s32.totalorder %s15, 0
    %p75 = por %p73, %p74
    %s77 = sadd.s32 %s76, 1
    %p80 = scmp.eq.s32.totalorder %s9, 3
    %p81 = scmp.ne.s32.totalorder %s76, %s78
    %p82 = scmp.eq.s32.totalorder %s9, 0
    %p83 = por %p81, %p82
    %p84 = scmp.ne.s32.totalorder %s76, %s78
    %p85 = scmp.eq.s32.totalorder %s14, 3
    %p86 = por %p84, %p85
    %p87 = scmp.ne.s32.totalorder %s78, %s79
    %p88 = scmp.eq.s32.totalorder %s14, 0
    %p89 = por %p87, %p88
    %p90 = scmp.ne.s32.totalorder %s78, %s79
    %p91 = scmp.eq.s32.totalorder %s15, 3
    %p92 = por %p90, %p91
    %p94 = scmp.ne.s32.totalorder %s79, %s93
    %p95 = scmp.eq.s32.totalorder %s15, 0
    %p96 = por %p94, %p95
    %s97 = ssub.s32 %s16, %s28
    %s98 = ssub.s32 %s17, %s24
    %s99 = sor.u32 %s97, %s98
    %p100 = scmp.eq.s32.totalorder %s99, 0
    %s102 = sadd.s32 %s101, 1
    %s103 = scalar_select %p100, %s101, %s102
    %p106 = pneg %p100
    %p107 = scmp.eq.s32.totalorder %s9, 3
    %p108 = por %p106, %p107
    %p109 = scmp.ne.s32.totalorder %s101, %s104
    %p110 = scmp.eq.s32.totalorder %s9, 0
    %p111 = por %p109, %p110
    %p112 = scmp.ne.s32.totalorder %s101, %s104
    %p113 = scmp.eq.s32.totalorder %s14, 3
    %p114 = por %p112, %p113
    %p115 = scmp.ne.s32.totalorder %s104, %s105
    %p116 = scmp.eq.s32.totalorder %s14, 0
    %p117 = por %p115, %p116
    %p118 = scmp.ne.s32.totalorder %s104, %s105
    %p119 = scmp.eq.s32.totalorder %s15, 3
    %p120 = por %p118, %p119
    %p122 = scmp.ne.s32.totalorder %s105, %s121
    %p123 = scmp.eq.s32.totalorder %s15, 0
    %p124 = por %p122, %p123
    %p125 = scmp.le.s32.totalorder 1, %s9
    %p126 = scmp.lt.s32.totalorder %s9, 5
    %p127 = pnand %p125, %p126
    %p128 = pneg %p127
    // Predicated region
    $region9: #{cnn_feature_extractor.3} parent=5 // pred_check
      _
    $region10: #{cnn_feature_extractor.3} parent=5 // pred_check_branch
      %130 = sbr.rel (%p127) target = $region12
    $region11: #{cnn_feature_extractor.3} parent=5 // pred_region
      %s131 = ssub.s32 %s9, 1
      // Predicated region
      $region13: #{cnn_feature_extractor.3} parent=11 // pred_check
        %p132 = pneg %p68
      $region14: #{cnn_feature_extractor.3} parent=11 // pred_check_branch
        %134 = sbr.rel (%p132) target = $region16
      $region15: #{cnn_feature_extractor.3} parent=11 // pred_region
        _
      $region16: #{cnn_feature_extractor.3} parent=11 // pred_fallthru
        _
      // Predicated region
      $region17: #{cnn_feature_extractor.3} parent=11 // pred_check
        %p135 = pneg %p89
      $region18: #{cnn_feature_extractor.3} parent=11 // pred_check_branch
        %137 = sbr.rel (%p135) target = $region20
      $region19: #{cnn_feature_extractor.3} parent=11 // pred_region
        _
      $region20: #{cnn_feature_extractor.3} parent=11 // pred_fallthru
        _
    $region12: #{cnn_feature_extractor.3} parent=5 // pred_fallthru
      _
    %p138 = scmp.lt.s32.totalorder %s9, 4
    // Predicated region
    $region21: #{cnn_feature_extractor.3} parent=5 // pred_check
      %p139 = pneg %p138
    $region22: #{cnn_feature_extractor.3} parent=5 // pred_check_branch
      %141 = sbr.rel (%p139) target = $region24
    $region23: #{cnn_feature_extractor.3} parent=5 // pred_region
      // Predicated region
      $region25: #{cnn_feature_extractor.3} parent=23 // pred_check
        %p142 = pneg %p41
      $region26: #{cnn_feature_extractor.3} parent=23 // pred_check_branch
        %144 = sbr.rel (%p142) target = $region28
      $region27: #{cnn_feature_extractor.3} parent=23 // pred_region
        %p145 = scmp.lt.s32.totalorder %s16, 1
        %s146 = scalar_select %p145, %s16, 1
        %s147 = smul.addr %s146, 14
        %s148 = smul.addr %s147, 4
        %s149 = scalar_lea.vmem %s0, %s148
      $region28: #{cnn_feature_extractor.3} parent=23 // pred_fallthru
        _
    $region24: #{cnn_feature_extractor.3} parent=5 // pred_fallthru
      _
    %p150 = scmp.le.s32.totalorder 1, %s9
    %p151 = scmp.lt.s32.totalorder %s9, 5
    %p152 = pnand %p150, %p151
    %p153 = pneg %p152
    // Predicated region
    $region29: #{cnn_feature_extractor.3} parent=5 // pred_check
      _
    $region30: #{cnn_feature_extractor.3} parent=5 // pred_check_branch
      %155 = sbr.rel (%p152) target = $region32
    $region31: #{cnn_feature_extractor.3} parent=5 // pred_region
      %s156 = ssub.s32 %s9, 1
      %p157 = scmp.lt.s32.totalorder %s18, 1
      %s158 = scalar_select %p157, %s18, 1
      %s159 = smul.addr %s158, 14
      %s160 = smul.addr %s159, 4
      %s161 = scalar_lea.vmem %s0, %s160
      %p162 = pneg %p47
      %p163 = pneg %p44
      %p164 = pneg %p68
      %p165 = pneg %p65
      %p166 = pneg %p89
      %p167 = pneg %p86
      %p168 = pneg %p117
      %p169 = pneg %p114
      %s170 = smul.u32 8, %s19
      %p171 = scmp.lt.s32.totalorder %s18, 1
      %s172 = scalar_select %p171, %s18, 1
      %p173 = scmp.lt.s32.totalorder %s170, 15
      %s174 = scalar_select %p173, %s170, 15
      %s175 = smul.addr %s172, 16
      %s176 = sadd.s32 %s174, %s175
      %s177 = smul.addr %s176, 4
      %s178 = scalar_lea.vmem %s3, %s177
      %p179 = scmp.lt.s32.totalorder %s18, 1
      %s180 = scalar_select %p179, %s18, 1
      %s181 = smul.addr %s180, 14
      %s182 = smul.addr %s181, 4
      %s183 = scalar_lea.vmem %s0, %s182
      %s184 = smul.u32 8, %s19
      %p185 = scmp.lt.s32.totalorder %s18, 1
      %s186 = scalar_select %p185, %s18, 1
      %p187 = scmp.lt.s32.totalorder %s184, 15
      %s188 = scalar_select %p187, %s184, 15
      %s189 = smul.addr %s186, 16
      %s190 = sadd.s32 %s188, %s189
      %s191 = smul.addr %s190, 4
      %s192 = scalar_lea.vmem %s3, %s191
      %s193 = smul.u32 8, %s19
      %s195 = smul.u32 %s19, 24
      %s196 = sshra.s32 %s195, 3
      %s197 = sand.u32 %s195, 7
      %s198 = smul.addr %s196, 4
      %s199 = scalar_lea.vmem %s183, %s198
      %v200 = vld [vmem:[%s199] sm:$0xf]
      %v201 = vld [vmem:[%s199 + $0x4] sm:$0xf]
      %v202 = vld [vmem:[%s199 + $0x8] sm:$0xf]
      %v203 = vld [vmem:[%s199 + $0xc] sm:$0x7]
      %s204 = sadd.s32 %s196, 7
      %s205 = smul.addr %s204, 4
      %s206 = scalar_lea.vmem %s183, %s205
      %v207 = vld [vmem:[%s206] sm:$0xf]
      %v208 = vld [vmem:[%s206 + $0x4] sm:$0xf]
      %v209 = vld [vmem:[%s206 + $0x8] sm:$0xf]
      %v210 = vld [vmem:[%s206 + $0xc] sm:$0x7]
      %v211 = vld [vmem:[%s1] sm:$0xf]
      %v212 = vld [vmem:[%s1 + $0x4] sm:$0xf]
      %v213 = vld [vmem:[%s1 + $0x8] sm:$0xf]
      %v214 = vld [vmem:[%s1 + $0xc] sm:$0xf]
      %v215 = vld [vmem:[%s1 + $0x10] sm:$0xf]
      %v216 = vld [vmem:[%s1 + $0x14] sm:$0xf]
      %v217 = vld [vmem:[%s1 + $0x18] sm:$0xf]
      %v218 = vld [vmem:[%s1 + $0x1c] sm:$0xf]
      %v219 = vld [vmem:[%s1 + $0x20] sm:$0xf]
      %v220 = vld [vmem:[%s1 + $0x24] sm:$0xf]
      %v221 = vld [vmem:[%s1 + $0x28] sm:$0xf]
      %v222 = vld [vmem:[%s1 + $0x2c] sm:$0xf]
      %v223 = vld [vmem:[%s1 + $0x30] sm:$0xf]
      %v224 = vld [vmem:[%s1 + $0x34] sm:$0xf]
      %v225 = vld [vmem:[%s1 + $0x38] sm:$0xf]
      %v226 = vld [vmem:[%s1 + $0x3c] sm:$0xf]
      %s227 = scalar_lea.vmem %s1, 64
      %v228 = vld [vmem:[%s227] sm:$0xf]
      %v229 = vld [vmem:[%s227 + $0x4] sm:$0xf]
      %v230 = vld [vmem:[%s227 + $0x8] sm:$0xf]
      %v231 = vld [vmem:[%s227 + $0xc] sm:$0xf]
      %v232 = vld [vmem:[%s227 + $0x10] sm:$0xf]
      %v233 = vld [vmem:[%s227 + $0x14] sm:$0xf]
      %v234 = vld [vmem:[%s227 + $0x18] sm:$0xf]
      %v235 = vld [vmem:[%s227 + $0x1c] sm:$0xf]
      %v236 = vld [vmem:[%s227 + $0x20] sm:$0xf]
      %v237 = vld [vmem:[%s227 + $0x24] sm:$0xf]
      %v238 = vld [vmem:[%s227 + $0x28] sm:$0xf]
      %v239 = vld [vmem:[%s227 + $0x2c] sm:$0xf]
      %v240 = vld [vmem:[%s227 + $0x30] sm:$0xf]
      %v241 = vld [vmem:[%s227 + $0x34] sm:$0xf]
      %v242 = vld [vmem:[%s227 + $0x38] sm:$0xf]
      %v243 = vld [vmem:[%s227 + $0x3c] sm:$0xf]
      %s244 = scalar_lea.vmem %s1, 128
      %v245 = vld [vmem:[%s244] sm:$0xf]
      %v246 = vld [vmem:[%s244 + $0x4] sm:$0xf]
      %v247 = vld [vmem:[%s244 + $0x8] sm:$0xf]
      %v248 = vld [vmem:[%s244 + $0xc] sm:$0xf]
      %v249 = vld [vmem:[%s244 + $0x10] sm:$0xf]
      %v250 = vld [vmem:[%s244 + $0x14] sm:$0xf]
      %v251 = vld [vmem:[%s244 + $0x18] sm:$0xf]
      %v252 = vld [vmem:[%s244 + $0x1c] sm:$0xf]
      %v253 = vld [vmem:[%s244 + $0x20] sm:$0xf]
      %v254 = vld [vmem:[%s244 + $0x24] sm:$0xf]
      %v255 = vld [vmem:[%s244 + $0x28] sm:$0xf]
      %v256 = vld [vmem:[%s244 + $0x2c] sm:$0xf]
      %v257 = vld [vmem:[%s244 + $0x30] sm:$0xf]
      %v258 = vld [vmem:[%s244 + $0x34] sm:$0xf]
      %v259 = vld [vmem:[%s244 + $0x38] sm:$0xf]
      %v260 = vld [vmem:[%s244 + $0x3c] sm:$0xf]
      %v277 = vunpack.c.l.b16 %v228
      %v278 = vunpack.c.l.b16 %v229
      %v279 = vunpack.c.l.b16 %v230
      %v280 = vunpack.c.l.b16 %v231
      %v281 = vunpack.c.l.b16 %v232
      %v282 = vunpack.c.l.b16 %v233
      %v283 = vunpack.c.l.b16 %v234
      %v284 = vunpack.c.l.b16 %v235
      %v285 = vunpack.c.l.b16 %v236
      %v286 = vunpack.c.l.b16 %v237
      %v287 = vunpack.c.l.b16 %v238
      %v288 = vunpack.c.l.b16 %v239
      %v289 = vunpack.c.l.b16 %v240
      %v290 = vunpack.c.l.b16 %v241
      %v291 = vunpack.c.l.b16 %v242
      %v292 = vunpack.c.l.b16 %v243
      %v293 = vpack.c.b16 %v278, %v277
      %v294 = vpack.c.b16 %v280, %v279
      %v295 = vpack.c.b16 %v282, %v281
      %v296 = vpack.c.b16 %v284, %v283
      %v297 = vpack.c.b16 %v286, %v285
      %v298 = vpack.c.b16 %v288, %v287
      %v299 = vpack.c.b16 %v290, %v289
      %v300 = vpack.c.b16 %v292, %v291
      %v305 = vunpack.c.l.b16 %v207
      %v306 = vunpack.c.l.b16 %v208
      %v307 = vunpack.c.l.b16 %v209
      %v308 = vunpack.c.l.b16 %v210
      %v309 = vpack.c.b16 %v306, %v305
      %v310 = vpack.c.b16 %v308, %v307
      %vm312 = vcmask 244736
      %v314 = vsel %vm312, %v293, 0
      %v317 = vsel %vm312, %v294, 0
      %v320 = vsel %vm312, %v295, 0
      %v323 = vsel %vm312, %v296, 0
      %v326 = vsel %vm312, %v297, 0
      %v329 = vsel %vm312, %v298, 0
      %v332 = vsel %vm312, %v299, 0
      %v335 = vsel %vm312, %v300, 0
      %vm337 = vcmask 1046528
      %v339 = vsel %vm337, %v310, 0
      %341 = vmatprep.subr.bf16.mxu0 0
      %342 = vmatpush1.bf16.msra.mxu0 %v309
      %343 = vmatprep.subr.bf16.mxu0 0
      %344 = vmatpush1.bf16.msra.mxu0 %v339
      %345 = vmatprep.subr.bf16.mxu0 0
      %346 = vmatpush1.bf16.msra.mxu0 0
      %347 = vmatprep.subr.bf16.mxu0 0
      %348 = vmatpush1.bf16.msra.mxu0 0
      %349 = vmatprep.subr.bf16.mxu0 0
      %350 = vmatpush1.bf16.msra.mxu0 0
      %351 = vmatprep.subr.bf16.mxu0 0
      %352 = vmatpush1.bf16.msra.mxu0 0
      %353 = vmatprep.subr.bf16.mxu0 0
      %354 = vmatpush1.bf16.msra.mxu0 0
      %355 = vmatprep.subr.bf16.mxu0 0
      %356 = vmatpush1.bf16.msra.mxu0 0
      %357 = vmatprep.subr.bf16.mxu0 0
      %358 = vmatpush1.bf16.msra.mxu0 0
      %359 = vmatprep.subr.bf16.mxu0 0
      %360 = vmatpush1.bf16.msra.mxu0 0
      %361 = vmatprep.subr.bf16.mxu0 0
      %362 = vmatpush1.bf16.msra.mxu0 0
      %363 = vmatprep.subr.bf16.mxu0 0
      %364 = vmatpush1.bf16.msra.mxu0 0
      %365 = vmatprep.subr.bf16.mxu0 0
      %366 = vmatpush1.bf16.msra.mxu0 0
      %367 = vmatprep.subr.bf16.mxu0 0
      %368 = vmatpush1.bf16.msra.mxu0 0
      %369 = vmatprep.subr.bf16.mxu0 0
      %370 = vmatpush1.bf16.msra.mxu0 0
      %371 = vmatprep.subr.bf16.mxu0 0
      %372 = vmatpush1.bf16.msra.mxu0 0
      %373 = vmatprep.mubr.bf16.mxu0 0
      %374 = vmatmul.mubr.bf16.gmra.mrb[0].mxu0 %v314
      %v375 = vpop.f32.mrb[0].mxu0
      %v376 = vadd.f32 0.0, %v375
      %v377 = vpop.f32.mrb[0].mxu0
      %v378 = vpop.f32.mrb[0].mxu0
      %v379 = vadd.f32 0.0, %v378
      %v380 = vpop.f32.mrb[0].mxu0
      %381 = vmatprep.mubr.bf16.mxu0 0
      %382 = vmatmul.mubr.bf16.gmra.mrb[0].mxu0 %v317
      %v383 = vpop.f32.mrb[0].mxu0
      %v384 = vadd.f32 0.0, %v383
      %v385 = vpop.f32.mrb[0].mxu0
      %v386 = vpop.f32.mrb[0].mxu0
      %v387 = vadd.f32 0.0, %v386
      %v388 = vpop.f32.mrb[0].mxu0
      %389 = vmatprep.mubr.bf16.mxu0 0
      %390 = vmatmul.mubr.bf16.gmra.mrb[0].mxu0 %v320
      %v391 = vpop.f32.mrb[0].mxu0
      %v392 = vadd.f32 0.0, %v391
      %v393 = vpop.f32.mrb[0].mxu0
      %v394 = vpop.f32.mrb[0].mxu0
      %v395 = vadd.f32 0.0, %v394
      %v396 = vpop.f32.mrb[0].mxu0
      %397 = vmatprep.mubr.bf16.mxu0 0
      %398 = vmatmul.mubr.bf16.gmra.mrb[0].mxu0 %v323
      %v399 = vpop.f32.mrb[0].mxu0
      %v400 = vadd.f32 0.0, %v399
      %v401 = vpop.f32.mrb[0].mxu0
      %v402 = vpop.f32.mrb[0].mxu0
      %v403 = vadd.f32 0.0, %v402
      %v404 = vpop.f32.mrb[0].mxu0
      %405 = vmatprep.mubr.bf16.mxu0 0
      %406 = vmatmul.mubr.bf16.gmra.mrb[0].mxu0 %v326
      %v407 = vpop.f32.mrb[0].mxu0
      %v408 = vadd.f32 0.0, %v407
      %v409 = vpop.f32.mrb[0].mxu0
      %v410 = vpop.f32.mrb[0].mxu0
      %v411 = vadd.f32 0.0, %v410
      %v412 = vpop.f32.mrb[0].mxu0
      %413 = vmatprep.mubr.bf16.mxu0 0
      %414 = vmatmul.mubr.bf16.gmra.mrb[0].mxu0 %v329
      %v415 = vpop.f32.mrb[0].mxu0
      %v416 = vadd.f32 0.0, %v415
      %v417 = vpop.f32.mrb[0].mxu0
      %v418 = vpop.f32.mrb[0].mxu0
      %v419 = vadd.f32 0.0, %v418
      %v420 = vpop.f32.mrb[0].mxu0
      %421 = vmatprep.mubr.bf16.mxu0 0
      %422 = vmatmul.mubr.bf16.gmra.mrb[0].mxu0 %v332
      %v423 = vpop.f32.mrb[0].mxu0
      %v424 = vadd.f32 0.0, %v423
      %v425 = vpop.f32.mrb[0].mxu0
      %v426 = vpop.f32.mrb[0].mxu0
      %v427 = vadd.f32 0.0, %v426
      %v428 = vpop.f32.mrb[0].mxu0
      %429 = vmatprep.mubr.bf16.mxu0 0
      %430 = vmatmul.mubr.bf16.gmra.mrb[0].mxu0 %v335
      %v431 = vpop.f32.mrb[0].mxu0
      %v432 = vadd.f32 0.0, %v431
      %v433 = vpop.f32.mrb[0].mxu0
      %v434 = vpop.f32.mrb[0].mxu0
      %v435 = vadd.f32 0.0, %v434
      %v436 = vpop.f32.mrb[0].mxu0
      %437 = vdwg.mxu0
      %v454 = vunpack.c.l.b16 %v211
      %v455 = vunpack.c.l.b16 %v212
      %v456 = vunpack.c.l.b16 %v213
      %v457 = vunpack.c.l.b16 %v214
      %v458 = vunpack.c.l.b16 %v215
      %v459 = vunpack.c.l.b16 %v216
      %v460 = vunpack.c.l.b16 %v217
      %v461 = vunpack.c.l.b16 %v218
      %v462 = vunpack.c.l.b16 %v219
      %v463 = vunpack.c.l.b16 %v220
      %v464 = vunpack.c.l.b16 %v221
      %v465 = vunpack.c.l.b16 %v222
      %v466 = vunpack.c.l.b16 %v223
      %v467 = vunpack.c.l.b16 %v224
      %v468 = vunpack.c.l.b16 %v225
      %v469 = vunpack.c.l.b16 %v226
      %v470 = vpack.c.b16 %v455, %v454
      %v471 = vpack.c.b16 %v457, %v456
      %v472 = vpack.c.b16 %v459, %v458
      %v473 = vpack.c.b16 %v461, %v460
      %v474 = vpack.c.b16 %v463, %v462
      %v475 = vpack.c.b16 %v465, %v464
      %v476 = vpack.c.b16 %v467, %v466
      %v477 = vpack.c.b16 %v469, %v468
      %v482 = vunpack.c.l.b16 %v200
      %v483 = vunpack.c.l.b16 %v201
      %v484 = vunpack.c.l.b16 %v202
      %v485 = vunpack.c.l.b16 %v203
      %v486 = vpack.c.b16 %v483, %v482
      %v487 = vpack.c.b16 %v485, %v484
      %v490 = vsel %vm312, %v470, 0
      %v493 = vsel %vm312, %v471, 0
      %v496 = vsel %vm312, %v472, 0
      %v499 = vsel %vm312, %v473, 0
      %v502 = vsel %vm312, %v474, 0
      %v505 = vsel %vm312, %v475, 0
      %v508 = vsel %vm312, %v476, 0
      %v511 = vsel %vm312, %v477, 0
      %v514 = vsel %vm337, %v487, 0
      %516 = vmatprep.subr.bf16.mxu0 0
      %517 = vmatpush1.bf16.msra.mxu0 %v486
      %518 = vmatprep.subr.bf16.mxu0 0
      %519 = vmatpush1.bf16.msra.mxu0 %v514
      %520 = vmatprep.subr.bf16.mxu0 0
      %521 = vmatpush1.bf16.msra.mxu0 0
      %522 = vmatprep.subr.bf16.mxu0 0
      %523 = vmatpush1.bf16.msra.mxu0 0
      %524 = vmatprep.subr.bf16.mxu0 0
      %525 = vmatpush1.bf16.msra.mxu0 0
      %526 = vmatprep.subr.bf16.mxu0 0
      %527 = vmatpush1.bf16.msra.mxu0 0
      %528 = vmatprep.subr.bf16.mxu0 0
      %529 = vmatpush1.bf16.msra.mxu0 0
      %530 = vmatprep.subr.bf16.mxu0 0
      %531 = vmatpush1.bf16.msra.mxu0 0
      %532 = vmatprep.subr.bf16.mxu0 0
      %533 = vmatpush1.bf16.msra.mxu0 0
      %534 = vmatprep.subr.bf16.mxu0 0
      %535 = vmatpush1.bf16.msra.mxu0 0
      %536 = vmatprep.subr.bf16.mxu0 0
      %537 = vmatpush1.bf16.msra.mxu0 0
      %538 = vmatprep.subr.bf16.mxu0 0
      %539 = vmatpush1.bf16.msra.mxu0 0
      %540 = vmatprep.subr.bf16.mxu0 0
      %541 = vmatpush1.bf16.msra.mxu0 0
      %542 = vmatprep.subr.bf16.mxu0 0
      %543 = vmatpush1.bf16.msra.mxu0 0
      %544 = vmatprep.subr.bf16.mxu0 0
      %545 = vmatpush1.bf16.msra.mxu0 0
      %546 = vmatprep.subr.bf16.mxu0 0
      %547 = vmatpush1.bf16.msra.mxu0 0
      %548 = vmatprep.mubr.bf16.mxu0 0
      %549 = vmatmul.mubr.bf16.gmra.mrb[0].mxu0 %v490
      %v550 = vpop.f32.mrb[0].mxu0
      %v551 = vadd.f32 %v376, %v550
      %v552 = vpop.f32.mrb[0].mxu0
      %v553 = vpop.f32.mrb[0].mxu0
      %v554 = vadd.f32 %v379, %v553
      %v555 = vpop.f32.mrb[0].mxu0
      %556 = vmatprep.mubr.bf16.mxu0 0
      %557 = vmatmul.mubr.bf16.gmra.mrb[0].mxu0 %v493
      %v558 = vpop.f32.mrb[0].mxu0
      %v559 = vadd.f32 %v384, %v558
      %v560 = vpop.f32.mrb[0].mxu0
      %v561 = vpop.f32.mrb[0].mxu0
      %v562 = vadd.f32 %v387, %v561
      %v563 = vpop.f32.mrb[0].mxu0
      %564 = vmatprep.mubr.bf16.mxu0 0
      %565 = vmatmul.mubr.bf16.gmra.mrb[0].mxu0 %v496
      %v566 = vpop.f32.mrb[0].mxu0
      %v567 = vadd.f32 %v392, %v566
      %v568 = vpop.f32.mrb[0].mxu0
      %v569 = vpop.f32.mrb[0].mxu0
      %v570 = vadd.f32 %v395, %v569
      %v571 = vpop.f32.mrb[0].mxu0
      %572 = vmatprep.mubr.bf16.mxu0 0
      %573 = vmatmul.mubr.bf16.gmra.mrb[0].mxu0 %v499
      %v574 = vpop.f32.mrb[0].mxu0
      %v575 = vadd.f32 %v400, %v574
      %v576 = vpop.f32.mrb[0].mxu0
      %v577 = vpop.f32.mrb[0].mxu0
      %v578 = vadd.f32 %v403, %v577
      %v579 = vpop.f32.mrb[0].mxu0
      %580 = vmatprep.mubr.bf16.mxu0 0
      %581 = vmatmul.mubr.bf16.gmra.mrb[0].mxu0 %v502
      %v582 = vpop.f32.mrb[0].mxu0
      %v583 = vadd.f32 %v408, %v582
      %v584 = vpop.f32.mrb[0].mxu0
      %v585 = vpop.f32.mrb[0].mxu0
      %v586 = vadd.f32 %v411, %v585
      %v587 = vpop.f32.mrb[0].mxu0
      %588 = vmatprep.mubr.bf16.mxu0 0
      %589 = vmatmul.mubr.bf16.gmra.mrb[0].mxu0 %v505
      %v590 = vpop.f32.mrb[0].mxu0
      %v591 = vadd.f32 %v416, %v590
      %v592 = vpop.f32.mrb[0].mxu0
      %v593 = vpop.f32.mrb[0].mxu0
      %v594 = vadd.f32 %v419, %v593
      %v595 = vpop.f32.mrb[0].mxu0
      %596 = vmatprep.mubr.bf16.mxu0 0
      %597 = vmatmul.mubr.bf16.gmra.mrb[0].mxu0 %v508
      %v598 = vpop.f32.mrb[0].mxu0
      %v599 = vadd.f32 %v424, %v598
      %v600 = vpop.f32.mrb[0].mxu0
      %v601 = vpop.f32.mrb[0].mxu0
      %v602 = vadd.f32 %v427, %v601
      %v603 = vpop.f32.mrb[0].mxu0
      %604 = vmatprep.mubr.bf16.mxu0 0
      %605 = vmatmul.mubr.bf16.gmra.mrb[0].mxu0 %v511
      %v606 = vpop.f32.mrb[0].mxu0
      %v607 = vadd.f32 %v432, %v606
      %v608 = vpop.f32.mrb[0].mxu0
      %v609 = vpop.f32.mrb[0].mxu0
      %v610 = vadd.f32 %v435, %v609
      %v611 = vpop.f32.mrb[0].mxu0
      %612 = vdwg.mxu0
      %v629 = vunpack.c.l.b16 %v245
      %v630 = vunpack.c.l.b16 %v246
      %v631 = vunpack.c.l.b16 %v247
      %v632 = vunpack.c.l.b16 %v248
      %v633 = vunpack.c.l.b16 %v249
      %v634 = vunpack.c.l.b16 %v250
      %v635 = vunpack.c.l.b16 %v251
      %v636 = vunpack.c.l.b16 %v252
      %v637 = vunpack.c.l.b16 %v253
      %v638 = vunpack.c.l.b16 %v254
      %v639 = vunpack.c.l.b16 %v255
      %v640 = vunpack.c.l.b16 %v256
      %v641 = vunpack.c.l.b16 %v257
      %v642 = vunpack.c.l.b16 %v258
      %v643 = vunpack.c.l.b16 %v259
      %v644 = vunpack.c.l.b16 %v260
      %v645 = vpack.c.b16 %v630, %v629
      %v646 = vpack.c.b16 %v632, %v631
      %v647 = vpack.c.b16 %v634, %v633
      %v648 = vpack.c.b16 %v636, %v635
      %v649 = vpack.c.b16 %v638, %v637
      %v650 = vpack.c.b16 %v640, %v639
      %v651 = vpack.c.b16 %v642, %v641
      %v652 = vpack.c.b16 %v644, %v643
      %653 = vrot.lane.b32.xlu0 %v486, 127
      %v654 = vpop.permute.xlu0 %653
      %655 = vrot.lane.b32.xlu0 %v487, 127
      %v656 = vpop.permute.xlu0 %655
      %v659 = vsel %vm312, %v645, 0
      %v662 = vsel %vm312, %v646, 0
      %v665 = vsel %vm312, %v647, 0
      %v668 = vsel %vm312, %v648, 0
      %v671 = vsel %vm312, %v649, 0
      %v674 = vsel %vm312, %v650, 0
      %v677 = vsel %vm312, %v651, 0
      %v680 = vsel %vm312, %v652, 0
      %v683 = vsel %vm337, %v656, 0
      %685 = vmatprep.subr.bf16.mxu0 0
      %686 = vmatpush1.bf16.msra.mxu0 %v654
      %687 = vmatprep.subr.bf16.mxu0 0
      %688 = vmatpush1.bf16.msra.mxu0 %v683
      %689 = vmatprep.subr.bf16.mxu0 0
      %690 = vmatpush1.bf16.msra.mxu0 0
      %691 = vmatprep.subr.bf16.mxu0 0
      %692 = vmatpush1.bf16.msra.mxu0 0
      %693 = vmatprep.subr.bf16.mxu0 0
      %694 = vmatpush1.bf16.msra.mxu0 0
      %695 = vmatprep.subr.bf16.mxu0 0
      %696 = vmatpush1.bf16.msra.mxu0 0
      %697 = vmatprep.subr.bf16.mxu0 0
      %698 = vmatpush1.bf16.msra.mxu0 0
      %699 = vmatprep.subr.bf16.mxu0 0
      %700 = vmatpush1.bf16.msra.mxu0 0
      %701 = vmatprep.subr.bf16.mxu0 0
      %702 = vmatpush1.bf16.msra.mxu0 0
      %703 = vmatprep.subr.bf16.mxu0 0
      %704 = vmatpush1.bf16.msra.mxu0 0
      %705 = vmatprep.subr.bf16.mxu0 0
      %706 = vmatpush1.bf16.msra.mxu0 0
      %707 = vmatprep.subr.bf16.mxu0 0
      %708 = vmatpush1.bf16.msra.mxu0 0
      %709 = vmatprep.subr.bf16.mxu0 0
      %710 = vmatpush1.bf16.msra.mxu0 0
      %711 = vmatprep.subr.bf16.mxu0 0
      %712 = vmatpush1.bf16.msra.mxu0 0
      %713 = vmatprep.subr.bf16.mxu0 0
      %714 = vmatpush1.bf16.msra.mxu0 0
      %715 = vmatprep.subr.bf16.mxu0 0
      %716 = vmatpush1.bf16.msra.mxu0 0
      %717 = vmatprep.mubr.bf16.mxu0 0
      %718 = vmatmul.mubr.bf16.gmra.mrb[0].mxu0 %v659
      %v719 = vpop.f32.mrb[0].mxu0
      %v720 = vadd.f32 0.0, %v719
      %v721 = vpop.f32.mrb[0].mxu0
      %v722 = vpop.f32.mrb[0].mxu0
      %v723 = vadd.f32 0.0, %v722
      %v724 = vpop.f32.mrb[0].mxu0
      %725 = vmatprep.mubr.bf16.mxu0 0
      %726 = vmatmul.mubr.bf16.gmra.mrb[0].mxu0 %v662
      %v727 = vpop.f32.mrb[0].mxu0
      %v728 = vadd.f32 0.0, %v727
      %v729 = vpop.f32.mrb[0].mxu0
      %v730 = vpop.f32.mrb[0].mxu0
      %v731 = vadd.f32 0.0, %v730
      %v732 = vpop.f32.mrb[0].mxu0
      %733 = vmatprep.mubr.bf16.mxu0 0
      %734 = vmatmul.mubr.bf16.gmra.mrb[0].mxu0 %v665
      %v735 = vpop.f32.mrb[0].mxu0
      %v736 = vadd.f32 0.0, %v735
      %v737 = vpop.f32.mrb[0].mxu0
      %v738 = vpop.f32.mrb[0].mxu0
      %v739 = vadd.f32 0.0, %v738
      %v740 = vpop.f32.mrb[0].mxu0
      %741 = vmatprep.mubr.bf16.mxu0 0
      %742 = vmatmul.mubr.bf16.gmra.mrb[0].mxu0 %v668
      %v743 = vpop.f32.mrb[0].mxu0
      %v744 = vadd.f32 0.0, %v743
      %v745 = vpop.f32.mrb[0].mxu0
      %v746 = vpop.f32.mrb[0].mxu0
      %v747 = vadd.f32 0.0, %v746
      %v748 = vpop.f32.mrb[0].mxu0
      %749 = vmatprep.mubr.bf16.mxu0 0
      %750 = vmatmul.mubr.bf16.gmra.mrb[0].mxu0 %v671
      %v751 = vpop.f32.mrb[0].mxu0
      %v752 = vadd.f32 0.0, %v751
      %v753 = vpop.f32.mrb[0].mxu0
      %v754 = vpop.f32.mrb[0].mxu0
      %v755 = vadd.f32 0.0, %v754
      %v756 = vpop.f32.mrb[0].mxu0
      %757 = vmatprep.mubr.bf16.mxu0 0
      %758 = vmatmul.mubr.bf16.gmra.mrb[0].mxu0 %v674
      %v759 = vpop.f32.mrb[0].mxu0
      %v760 = vadd.f32 0.0, %v759
      %v761 = vpop.f32.mrb[0].mxu0
      %v762 = vpop.f32.mrb[0].mxu0
      %v763 = vadd.f32 0.0, %v762
      %v764 = vpop.f32.mrb[0].mxu0
      %765 = vmatprep.mubr.bf16.mxu0 0
      %766 = vmatmul.mubr.bf16.gmra.mrb[0].mxu0 %v677
      %v767 = vpop.f32.mrb[0].mxu0
      %v768 = vadd.f32 0.0, %v767
      %v769 = vpop.f32.mrb[0].mxu0
      %v770 = vpop.f32.mrb[0].mxu0
      %v771 = vadd.f32 0.0, %v770
      %v772 = vpop.f32.mrb[0].mxu0
      %773 = vmatprep.mubr.bf16.mxu0 0
      %774 = vmatmul.mubr.bf16.gmra.mrb[0].mxu0 %v680
      %v775 = vpop.f32.mrb[0].mxu0
      %v776 = vadd.f32 0.0, %v775
      %v777 = vpop.f32.mrb[0].mxu0
      %v778 = vpop.f32.mrb[0].mxu0
      %v779 = vadd.f32 0.0, %v778
      %v780 = vpop.f32.mrb[0].mxu0
      %781 = vdwg.mxu0
      %v782 = vadd.f32 %v551, %v720
      %v783 = vadd.f32 %v554, %v723
      %v784 = vadd.f32 %v559, %v728
      %v785 = vadd.f32 %v562, %v731
      %v786 = vadd.f32 %v567, %v736
      %v787 = vadd.f32 %v570, %v739
      %v788 = vadd.f32 %v575, %v744
      %v789 = vadd.f32 %v578, %v747
      %v790 = vadd.f32 %v583, %v752
      %v791 = vadd.f32 %v586, %v755
      %v792 = vadd.f32 %v591, %v760
      %v793 = vadd.f32 %v594, %v763
      %v794 = vadd.f32 %v599, %v768
      %v795 = vadd.f32 %v602, %v771
      %v796 = vadd.f32 %v607, %v776
      %v797 = vadd.f32 %v610, %v779
      %798 = vmatprep.subr.bf16.mxu0 0
      %799 = vmatpush1.bf16.msra.mxu0 %v654
      %800 = vmatprep.subr.bf16.mxu0 0
      %801 = vmatpush1.bf16.msra.mxu0 %v683
      %802 = vmatprep.subr.bf16.mxu0 0
      %803 = vmatpush1.bf16.msra.mxu0 0
      %804 = vmatprep.subr.bf16.mxu0 0
      %805 = vmatpush1.bf16.msra.mxu0 0
      %806 = vmatprep.subr.bf16.mxu0 0
      %807 = vmatpush1.bf16.msra.mxu0 0
      %808 = vmatprep.subr.bf16.mxu0 0
      %809 = vmatpush1.bf16.msra.mxu0 0
      %810 = vmatprep.subr.bf16.mxu0 0
      %811 = vmatpush1.bf16.msra.mxu0 0
      %812 = vmatprep.subr.bf16.mxu0 0
      %813 = vmatpush1.bf16.msra.mxu0 0
      %814 = vmatprep.subr.bf16.mxu0 0
      %815 = vmatpush1.bf16.msra.mxu0 0
      %816 = vmatprep.subr.bf16.mxu0 0
      %817 = vmatpush1.bf16.msra.mxu0 0
      %818 = vmatprep.subr.bf16.mxu0 0
      %819 = vmatpush1.bf16.msra.mxu0 0
      %820 = vmatprep.subr.bf16.mxu0 0
      %821 = vmatpush1.bf16.msra.mxu0 0
      %822 = vmatprep.subr.bf16.mxu0 0
      %823 = vmatpush1.bf16.msra.mxu0 0
      %824 = vmatprep.subr.bf16.mxu0 0
      %825 = vmatpush1.bf16.msra.mxu0 0
      %826 = vmatprep.subr.bf16.mxu0 0
      %827 = vmatpush1.bf16.msra.mxu0 0
      %828 = vmatprep.subr.bf16.mxu0 0
      %829 = vmatpush1.bf16.msra.mxu0 0
      %830 = vmatprep.mubr.bf16.mxu0 0
      %831 = vmatmul.mubr.bf16.gmra.mrb[0].mxu0 %v314
      %v832 = vpop.f32.mrb[0].mxu0
      %v833 = vadd.f32 0.0, %v832
      %v834 = vpop.f32.mrb[0].mxu0
      %v835 = vpop.f32.mrb[0].mxu0
      %v836 = vadd.f32 0.0, %v835
      %v837 = vpop.f32.mrb[0].mxu0
      %838 = vmatprep.mubr.bf16.mxu0 0
      %839 = vmatmul.mubr.bf16.gmra.mrb[0].mxu0 %v317
      %v840 = vpop.f32.mrb[0].mxu0
      %v841 = vadd.f32 0.0, %v840
      %v842 = vpop.f32.mrb[0].mxu0
      %v843 = vpop.f32.mrb[0].mxu0
      %v844 = vadd.f32 0.0, %v843
      %v845 = vpop.f32.mrb[0].mxu0
      %846 = vmatprep.mubr.bf16.mxu0 0
      %847 = vmatmul.mubr.bf16.gmra.mrb[0].mxu0 %v320
      %v848 = vpop.f32.mrb[0].mxu0
      %v849 = vadd.f32 0.0, %v848
      %v850 = vpop.f32.mrb[0].mxu0
      %v851 = vpop.f32.mrb[0].mxu0
      %v852 = vadd.f32 0.0, %v851
      %v853 = vpop.f32.mrb[0].mxu0
      %854 = vmatprep.mubr.bf16.mxu0 0
      %855 = vmatmul.mubr.bf16.gmra.mrb[0].mxu0 %v323
      %v856 = vpop.f32.mrb[0].mxu0
      %v857 = vadd.f32 0.0, %v856
      %v858 = vpop.f32.mrb[0].mxu0
      %v859 = vpop.f32.mrb[0].mxu0
      %v860 = vadd.f32 0.0, %v859
      %v861 = vpop.f32.mrb[0].mxu0
      %862 = vmatprep.mubr.bf16.mxu0 0
      %863 = vmatmul.mubr.bf16.gmra.mrb[0].mxu0 %v326
      %v864 = vpop.f32.mrb[0].mxu0
      %v865 = vadd.f32 0.0, %v864
      %v866 = vpop.f32.mrb[0].mxu0
      %v867 = vpop.f32.mrb[0].mxu0
      %v868 = vadd.f32 0.0, %v867
      %v869 = vpop.f32.mrb[0].mxu0
      %870 = vmatprep.mubr.bf16.mxu0 0
      %871 = vmatmul.mubr.bf16.gmra.mrb[0].mxu0 %v329
      %v872 = vpop.f32.mrb[0].mxu0
      %v873 = vadd.f32 0.0, %v872
      %v874 = vpop.f32.mrb[0].mxu0
      %v875 = vpop.f32.mrb[0].mxu0
      %v876 = vadd.f32 0.0, %v875
      %v877 = vpop.f32.mrb[0].mxu0
      %878 = vmatprep.mubr.bf16.mxu0 0
      %879 = vmatmul.mubr.bf16.gmra.mrb[0].mxu0 %v332
      %v880 = vpop.f32.mrb[0].mxu0
      %v881 = vadd.f32 0.0, %v880
      %v882 = vpop.f32.mrb[0].mxu0
      %v883 = vpop.f32.mrb[0].mxu0
      %v884 = vadd.f32 0.0, %v883
      %v885 = vpop.f32.mrb[0].mxu0
      %886 = vmatprep.mubr.bf16.mxu0 0
      %887 = vmatmul.mubr.bf16.gmra.mrb[0].mxu0 %v335
      %v888 = vpop.f32.mrb[0].mxu0
      %v889 = vadd.f32 0.0, %v888
      %v890 = vpop.f32.mrb[0].mxu0
      %v891 = vpop.f32.mrb[0].mxu0
      %v892 = vadd.f32 0.0, %v891
      %v893 = vpop.f32.mrb[0].mxu0
      %894 = vdwg.mxu0
      %895 = vmatprep.subr.bf16.mxu0 0
      %896 = vmatpush1.bf16.msra.mxu0 %v309
      %897 = vmatprep.subr.bf16.mxu0 0
      %898 = vmatpush1.bf16.msra.mxu0 %v339
      %899 = vmatprep.subr.bf16.mxu0 0
      %900 = vmatpush1.bf16.msra.mxu0 0
      %901 = vmatprep.subr.bf16.mxu0 0
      %902 = vmatpush1.bf16.msra.mxu0 0
      %903 = vmatprep.subr.bf16.mxu0 0
      %904 = vmatpush1.bf16.msra.mxu0 0
      %905 = vmatprep.subr.bf16.mxu0 0
      %906 = vmatpush1.bf16.msra.mxu0 0
      %907 = vmatprep.subr.bf16.mxu0 0
      %908 = vmatpush1.bf16.msra.mxu0 0
      %909 = vmatprep.subr.bf16.mxu0 0
      %910 = vmatpush1.bf16.msra.mxu0 0
      %911 = vmatprep.subr.bf16.mxu0 0
      %912 = vmatpush1.bf16.msra.mxu0 0
      %913 = vmatprep.subr.bf16.mxu0 0
      %914 = vmatpush1.bf16.msra.mxu0 0
      %915 = vmatprep.subr.bf16.mxu0 0
      %916 = vmatpush1.bf16.msra.mxu0 0
      %917 = vmatprep.subr.bf16.mxu0 0
      %918 = vmatpush1.bf16.msra.mxu0 0
      %919 = vmatprep.subr.bf16.mxu0 0
      %920 = vmatpush1.bf16.msra.mxu0 0
      %921 = vmatprep.subr.bf16.mxu0 0
      %922 = vmatpush1.bf16.msra.mxu0 0
      %923 = vmatprep.subr.bf16.mxu0 0
      %924 = vmatpush1.bf16.msra.mxu0 0
      %925 = vmatprep.subr.bf16.mxu0 0
      %926 = vmatpush1.bf16.msra.mxu0 0
      %927 = vmatprep.mubr.bf16.mxu0 0
      %928 = vmatmul.mubr.bf16.gmra.mrb[0].mxu0 %v490
      %v929 = vpop.f32.mrb[0].mxu0
      %v930 = vadd.f32 %v833, %v929
      %v931 = vpop.f32.mrb[0].mxu0
      %v932 = vpop.f32.mrb[0].mxu0
      %v933 = vadd.f32 %v836, %v932
      %v934 = vpop.f32.mrb[0].mxu0
      %935 = vmatprep.mubr.bf16.mxu0 0
      %936 = vmatmul.mubr.bf16.gmra.mrb[0].mxu0 %v493
      %v937 = vpop.f32.mrb[0].mxu0
      %v938 = vadd.f32 %v841, %v937
      %v939 = vpop.f32.mrb[0].mxu0
      %v940 = vpop.f32.mrb[0].mxu0
      %v941 = vadd.f32 %v844, %v940
      %v942 = vpop.f32.mrb[0].mxu0
      %943 = vmatprep.mubr.bf16.mxu0 0
      %944 = vmatmul.mubr.bf16.gmra.mrb[0].mxu0 %v496
      %v945 = vpop.f32.mrb[0].mxu0
      %v946 = vadd.f32 %v849, %v945
      %v947 = vpop.f32.mrb[0].mxu0
      %v948 = vpop.f32.mrb[0].mxu0
      %v949 = vadd.f32 %v852, %v948
      %v950 = vpop.f32.mrb[0].mxu0
      %951 = vmatprep.mubr.bf16.mxu0 0
      %952 = vmatmul.mubr.bf16.gmra.mrb[0].mxu0 %v499
      %v953 = vpop.f32.mrb[0].mxu0
      %v954 = vadd.f32 %v857, %v953
      %v955 = vpop.f32.mrb[0].mxu0
      %v956 = vpop.f32.mrb[0].mxu0
      %v957 = vadd.f32 %v860, %v956
      %v958 = vpop.f32.mrb[0].mxu0
      %959 = vmatprep.mubr.bf16.mxu0 0
      %960 = vmatmul.mubr.bf16.gmra.mrb[0].mxu0 %v502
      %v961 = vpop.f32.mrb[0].mxu0
      %v962 = vadd.f32 %v865, %v961
      %v963 = vpop.f32.mrb[0].mxu0
      %v964 = vpop.f32.mrb[0].mxu0
      %v965 = vadd.f32 %v868, %v964
      %v966 = vpop.f32.mrb[0].mxu0
      %967 = vmatprep.mubr.bf16.mxu0 0
      %968 = vmatmul.mubr.bf16.gmra.mrb[0].mxu0 %v505
      %v969 = vpop.f32.mrb[0].mxu0
      %v970 = vadd.f32 %v873, %v969
      %v971 = vpop.f32.mrb[0].mxu0
      %v972 = vpop.f32.mrb[0].mxu0
      %v973 = vadd.f32 %v876, %v972
      %v974 = vpop.f32.mrb[0].mxu0
      %975 = vmatprep.mubr.bf16.mxu0 0
      %976 = vmatmul.mubr.bf16.gmra.mrb[0].mxu0 %v508
      %v977 = vpop.f32.mrb[0].mxu0
      %v978 = vadd.f32 %v881, %v977
      %v979 = vpop.f32.mrb[0].mxu0
      %v980 = vpop.f32.mrb[0].mxu0
      %v981 = vadd.f32 %v884, %v980
      %v982 = vpop.f32.mrb[0].mxu0
      %983 = vmatprep.mubr.bf16.mxu0 0
      %984 = vmatmul.mubr.bf16.gmra.mrb[0].mxu0 %v511
      %v985 = vpop.f32.mrb[0].mxu0
      %v986 = vadd.f32 %v889, %v985
      %v987 = vpop.f32.mrb[0].mxu0
      %v988 = vpop.f32.mrb[0].mxu0
      %v989 = vadd.f32 %v892, %v988
      %v990 = vpop.f32.mrb[0].mxu0
      %991 = vdwg.mxu0
      %992 = vrot.lane.b32.xlu0 %v309, 127
      %v993 = vpop.permute.xlu0 %992
      %994 = vrot.lane.b32.xlu0 %v310, 127
      %v995 = vpop.permute.xlu0 %994
      %v998 = vsel %vm337, %v995, 0
      %1000 = vmatprep.subr.bf16.mxu0 0
      %1001 = vmatpush1.bf16.msra.mxu0 %v993
      %1002 = vmatprep.subr.bf16.mxu0 0
      %1003 = vmatpush1.bf16.msra.mxu0 %v998
      %1004 = vmatprep.subr.bf16.mxu0 0
      %1005 = vmatpush1.bf16.msra.mxu0 0
      %1006 = vmatprep.subr.bf16.mxu0 0
      %1007 = vmatpush1.bf16.msra.mxu0 0
      %1008 = vmatprep.subr.bf16.mxu0 0
      %1009 = vmatpush1.bf16.msra.mxu0 0
      %1010 = vmatprep.subr.bf16.mxu0 0
      %1011 = vmatpush1.bf16.msra.mxu0 0
      %1012 = vmatprep.subr.bf16.mxu0 0
      %1013 = vmatpush1.bf16.msra.mxu0 0
      %1014 = vmatprep.subr.bf16.mxu0 0
      %1015 = vmatpush1.bf16.msra.mxu0 0
      %1016 = vmatprep.subr.bf16.mxu0 0
      %1017 = vmatpush1.bf16.msra.mxu0 0
      %1018 = vmatprep.subr.bf16.mxu0 0
      %1019 = vmatpush1.bf16.msra.mxu0 0
      %1020 = vmatprep.subr.bf16.mxu0 0
      %1021 = vmatpush1.bf16.msra.mxu0 0
      %1022 = vmatprep.subr.bf16.mxu0 0
      %1023 = vmatpush1.bf16.msra.mxu0 0
      %1024 = vmatprep.subr.bf16.mxu0 0
      %1025 = vmatpush1.bf16.msra.mxu0 0
      %1026 = vmatprep.subr.bf16.mxu0 0
      %1027 = vmatpush1.bf16.msra.mxu0 0
      %1028 = vmatprep.subr.bf16.mxu0 0
      %1029 = vmatpush1.bf16.msra.mxu0 0
      %1030 = vmatprep.subr.bf16.mxu0 0
      %1031 = vmatpush1.bf16.msra.mxu0 0
      %1032 = vmatprep.mubr.bf16.mxu0 0
      %1033 = vmatmul.mubr.bf16.gmra.mrb[0].mxu0 %v659
      %v1034 = vpop.f32.mrb[0].mxu0
      %v1035 = vadd.f32 0.0, %v1034
      %v1036 = vpop.f32.mrb[0].mxu0
      %v1037 = vpop.f32.mrb[0].mxu0
      %v1038 = vadd.f32 0.0, %v1037
      %v1039 = vpop.f32.mrb[0].mxu0
      %1040 = vmatprep.mubr.bf16.mxu0 0
      %1041 = vmatmul.mubr.bf16.gmra.mrb[0].mxu0 %v662
      %v1042 = vpop.f32.mrb[0].mxu0
      %v1043 = vadd.f32 0.0, %v1042
      %v1044 = vpop.f32.mrb[0].mxu0
      %v1045 = vpop.f32.mrb[0].mxu0
      %v1046 = vadd.f32 0.0, %v1045
      %v1047 = vpop.f32.mrb[0].mxu0
      %1048 = vmatprep.mubr.bf16.mxu0 0
      %1049 = vmatmul.mubr.bf16.gmra.mrb[0].mxu0 %v665
      %v1050 = vpop.f32.mrb[0].mxu0
      %v1051 = vadd.f32 0.0, %v1050
      %v1052 = vpop.f32.mrb[0].mxu0
      %v1053 = vpop.f32.mrb[0].mxu0
      %v1054 = vadd.f32 0.0, %v1053
      %v1055 = vpop.f32.mrb[0].mxu0
      %1056 = vmatprep.mubr.bf16.mxu0 0
      %1057 = vmatmul.mubr.bf16.gmra.mrb[0].mxu0 %v668
      %v1058 = vpop.f32.mrb[0].mxu0
      %v1059 = vadd.f32 0.0, %v1058
      %v1060 = vpop.f32.mrb[0].mxu0
      %v1061 = vpop.f32.mrb[0].mxu0
      %v1062 = vadd.f32 0.0, %v1061
      %v1063 = vpop.f32.mrb[0].mxu0
      %1064 = vmatprep.mubr.bf16.mxu0 0
      %1065 = vmatmul.mubr.bf16.gmra.mrb[0].mxu0 %v671
      %v1066 = vpop.f32.mrb[0].mxu0
      %v1067 = vadd.f32 0.0, %v1066
      %v1068 = vpop.f32.mrb[0].mxu0
      %v1069 = vpop.f32.mrb[0].mxu0
      %v1070 = vadd.f32 0.0, %v1069
      %v1071 = vpop.f32.mrb[0].mxu0
      %1072 = vmatprep.mubr.bf16.mxu0 0
      %1073 = vmatmul.mubr.bf16.gmra.mrb[0].mxu0 %v674
      %v1074 = vpop.f32.mrb[0].mxu0
      %v1075 = vadd.f32 0.0, %v1074
      %v1076 = vpop.f32.mrb[0].mxu0
      %v1077 = vpop.f32.mrb[0].mxu0
      %v1078 = vadd.f32 0.0, %v1077
      %v1079 = vpop.f32.mrb[0].mxu0
      %1080 = vmatprep.mubr.bf16.mxu0 0
      %1081 = vmatmul.mubr.bf16.gmra.mrb[0].mxu0 %v677
      %v1082 = vpop.f32.mrb[0].mxu0
      %v1083 = vadd.f32 0.0, %v1082
      %v1084 = vpop.f32.mrb[0].mxu0
      %v1085 = vpop.f32.mrb[0].mxu0
      %v1086 = vadd.f32 0.0, %v1085
      %v1087 = vpop.f32.mrb[0].mxu0
      %1088 = vmatprep.mubr.bf16.mxu0 0
      %1089 = vmatmul.mubr.bf16.gmra.mrb[0].mxu0 %v680
      %v1090 = vpop.f32.mrb[0].mxu0
      %v1091 = vadd.f32 0.0, %v1090
      %v1092 = vpop.f32.mrb[0].mxu0
      %v1093 = vpop.f32.mrb[0].mxu0
      %v1094 = vadd.f32 0.0, %v1093
      %v1095 = vpop.f32.mrb[0].mxu0
      %1096 = vdwg.mxu0
      %v1097 = vadd.f32 %v930, %v1035
      %v1098 = vadd.f32 %v933, %v1038
      %v1099 = vadd.f32 %v938, %v1043
      %v1100 = vadd.f32 %v941, %v1046
      %v1101 = vadd.f32 %v946, %v1051
      %v1102 = vadd.f32 %v949, %v1054
      %v1103 = vadd.f32 %v954, %v1059
      %v1104 = vadd.f32 %v957, %v1062
      %v1105 = vadd.f32 %v962, %v1067
      %v1106 = vadd.f32 %v965, %v1070
      %v1107 = vadd.f32 %v970, %v1075
      %v1108 = vadd.f32 %v973, %v1078
      %v1109 = vadd.f32 %v978, %v1083
      %v1110 = vadd.f32 %v981, %v1086
      %v1111 = vadd.f32 %v986, %v1091
      %v1112 = vadd.f32 %v989, %v1094
      %v1113 = vmax.f32 %v782, %v1097
      %v1114 = vmax.f32 %v783, %v1098
      %v1115 = vmax.f32 %v784, %v1099
      %v1116 = vmax.f32 %v785, %v1100
      %v1117 = vmax.f32 %v786, %v1101
      %v1118 = vmax.f32 %v787, %v1102
      %v1119 = vmax.f32 %v788, %v1103
      %v1120 = vmax.f32 %v789, %v1104
      %v1121 = vmax.f32 %v790, %v1105
      %v1122 = vmax.f32 %v791, %v1106
      %v1123 = vmax.f32 %v792, %v1107
      %v1124 = vmax.f32 %v793, %v1108
      %v1125 = vmax.f32 %v794, %v1109
      %v1126 = vmax.f32 %v795, %v1110
      %v1127 = vmax.f32 %v796, %v1111
      %v1128 = vmax.f32 %v797, %v1112
      %v1129 = vmax.f32 %v1113, %v1115
      %v1130 = vmax.f32 %v1114, %v1116
      %v1131 = vmax.f32 %v1117, %v1119
      %v1132 = vmax.f32 %v1118, %v1120
      %v1133 = vmax.f32 %v1121, %v1123
      %v1134 = vmax.f32 %v1122, %v1124
      %v1135 = vmax.f32 %v1125, %v1127
      %v1136 = vmax.f32 %v1126, %v1128
      %v1137 = vld [vmem:[%s2] sm:$0xff]
      %v1138 = vld [vmem:[%s2 + $0x8] sm:$0xff]
      %v1139 = vld [vmem:[%s2 + $0x10] sm:$0xff]
      %v1140 = vld [vmem:[%s2 + $0x18] sm:$0xff]
      %v1141 = vld [vmem:[%s2 + $0x20] sm:$0xff]
      %v1142 = vld [vmem:[%s2 + $0x28] sm:$0xff]
      %v1143 = vld [vmem:[%s2 + $0x30] sm:$0xff]
      %v1144 = vld [vmem:[%s2 + $0x38] sm:$0xff]
      %1146 = vset.pattern.permute.xlu0 0
      %1147 = vperm.xlu0 %1146, %v1137
      %v1148 = vpop.permute.xlu0 %1147
      %1151 = vset.pattern.permute.xlu0 0
      %1152 = vperm.xlu0 %1151, %v1138
      %v1153 = vpop.permute.xlu0 %1152
      %1156 = vset.pattern.permute.xlu0 0
      %1157 = vperm.xlu0 %1156, %v1139
      %v1158 = vpop.permute.xlu0 %1157
      %1161 = vset.pattern.permute.xlu0 0
      %1162 = vperm.xlu0 %1161, %v1140
      %v1163 = vpop.permute.xlu0 %1162
      %1166 = vset.pattern.permute.xlu0 0
      %1167 = vperm.xlu0 %1166, %v1141
      %v1168 = vpop.permute.xlu0 %1167
      %1171 = vset.pattern.permute.xlu0 0
      %1172 = vperm.xlu0 %1171, %v1142
      %v1173 = vpop.permute.xlu0 %1172
      %1176 = vset.pattern.permute.xlu0 0
      %1177 = vperm.xlu0 %1176, %v1143
      %v1178 = vpop.permute.xlu0 %1177
      %1181 = vset.pattern.permute.xlu0 0
      %1182 = vperm.xlu0 %1181, %v1144
      %v1183 = vpop.permute.xlu0 %1182
      %v1185 = vadd.f32 %v1129, %v1148
      %v1186 = vadd.f32 %v1130, %v1153
      %v1187 = vadd.f32 %v1131, %v1158
      %v1188 = vadd.f32 %v1132, %v1163
      %v1189 = vadd.f32 %v1133, %v1168
      %v1190 = vadd.f32 %v1134, %v1173
      %v1191 = vadd.f32 %v1135, %v1178
      %v1192 = vadd.f32 %v1136, %v1183
      %v1193 = vmax.f32 %v1185, 0.0
      %v1194 = vmax.f32 %v1186, 0.0
      %v1195 = vmax.f32 %v1187, 0.0
      %v1196 = vmax.f32 %v1188, 0.0
      %v1197 = vmax.f32 %v1189, 0.0
      %v1198 = vmax.f32 %v1190, 0.0
      %v1199 = vmax.f32 %v1191, 0.0
      %v1200 = vmax.f32 %v1192, 0.0
      %v1201 = vpack.c.bf16 %v1194, %v1193
      %v1202 = vpack.c.bf16 %v1196, %v1195
      %v1203 = vpack.c.bf16 %v1198, %v1197
      %v1204 = vpack.c.bf16 %v1200, %v1199
      %v1209 = vunpack.c.l.b16 %v1201
      %v1210 = vunpack.c.h.b16 %v1201
      %v1211 = vunpack.c.l.b16 %v1202
      %v1212 = vunpack.c.h.b16 %v1202
      %v1213 = vunpack.c.l.b16 %v1203
      %v1214 = vunpack.c.h.b16 %v1203
      %v1215 = vunpack.c.l.b16 %v1204
      %v1216 = vunpack.c.h.b16 %v1204
      %v1217 = vpack.c.b16 %v1209, %v1209
      %v1218 = vpack.c.b16 %v1210, %v1210
      %v1219 = vpack.c.b16 %v1211, %v1211
      %v1220 = vpack.c.b16 %v1212, %v1212
      %v1221 = vpack.c.b16 %v1213, %v1213
      %v1222 = vpack.c.b16 %v1214, %v1214
      %v1223 = vpack.c.b16 %v1215, %v1215
      %v1224 = vpack.c.b16 %v1216, %v1216
      %vm1233 = vcmask 93184
      %1234 = vst.msk [vmem:[%s192] sm:$0xf] %vm1233, %v1217
      %1235 = vst.msk [vmem:[%s192 + $0x4] sm:$0xf] %vm1233, %v1218
      %1236 = vst.msk [vmem:[%s192 + $0x8] sm:$0xf] %vm1233, %v1219
      %1237 = vst.msk [vmem:[%s192 + $0xc] sm:$0xf] %vm1233, %v1220
      %1238 = vst.msk [vmem:[%s192 + $0x10] sm:$0xf] %vm1233, %v1221
      %1239 = vst.msk [vmem:[%s192 + $0x14] sm:$0xf] %vm1233, %v1222
      %1240 = vst.msk [vmem:[%s192 + $0x18] sm:$0xf] %vm1233, %v1223
      %1241 = vst.msk [vmem:[%s192 + $0x1c] sm:$0xf] %vm1233, %v1224
      %s1242 = smul.u32 8, %s19
      %p1243 = scmp.lt.s32.totalorder %s18, 1
      %s1244 = scalar_select %p1243, %s18, 1
      %p1245 = scmp.lt.s32.totalorder %s1242, 15
      %s1246 = scalar_select %p1245, %s1242, 15
      %s1247 = smul.addr %s1244, 16
      %s1248 = sadd.s32 %s1246, %s1247
      %s1249 = smul.addr %s1248, 4
      %s1250 = scalar_lea.vmem %s3, %s1249
      // Predicated region
      $region33: #{cnn_feature_extractor.3} parent=31 // pred_check
        %p1251 = pneg %p114
      $region34: #{cnn_feature_extractor.3} parent=31 // pred_check_branch
        %1253 = sbr.rel (%p1251) target = $region36
      $region35: #{cnn_feature_extractor.3} parent=31 // pred_region
        %s1254 = smul.u32 8, %s19
      $region36: #{cnn_feature_extractor.3} parent=31 // pred_fallthru
        _
    $region32: #{cnn_feature_extractor.3} parent=5 // pred_fallthru
      _
    %p1255 = scmp.le.s32.totalorder 2, %s9
    // Predicated region
    $region37: #{cnn_feature_extractor.3} parent=5 // pred_check
      %p1256 = pneg %p1255
    $region38: #{cnn_feature_extractor.3} parent=5 // pred_check_branch
      %1258 = sbr.rel (%p1256) target = $region40
    $region39: #{cnn_feature_extractor.3} parent=5 // pred_region
      %s1259 = ssub.s32 %s9, 2
      // Predicated region
      $region41: #{cnn_feature_extractor.3} parent=39 // pred_check
        %p1260 = pneg %p120
      $region42: #{cnn_feature_extractor.3} parent=39 // pred_check_branch
        %1262 = sbr.rel (%p1260) target = $region44
      $region43: #{cnn_feature_extractor.3} parent=39 // pred_region
        %s1263 = smul.u32 8, %s21
        %p1264 = scmp.lt.s32.totalorder %s20, 1
        %s1265 = scalar_select %p1264, %s20, 1
        %p1266 = scmp.lt.s32.totalorder %s1263, 15
        %s1267 = scalar_select %p1266, %s1263, 15
        %s1268 = smul.addr %s1265, 16
        %s1269 = sadd.s32 %s1267, %s1268
        %s1270 = smul.addr %s1269, 4
        %s1271 = scalar_lea.vmem %s3, %s1270
      $region44: #{cnn_feature_extractor.3} parent=39 // pred_fallthru
        _
    $region40: #{cnn_feature_extractor.3} parent=5 // pred_fallthru
      _
  $region6: #{cnn_feature_extractor.3} parent=0 // loop_footer
    %s13 = sadd.s32 1, %s9
  $region7: #{cnn_feature_extractor.3} parent=0 // loop_footer_branch
    %8 = sbr.rel target = $region3
  $region8: #{cnn_feature_extractor.3} parent=0 // loop_exit
    _

// kernel: cnn_feature_extractor.5
$region0: #{cnn_feature_extractor.5}
  #allocation0 [shape = 'u32[]', space=smem, size = 0x4, offset = 0x4, fixed_abs, tag = 'smem constant byte address 0x4 - core index']
  #allocation1 [shape = 'u32[144,128]{1,0:T(1,128)}', space=vmem, size = 0x12000, scoped, tag = 'internal scratch']
  #allocation2 [shape = 'f32[2,128]{1,0:T(2,128)}', space=vmem, size = 0x400, scoped, tag = 'scratch operand']
  %s0 = inlined_call_operand.hbm [shape: bf16[2,1024], index: 0, kind: input, shape index: {}]
  %s1 = inlined_call_operand.hbm [shape: bf16[1024,256], index: 1, kind: input, shape index: {}]
  %s2 = inlined_call_operand.hbm [shape: f32[1,256], index: 2, kind: input, shape index: {}]
  %s3 = inlined_call_operand.hbm [shape: f32[2,256], index: 3, kind: output, shape index: {}]
  %s4 = sld [smem:[#allocation0]]
  $region65: #{cnn_feature_extractor.5} parent=0
    _
  %s6 = ssub.s32 1, %s4
  %s7 = scalar_select 0, %s6, %s4
  $region1: #{cnn_feature_extractor.5} parent=0
    #allocation3 [shape = 'u8[4096]{0}', space=vmem, size = 0x1000, scoped, tag = 'input window, operand 0, single buffered']
    #allocation4 [shape = 's32[2]{0}', space=sflag, size = 0x8, scoped, tag = 'scoped memory for cnn_feature_extractor.5']
    #allocation5 [shape = 's32[2]{0}', space=sflag, size = 0x8, scoped, tag = 'scoped memory for cnn_feature_extractor.5']
    #allocation6 [shape = 'u8[524288]{0}', space=vmem, size = 0x80000, scoped, tag = 'input window, operand 1']
    #allocation7 [shape = 's32[2]{0}', space=sflag, size = 0x8, scoped, tag = 'scoped memory for cnn_feature_extractor.5']
    #allocation8 [shape = 'u8[1024]{0}', space=vmem, size = 0x400, scoped, tag = 'input window, operand 2']
    #allocation9 [shape = 'u8[2048]{0}', space=vmem, size = 0x800, scoped, tag = 'output window, operand 0']
    %8 = vsyncpa [#allocation4], 0
    %9 = vsyncpa [#allocation7], 0
    %s10 = scalar_lea.sflag [#allocation7], 1
    %11 = vsyncpa %s10, 0
    %12 = vsyncpa [#allocation5], 0
    %s13 = scalar_lea.sflag [#allocation5], 1
    %14 = vsyncpa %s13, 0
    loop: start=0, step=1, limit=4
    $region2: #{cnn_feature_extractor.5} parent=1 // loop_pre_header
      _
    $region3: #{cnn_feature_extractor.5} parent=1 // loop_header
      %s16 = sphi 0, %s20
      %p17 = scmp.ge.s32.totalorder %s16, 4
      %s23 = sphi 0, %s35
      %s24 = sphi 0, %s31
      %s25 = sphi 0, %s23
      %s26 = sphi 0, %s24
      %s27 = sphi 0, %s25
      %s28 = sphi 0, %s26
      %s38 = sphi 0, %s40
      %s41 = sphi 0, %s38
      %s42 = sphi 0, %s41
      %s58 = sphi 0, %s42
      %s66 = sphi 0, %s68
      %s69 = sphi 0, %s66
      %s70 = sphi 0, %s69
      %s86 = sphi 0, %s70
      %s92 = sphi 0, %s94
      %s95 = sphi 0, %s92
      %s96 = sphi 0, %s95
      %s112 = sphi 0, %s96
      %s118 = sphi 0, %s120
      %s121 = sphi 0, %s118
      %s122 = sphi 0, %s121
      %s138 = sphi 0, %s122
    $region4: #{cnn_feature_extractor.5} parent=1 // loop_header_branch
      %19 = sbr.rel (%p17) target = $region8
    $region5: #{cnn_feature_extractor.5} parent=1 // loop_body
      %s21 = ssub.s32 %s16, 1
      %s22 = ssub.s32 %s16, 2
      %s29 = sadd.s32 1, %s24
      %p30 = scmp.ge.s32.totalorder %s29, 1
      %s31 = scalar_select %p30, 0, %s29
      %s32 = sadd.s32 1, %s23
      %s33 = scalar_select %p30, %s32, %s23
      %p34 = scmp.ge.s32.totalorder %s33, 2
      %s35 = scalar_select %p34, 0, %s33
      %s36 = ssub.s32 %s24, %s31
      %p37 = scmp.eq.s32.totalorder %s36, 0
      %s39 = sadd.s32 %s38, 1
      %s40 = scalar_select %p37, %s38, %s39
      %p43 = pneg %p37
      %p44 = scmp.eq.s32.totalorder %s16, 1
      %p45 = por %p43, %p44
      %p46 = scmp.ne.s32.totalorder %s38, %s41
      %p47 = scmp.eq.s32.totalorder %s16, 0
      %p48 = por %p46, %p47
      %p49 = scmp.ne.s32.totalorder %s38, %s41
      %p50 = scmp.eq.s32.totalorder %s21, 1
      %p51 = por %p49, %p50
      %p52 = scmp.ne.s32.totalorder %s41, %s42
      %p53 = scmp.eq.s32.totalorder %s21, 0
      %p54 = por %p52, %p53
      %p55 = scmp.ne.s32.totalorder %s41, %s42
      %p56 = scmp.eq.s32.totalorder %s22, 1
      %p57 = por %p55, %p56
      %p59 = scmp.ne.s32.totalorder %s42, %s58
      %p60 = scmp.eq.s32.totalorder %s22, 0
      %p61 = por %p59, %p60
      %s62 = ssub.s32 %s24, %s31
      %s63 = ssub.s32 %s23, %s35
      %s64 = sor.u32 %s62, %s63
      %p65 = scmp.eq.s32.totalorder %s64, 0
      %s67 = sadd.s32 %s66, 1
      %s68 = scalar_select %p65, %s66, %s67
      %p71 = pneg %p65
      %p72 = scmp.eq.s32.totalorder %s16, 1
      %p73 = por %p71, %p72
      %p74 = scmp.ne.s32.totalorder %s66, %s69
      %p75 = scmp.eq.s32.totalorder %s16, 0
      %p76 = por %p74, %p75
      %p77 = scmp.ne.s32.totalorder %s66, %s69
      %p78 = scmp.eq.s32.totalorder %s21, 1
      %p79 = por %p77, %p78
      %p80 = scmp.ne.s32.totalorder %s69, %s70
      %p81 = scmp.eq.s32.totalorder %s21, 0
      %p82 = por %p80, %p81
      %p83 = scmp.ne.s32.totalorder %s69, %s70
      %p84 = scmp.eq.s32.totalorder %s22, 1
      %p85 = por %p83, %p84
      %p87 = scmp.ne.s32.totalorder %s70, %s86
      %p88 = scmp.eq.s32.totalorder %s22, 0
      %p89 = por %p87, %p88
      %s90 = ssub.s32 %s23, %s35
      %p91 = scmp.eq.s32.totalorder %s90, 0
      %s93 = sadd.s32 %s92, 1
      %s94 = scalar_select %p91, %s92, %s93
      %p97 = pneg %p91
      %p98 = scmp.eq.s32.totalorder %s16, 1
      %p99 = por %p97, %p98
      %p100 = scmp.ne.s32.totalorder %s92, %s95
      %p101 = scmp.eq.s32.totalorder %s16, 0
      %p102 = por %p100, %p101
      %p103 = scmp.ne.s32.totalorder %s92, %s95
      %p104 = scmp.eq.s32.totalorder %s21, 1
      %p105 = por %p103, %p104
      %p106 = scmp.ne.s32.totalorder %s95, %s96
      %p107 = scmp.eq.s32.totalorder %s21, 0
      %p108 = por %p106, %p107
      %p109 = scmp.ne.s32.totalorder %s95, %s96
      %p110 = scmp.eq.s32.totalorder %s22, 1
      %p111 = por %p109, %p110
      %p113 = scmp.ne.s32.totalorder %s96, %s112
      %p114 = scmp.eq.s32.totalorder %s22, 0
      %p115 = por %p113, %p114
      %s116 = ssub.s32 %s23, %s35
      %p117 = scmp.eq.s32.totalorder %s116, 0
      %s119 = sadd.s32 %s118, 1
      %s120 = scalar_select %p117, %s118, %s119
      %p123 = pneg %p117
      %p124 = scmp.eq.s32.totalorder %s16, 1
      %p125 = por %p123, %p124
      %p126 = scmp.ne.s32.totalorder %s118, %s121
      %p127 = scmp.eq.s32.totalorder %s16, 0
      %p128 = por %p126, %p127
      %p129 = scmp.ne.s32.totalorder %s118, %s121
      %p130 = scmp.eq.s32.totalorder %s21, 1
      %p131 = por %p129, %p130
      %p132 = scmp.ne.s32.totalorder %s121, %s122
      %p133 = scmp.eq.s32.totalorder %s21, 0
      %p134 = por %p132, %p133
      %p135 = scmp.ne.s32.totalorder %s121, %s122
      %p136 = scmp.eq.s32.totalorder %s22, 1
      %p137 = por %p135, %p136
      %p139 = scmp.ne.s32.totalorder %s122, %s138
      %p140 = scmp.eq.s32.totalorder %s22, 0
      %p141 = por %p139, %p140
      %p142 = scmp.le.s32.totalorder 1, %s16
      %p143 = scmp.lt.s32.totalorder %s16, 3
      %p144 = pnand %p142, %p143
      %p145 = pneg %p144
      // Predicated region
      $region9: #{cnn_feature_extractor.5} parent=5 // pred_check
        _
      $region10: #{cnn_feature_extractor.5} parent=5 // pred_check_branch
        %147 = sbr.rel (%p144) target = $region12
      $region11: #{cnn_feature_extractor.5} parent=5 // pred_region
        %s148 = ssub.s32 %s16, 1
        // Predicated region
        $region13: #{cnn_feature_extractor.5} parent=11 // pred_check
          %p149 = pneg %p54
        $region14: #{cnn_feature_extractor.5} parent=11 // pred_check_branch
          %151 = sbr.rel (%p149) target = $region16
        $region15: #{cnn_feature_extractor.5} parent=11 // pred_region
          %s152 = smul.u32 8, %s26
          %s154 = ssub.s32 128, 128
          %155 = vsyncadd [#allocation4], %s154
          %s156 = smul.addr %s152, 16
          %s157 = scalar_lea.hbm %s0, %s156
          %s159 = sshll.u32 [#allocation3], 4
          %s160 = int_to_ptr.vmem [resolvable:$true] %s159
          %162 = dma.hbm_to_vmem [thread:$0]  %s157, 128, %s160, [#allocation4]
        $region16: #{cnn_feature_extractor.5} parent=11 // pred_fallthru
          _
      $region12: #{cnn_feature_extractor.5} parent=5 // pred_fallthru
        _
      %p163 = scmp.lt.s32.totalorder %s16, 2
      // Predicated region
      $region17: #{cnn_feature_extractor.5} parent=5 // pred_check
        %p164 = pneg %p163
      $region18: #{cnn_feature_extractor.5} parent=5 // pred_check_branch
        %166 = sbr.rel (%p164) target = $region20
      $region19: #{cnn_feature_extractor.5} parent=5 // pred_region
        // Predicated region
        $region21: #{cnn_feature_extractor.5} parent=19 // pred_check
          %p167 = pneg %p76
        $region22: #{cnn_feature_extractor.5} parent=19 // pred_check_branch
          %169 = sbr.rel (%p167) target = $region24
        $region23: #{cnn_feature_extractor.5} parent=19 // pred_region
          %s170 = sand.u32 %s16, 1
          %s171 = scalar_lea.sflag [#allocation7], %s170
          %s172 = sand.u32 %s66, 1
          %s173 = smul.addr %s172, 512
          %s174 = scalar_lea.vmem [#allocation6], %s173
          %s175 = smul.u32 128, %s24
          %s177 = ssub.s32 8192, 8192
          %178 = vsyncadd %s171, %s177
          %s179 = smul.addr %s175, 2
          %s180 = sadd.s32 %s23, %s179
          %s181 = smul.addr %s180, 64
          %s182 = scalar_lea.hbm %s1, %s181
          %s183 = sshll.u32 %s174, 4
          %s184 = int_to_ptr.vmem [resolvable:$true] %s183
          %189 = dma.hbm_to_vmem [thread:$0]  %s182, 8192, %s184, %s171, 128, 64, 4
        $region24: #{cnn_feature_extractor.5} parent=19 // pred_fallthru
          _
        // Predicated region
        $region25: #{cnn_feature_extractor.5} parent=19 // pred_check
          %p190 = pneg %p102
        $region26: #{cnn_feature_extractor.5} parent=19 // pred_check_branch
          %192 = sbr.rel (%p190) target = $region28
        $region27: #{cnn_feature_extractor.5} parent=19 // pred_region
          %s193 = sand.u32 %s16, 1
          %s194 = scalar_lea.sflag [#allocation7], %s193
          %s195 = sand.u32 %s92, 1
          %s196 = scalar_lea.vmem [#allocation8], %s195
          %s198 = ssub.s32 16, 16
          %199 = vsyncadd %s194, %s198
          %s200 = smul.addr %s23, 16
          %s201 = scalar_lea.hbm %s2, %s200
          %s203 = sshll.u32 %s196, 4
          %s204 = int_to_ptr.vmem [resolvable:$true] %s203
          %206 = dma.hbm_to_vmem [thread:$0]  %s201, 16, %s204, %s194
        $region28: #{cnn_feature_extractor.5} parent=19 // pred_fallthru
          _
      $region20: #{cnn_feature_extractor.5} parent=5 // pred_fallthru
        _
      %p207 = scmp.le.s32.totalorder 1, %s16
      %p208 = scmp.lt.s32.totalorder %s16, 3
      %p209 = pnand %p207, %p208
      %p210 = pneg %p209
      // Predicated region
      $region29: #{cnn_feature_extractor.5} parent=5 // pred_check
        _
      $region30: #{cnn_feature_extractor.5} parent=5 // pred_check_branch
        %212 = sbr.rel (%p209) target = $region32
      $region31: #{cnn_feature_extractor.5} parent=5 // pred_region
        %s213 = ssub.s32 %s16, 1
        // Predicated region
        $region33: #{cnn_feature_extractor.5} parent=31 // pred_check
          %p214 = pneg %p54
        $region34: #{cnn_feature_extractor.5} parent=31 // pred_check_branch
          %216 = sbr.rel (%p214) target = $region36
        $region35: #{cnn_feature_extractor.5} parent=31 // pred_region
          %217 = dma.done [#allocation4], 128
        $region36: #{cnn_feature_extractor.5} parent=31 // pred_fallthru
          _
        %s218 = sand.u32 %s21, 1
        %s219 = scalar_lea.sflag [#allocation7], %s218
        %s220 = sand.u32 %s69, 1
        %s221 = smul.addr %s220, 512
        %s222 = scalar_lea.vmem [#allocation6], %s221
        // Predicated region
        $region37: #{cnn_feature_extractor.5} parent=31 // pred_check
          %p223 = pneg %p82
        $region38: #{cnn_feature_extractor.5} parent=31 // pred_check_branch
          %225 = sbr.rel (%p223) target = $region40
        $region39: #{cnn_feature_extractor.5} parent=31 // pred_region
          %226 = dma.done %s219, 8192
        $region40: #{cnn_feature_extractor.5} parent=31 // pred_fallthru
          _
        %s227 = sand.u32 %s21, 1
        %s228 = scalar_lea.sflag [#allocation7], %s227
        %s229 = sand.u32 %s95, 1
        %s230 = scalar_lea.vmem [#allocation8], %s229
        // Predicated region
        $region41: #{cnn_feature_extractor.5} parent=31 // pred_check
          %p231 = pneg %p108
        $region42: #{cnn_feature_extractor.5} parent=31 // pred_check_branch
          %233 = sbr.rel (%p231) target = $region44
        $region43: #{cnn_feature_extractor.5} parent=31 // pred_region
          %234 = dma.done %s228, 16
        $region44: #{cnn_feature_extractor.5} parent=31 // pred_fallthru
          _
        %p235 = pneg %p54
        %p236 = pneg %p51
        %s237 = sand.u32 %s21, 1
        %s238 = scalar_lea.sflag [#allocation7], %s237
        %s239 = sand.u32 %s69, 1
        %s240 = smul.addr %s239, 512
        %s241 = scalar_lea.vmem [#allocation6], %s240
        %p242 = pneg %p82
        %p243 = pneg %p79
        %s244 = sand.u32 %s21, 1
        %s245 = scalar_lea.sflag [#allocation7], %s244
        %s246 = sand.u32 %s95, 1
        %s247 = scalar_lea.vmem [#allocation8], %s246
        %p248 = pneg %p108
        %p249 = pneg %p105
        %p250 = pneg %p134
        %p251 = pneg %p131
        %s252 = sand.u32 %s121, 1
        %s253 = scalar_lea.sflag [#allocation5], %s252
        %s254 = sand.u32 %s121, 1
        %s255 = smul.addr %s254, 2
        %s256 = scalar_lea.vmem [#allocation9], %s255
        %s257 = smul.u32 8, %s26
        %s258 = smul.u32 128, %s26
        %p260 = scmp.eq.s32.totalorder %s26, 0
        // Predicated region
        $region45: #{cnn_feature_extractor.5} parent=31 // pred_check
          %p261 = pneg %p260
        $region46: #{cnn_feature_extractor.5} parent=31 // pred_check_branch
          %263 = sbr.rel (%p261) target = $region48
        $region47: #{cnn_feature_extractor.5} parent=31 // pred_region
          %264 = vst [vmem:[#allocation2] sm:$0x3] 0.0
        $region48: #{cnn_feature_extractor.5} parent=31 // pred_fallthru
          _
        %v265 = vld [vmem:[#allocation2] sm:$0x3]
        %v266 = vld [vmem:[#allocation3] sm:$0xff]
        %v267 = vld [vmem:[%s222] sm:$0xf]
        %v268 = vld [vmem:[%s222 + $0x4] sm:$0xf]
        %v269 = vld [vmem:[%s222 + $0x8] sm:$0xf]
        %v270 = vld [vmem:[%s222 + $0xc] sm:$0xf]
        %v271 = vld [vmem:[%s222 + $0x10] sm:$0xf]
        %v272 = vld [vmem:[%s222 + $0x14] sm:$0xf]
        %v273 = vld [vmem:[%s222 + $0x18] sm:$0xf]
        %v274 = vld [vmem:[%s222 + $0x1c] sm:$0xf]
        %v275 = vld [vmem:[%s222 + $0x20] sm:$0xf]
        %v276 = vld [vmem:[%s222 + $0x24] sm:$0xf]
        %v277 = vld [vmem:[%s222 + $0x28] sm:$0xf]
        %v278 = vld [vmem:[%s222 + $0x2c] sm:$0xf]
        %v279 = vld [vmem:[%s222 + $0x30] sm:$0xf]
        %v280 = vld [vmem:[%s222 + $0x34] sm:$0xf]
        %v281 = vld [vmem:[%s222 + $0x38] sm:$0xf]
        %v282 = vld [vmem:[%s222 + $0x3c] sm:$0xf]
        %v283 = vld [vmem:[%s222 + $0x40] sm:$0xf]
        %v284 = vld [vmem:[%s222 + $0x44] sm:$0xf]
        %v285 = vld [vmem:[%s222 + $0x48] sm:$0xf]
        %v286 = vld [vmem:[%s222 + $0x4c] sm:$0xf]
        %v287 = vld [vmem:[%s222 + $0x50] sm:$0xf]
        %v288 = vld [vmem:[%s222 + $0x54] sm:$0xf]
        %v289 = vld [vmem:[%s222 + $0x58] sm:$0xf]
        %v290 = vld [vmem:[%s222 + $0x5c] sm:$0xf]
        %v291 = vld [vmem:[%s222 + $0x60] sm:$0xf]
        %v292 = vld [vmem:[%s222 + $0x64] sm:$0xf]
        %v293 = vld [vmem:[%s222 + $0x68] sm:$0xf]
        %v294 = vld [vmem:[%s222 + $0x6c] sm:$0xf]
        %v295 = vld [vmem:[%s222 + $0x70] sm:$0xf]
        %v296 = vld [vmem:[%s222 + $0x74] sm:$0xf]
        %v297 = vld [vmem:[%s222 + $0x78] sm:$0xf]
        %v298 = vld [vmem:[%s222 + $0x7c] sm:$0xf]
        %v299 = vld [vmem:[%s222 + $0x80] sm:$0xf]
        %v300 = vld [vmem:[%s222 + $0x84] sm:$0xf]
        %v301 = vld [vmem:[%s222 + $0x88] sm:$0xf]
        %v302 = vld [vmem:[%s222 + $0x8c] sm:$0xf]
        %v303 = vld [vmem:[%s222 + $0x90] sm:$0xf]
        %v304 = vld [vmem:[%s222 + $0x94] sm:$0xf]
        %v305 = vld [vmem:[%s222 + $0x98] sm:$0xf]
        %v306 = vld [vmem:[%s222 + $0x9c] sm:$0xf]
        %v307 = vld [vmem:[%s222 + $0xa0] sm:$0xf]
        %v308 = vld [vmem:[%s222 + $0xa4] sm:$0xf]
        %v309 = vld [vmem:[%s222 + $0xa8] sm:$0xf]
        %v310 = vld [vmem:[%s222 + $0xac] sm:$0xf]
        %v311 = vld [vmem:[%s222 + $0xb0] sm:$0xf]
        %v312 = vld [vmem:[%s222 + $0xb4] sm:$0xf]
        %v313 = vld [vmem:[%s222 + $0xb8] sm:$0xf]
        %v314 = vld [vmem:[%s222 + $0xbc] sm:$0xf]
        %v315 = vld [vmem:[%s222 + $0xc0] sm:$0xf]
        %v316 = vld [vmem:[%s222 + $0xc4] sm:$0xf]
        %v317 = vld [vmem:[%s222 + $0xc8] sm:$0xf]
        %v318 = vld [vmem:[%s222 + $0xcc] sm:$0xf]
        %v319 = vld [vmem:[%s222 + $0xd0] sm:$0xf]
        %v320 = vld [vmem:[%s222 + $0xd4] sm:$0xf]
        %v321 = vld [vmem:[%s222 + $0xd8] sm:$0xf]
        %v322 = vld [vmem:[%s222 + $0xdc] sm:$0xf]
        %v323 = vld [vmem:[%s222 + $0xe0] sm:$0xf]
        %v324 = vld [vmem:[%s222 + $0xe4] sm:$0xf]
        %v325 = vld [vmem:[%s222 + $0xe8] sm:$0xf]
        %v326 = vld [vmem:[%s222 + $0xec] sm:$0xf]
        %v327 = vld [vmem:[%s222 + $0xf0] sm:$0xf]
        %v328 = vld [vmem:[%s222 + $0xf4] sm:$0xf]
        %v329 = vld [vmem:[%s222 + $0xf8] sm:$0xf]
        %v330 = vld [vmem:[%s222 + $0xfc] sm:$0xf]
        %v331 = vld [vmem:[%s222 + $0x100] sm:$0xf]
        %v332 = vld [vmem:[%s222 + $0x104] sm:$0xf]
        %v333 = vld [vmem:[%s222 + $0x108] sm:$0xf]
        %v334 = vld [vmem:[%s222 + $0x10c] sm:$0xf]
        %v335 = vld [vmem:[%s222 + $0x110] sm:$0xf]
        %v336 = vld [vmem:[%s222 + $0x114] sm:$0xf]
        %v337 = vld [vmem:[%s222 + $0x118] sm:$0xf]
        %v338 = vld [vmem:[%s222 + $0x11c] sm:$0xf]
        %v339 = vld [vmem:[%s222 + $0x120] sm:$0xf]
        %v340 = vld [vmem:[%s222 + $0x124] sm:$0xf]
        %v341 = vld [vmem:[%s222 + $0x128] sm:$0xf]
        %v342 = vld [vmem:[%s222 + $0x12c] sm:$0xf]
        %v343 = vld [vmem:[%s222 + $0x130] sm:$0xf]
        %v344 = vld [vmem:[%s222 + $0x134] sm:$0xf]
        %v345 = vld [vmem:[%s222 + $0x138] sm:$0xf]
        %v346 = vld [vmem:[%s222 + $0x13c] sm:$0xf]
        %v347 = vld [vmem:[%s222 + $0x140] sm:$0xf]
        %v348 = vld [vmem:[%s222 + $0x144] sm:$0xf]
        %v349 = vld [vmem:[%s222 + $0x148] sm:$0xf]
        %v350 = vld [vmem:[%s222 + $0x14c] sm:$0xf]
        %v351 = vld [vmem:[%s222 + $0x150] sm:$0xf]
        %v352 = vld [vmem:[%s222 + $0x154] sm:$0xf]
        %v353 = vld [vmem:[%s222 + $0x158] sm:$0xf]
        %v354 = vld [vmem:[%s222 + $0x15c] sm:$0xf]
        %v355 = vld [vmem:[%s222 + $0x160] sm:$0xf]
        %v356 = vld [vmem:[%s222 + $0x164] sm:$0xf]
        %v357 = vld [vmem:[%s222 + $0x168] sm:$0xf]
        %v358 = vld [vmem:[%s222 + $0x16c] sm:$0xf]
        %v359 = vld [vmem:[%s222 + $0x170] sm:$0xf]
        %v360 = vld [vmem:[%s222 + $0x174] sm:$0xf]
        %v361 = vld [vmem:[%s222 + $0x178] sm:$0xf]
        %v362 = vld [vmem:[%s222 + $0x17c] sm:$0xf]
        %v363 = vld [vmem:[%s222 + $0x180] sm:$0xf]
        %v364 = vld [vmem:[%s222 + $0x184] sm:$0xf]
        %v365 = vld [vmem:[%s222 + $0x188] sm:$0xf]
        %v366 = vld [vmem:[%s222 + $0x18c] sm:$0xf]
        %v367 = vld [vmem:[%s222 + $0x190] sm:$0xf]
        %v368 = vld [vmem:[%s222 + $0x194] sm:$0xf]
        %v369 = vld [vmem:[%s222 + $0x198] sm:$0xf]
        %v370 = vld [vmem:[%s222 + $0x19c] sm:$0xf]
        %v371 = vld [vmem:[%s222 + $0x1a0] sm:$0xf]
        %v372 = vld [vmem:[%s222 + $0x1a4] sm:$0xf]
        %v373 = vld [vmem:[%s222 + $0x1a8] sm:$0xf]
        %v374 = vld [vmem:[%s222 + $0x1ac] sm:$0xf]
        %v375 = vld [vmem:[%s222 + $0x1b0] sm:$0xf]
        %v376 = vld [vmem:[%s222 + $0x1b4] sm:$0xf]
        %v377 = vld [vmem:[%s222 + $0x1b8] sm:$0xf]
        %v378 = vld [vmem:[%s222 + $0x1bc] sm:$0xf]
        %v379 = vld [vmem:[%s222 + $0x1c0] sm:$0xf]
        %v380 = vld [vmem:[%s222 + $0x1c4] sm:$0xf]
        %v381 = vld [vmem:[%s222 + $0x1c8] sm:$0xf]
        %v382 = vld [vmem:[%s222 + $0x1cc] sm:$0xf]
        %v383 = vld [vmem:[%s222 + $0x1d0] sm:$0xf]
        %v384 = vld [vmem:[%s222 + $0x1d4] sm:$0xf]
        %v385 = vld [vmem:[%s222 + $0x1d8] sm:$0xf]
        %v386 = vld [vmem:[%s222 + $0x1dc] sm:$0xf]
        %v387 = vld [vmem:[%s222 + $0x1e0] sm:$0xf]
        %v388 = vld [vmem:[%s222 + $0x1e4] sm:$0xf]
        %v389 = vld [vmem:[%s222 + $0x1e8] sm:$0xf]
        %v390 = vld [vmem:[%s222 + $0x1ec] sm:$0xf]
        %v391 = vld [vmem:[%s222 + $0x1f0] sm:$0xf]
        %v392 = vld [vmem:[%s222 + $0x1f4] sm:$0xf]
        %v393 = vld [vmem:[%s222 + $0x1f8] sm:$0xf]
        %v394 = vld [vmem:[%s222 + $0x1fc] sm:$0xf]
        %v396 = vcombine.high %v266, %v266
        %v398 = vunpack.c.l.s4 1966171168
        %v399 = vunpack.c.0.s8 %v398
        %v400 = vlaneseq
        %v401 = vshrl.u32 %v400, 7
        %v402 = vsub.s32 %v399, %v401
        %v403 = vrot.slane %v266, %v402
        %v405 = vunpack.c.l.s4 1966171168
        %v406 = vunpack.c.0.s8 %v405
        %v407 = vlaneseq
        %v408 = vshrl.u32 %v407, 7
        %v409 = vsub.s32 %v406, %v408
        %v410 = vrot.slane %v396, %v409
        %v411 = vcombine.high %v403, %v403
        %v412 = vcombine.high %v410, %v410
        %v414 = vunpack.c.l.s4 1966171168
        %v415 = vunpack.c.0.s8 %v414
        %v416 = vlaneseq
        %v417 = vshrl.u32 %v416, 7
        %v418 = vsub.s32 %v415, %v417
        %v419 = vrot.slane %v403, %v418
        %v421 = vunpack.c.l.s4 1966171168
        %v422 = vunpack.c.0.s8 %v421
        %v423 = vlaneseq
        %v424 = vshrl.u32 %v423, 7
        %v425 = vsub.s32 %v422, %v424
        %v426 = vrot.slane %v410, %v425
        %v428 = vunpack.c.l.s4 1966171168
        %v429 = vunpack.c.0.s8 %v428
        %v430 = vlaneseq
        %v431 = vshrl.u32 %v430, 7
        %v432 = vsub.s32 %v429, %v431
        %v433 = vrot.slane %v411, %v432
        %v435 = vunpack.c.l.s4 1966171168
        %v436 = vunpack.c.0.s8 %v435
        %v437 = vlaneseq
        %v438 = vshrl.u32 %v437, 7
        %v439 = vsub.s32 %v436, %v438
        %v440 = vrot.slane %v412, %v439
        %v441 = vcombine.high %v419, %v419
        %v442 = vcombine.high %v426, %v426
        %v443 = vcombine.high %v433, %v433
        %v444 = vcombine.high %v440, %v440
        %v581 = vunpack.c.l.b16 %v267
        %v582 = vunpack.c.l.b16 %v268
        %v583 = vunpack.c.l.b16 %v269
        %v584 = vunpack.c.l.b16 %v270
        %v585 = vunpack.c.l.b16 %v271
        %v586 = vunpack.c.l.b16 %v272
        %v587 = vunpack.c.l.b16 %v273
        %v588 = vunpack.c.l.b16 %v274
        %v589 = vunpack.c.l.b16 %v275
        %v590 = vunpack.c.l.b16 %v276
        %v591 = vunpack.c.l.b16 %v277
        %v592 = vunpack.c.l.b16 %v278
        %v593 = vunpack.c.l.b16 %v279
        %v594 = vunpack.c.l.b16 %v280
        %v595 = vunpack.c.l.b16 %v281
        %v596 = vunpack.c.l.b16 %v282
        %v597 = vunpack.c.l.b16 %v283
        %v598 = vunpack.c.l.b16 %v284
        %v599 = vunpack.c.l.b16 %v285
        %v600 = vunpack.c.l.b16 %v286
        %v601 = vunpack.c.l.b16 %v287
        %v602 = vunpack.c.l.b16 %v288
        %v603 = vunpack.c.l.b16 %v289
        %v604 = vunpack.c.l.b16 %v290
        %v605 = vunpack.c.l.b16 %v291
        %v606 = vunpack.c.l.b16 %v292
        %v607 = vunpack.c.l.b16 %v293
        %v608 = vunpack.c.l.b16 %v294
        %v609 = vunpack.c.l.b16 %v295
        %v610 = vunpack.c.l.b16 %v296
        %v611 = vunpack.c.l.b16 %v297
        %v612 = vunpack.c.l.b16 %v298
        %v613 = vunpack.c.l.b16 %v299
        %v614 = vunpack.c.l.b16 %v300
        %v615 = vunpack.c.l.b16 %v301
        %v616 = vunpack.c.l.b16 %v302
        %v617 = vunpack.c.l.b16 %v303
        %v618 = vunpack.c.l.b16 %v304
        %v619 = vunpack.c.l.b16 %v305
        %v620 = vunpack.c.l.b16 %v306
        %v621 = vunpack.c.l.b16 %v307
        %v622 = vunpack.c.l.b16 %v308
        %v623 = vunpack.c.l.b16 %v309
        %v624 = vunpack.c.l.b16 %v310
        %v625 = vunpack.c.l.b16 %v311
        %v626 = vunpack.c.l.b16 %v312
        %v627 = vunpack.c.l.b16 %v313
        %v628 = vunpack.c.l.b16 %v314
        %v629 = vunpack.c.l.b16 %v315
        %v630 = vunpack.c.l.b16 %v316
        %v631 = vunpack.c.l.b16 %v317
        %v632 = vunpack.c.l.b16 %v318
        %v633 = vunpack.c.l.b16 %v319
        %v634 = vunpack.c.l.b16 %v320
        %v635 = vunpack.c.l.b16 %v321
        %v636 = vunpack.c.l.b16 %v322
        %v637 = vunpack.c.l.b16 %v323
        %v638 = vunpack.c.l.b16 %v324
        %v639 = vunpack.c.l.b16 %v325
        %v640 = vunpack.c.l.b16 %v326
        %v641 = vunpack.c.l.b16 %v327
        %v642 = vunpack.c.l.b16 %v328
        %v643 = vunpack.c.l.b16 %v329
        %v644 = vunpack.c.l.b16 %v330
        %v645 = vunpack.c.l.b16 %v331
        %v646 = vunpack.c.l.b16 %v332
        %v647 = vunpack.c.l.b16 %v333
        %v648 = vunpack.c.l.b16 %v334
        %v649 = vunpack.c.l.b16 %v335
        %v650 = vunpack.c.l.b16 %v336
        %v651 = vunpack.c.l.b16 %v337
        %v652 = vunpack.c.l.b16 %v338
        %v653 = vunpack.c.l.b16 %v339
        %v654 = vunpack.c.l.b16 %v340
        %v655 = vunpack.c.l.b16 %v341
        %v656 = vunpack.c.l.b16 %v342
        %v657 = vunpack.c.l.b16 %v343
        %v658 = vunpack.c.l.b16 %v344
        %v659 = vunpack.c.l.b16 %v345
        %v660 = vunpack.c.l.b16 %v346
        %v661 = vunpack.c.l.b16 %v347
        %v662 = vunpack.c.l.b16 %v348
        %v663 = vunpack.c.l.b16 %v349
        %v664 = vunpack.c.l.b16 %v350
        %v665 = vunpack.c.l.b16 %v351
        %v666 = vunpack.c.l.b16 %v352
        %v667 = vunpack.c.l.b16 %v353
        %v668 = vunpack.c.l.b16 %v354
        %v669 = vunpack.c.l.b16 %v355
        %v670 = vunpack.c.l.b16 %v356
        %v671 = vunpack.c.l.b16 %v357
        %v672 = vunpack.c.l.b16 %v358
        %v673 = vunpack.c.l.b16 %v359
        %v674 = vunpack.c.l.b16 %v360
        %v675 = vunpack.c.l.b16 %v361
        %v676 = vunpack.c.l.b16 %v362
        %v677 = vunpack.c.l.b16 %v363
        %v678 = vunpack.c.l.b16 %v364
        %v679 = vunpack.c.l.b16 %v365
        %v680 = vunpack.c.l.b16 %v366
        %v681 = vunpack.c.l.b16 %v367
        %v682 = vunpack.c.l.b16 %v368
        %v683 = vunpack.c.l.b16 %v369
        %v684 = vunpack.c.l.b16 %v370
        %v685 = vunpack.c.l.b16 %v371
        %v686 = vunpack.c.l.b16 %v372
        %v687 = vunpack.c.l.b16 %v373
        %v688 = vunpack.c.l.b16 %v374
        %v689 = vunpack.c.l.b16 %v375
        %v690 = vunpack.c.l.b16 %v376
        %v691 = vunpack.c.l.b16 %v377
        %v692 = vunpack.c.l.b16 %v378
        %v693 = vunpack.c.l.b16 %v379
        %v694 = vunpack.c.l.b16 %v380
        %v695 = vunpack.c.l.b16 %v381
        %v696 = vunpack.c.l.b16 %v382
        %v697 = vunpack.c.l.b16 %v383
        %v698 = vunpack.c.l.b16 %v384
        %v699 = vunpack.c.l.b16 %v385
        %v700 = vunpack.c.l.b16 %v386
        %v701 = vunpack.c.l.b16 %v387
        %v702 = vunpack.c.l.b16 %v388
        %v703 = vunpack.c.l.b16 %v389
        %v704 = vunpack.c.l.b16 %v390
        %v705 = vunpack.c.l.b16 %v391
        %v706 = vunpack.c.l.b16 %v392
        %v707 = vunpack.c.l.b16 %v393
        %v708 = vunpack.c.l.b16 %v394
        %v709 = vpack.c.b16 %v582, %v581
        %v710 = vpack.c.b16 %v584, %v583
        %v711 = vpack.c.b16 %v586, %v585
        %v712 = vpack.c.b16 %v588, %v587
        %v713 = vpack.c.b16 %v590, %v589
        %v714 = vpack.c.b16 %v592, %v591
        %v715 = vpack.c.b16 %v594, %v593
        %v716 = vpack.c.b16 %v596, %v595
        %v717 = vpack.c.b16 %v598, %v597
        %v718 = vpack.c.b16 %v600, %v599
        %v719 = vpack.c.b16 %v602, %v601
        %v720 = vpack.c.b16 %v604, %v603
        %v721 = vpack.c.b16 %v606, %v605
        %v722 = vpack.c.b16 %v608, %v607
        %v723 = vpack.c.b16 %v610, %v609
        %v724 = vpack.c.b16 %v612, %v611
        %v725 = vpack.c.b16 %v614, %v613
        %v726 = vpack.c.b16 %v616, %v615
        %v727 = vpack.c.b16 %v618, %v617
        %v728 = vpack.c.b16 %v620, %v619
        %v729 = vpack.c.b16 %v622, %v621
        %v730 = vpack.c.b16 %v624, %v623
        %v731 = vpack.c.b16 %v626, %v625
        %v732 = vpack.c.b16 %v628, %v627
        %v733 = vpack.c.b16 %v630, %v629
        %v734 = vpack.c.b16 %v632, %v631
        %v735 = vpack.c.b16 %v634, %v633
        %v736 = vpack.c.b16 %v636, %v635
        %v737 = vpack.c.b16 %v638, %v637
        %v738 = vpack.c.b16 %v640, %v639
        %v739 = vpack.c.b16 %v642, %v641
        %v740 = vpack.c.b16 %v644, %v643
        %v741 = vpack.c.b16 %v646, %v645
        %v742 = vpack.c.b16 %v648, %v647
        %v743 = vpack.c.b16 %v650, %v649
        %v744 = vpack.c.b16 %v652, %v651
        %v745 = vpack.c.b16 %v654, %v653
        %v746 = vpack.c.b16 %v656, %v655
        %v747 = vpack.c.b16 %v658, %v657
        %v748 = vpack.c.b16 %v660, %v659
        %v749 = vpack.c.b16 %v662, %v661
        %v750 = vpack.c.b16 %v664, %v663
        %v751 = vpack.c.b16 %v666, %v665
        %v752 = vpack.c.b16 %v668, %v667
        %v753 = vpack.c.b16 %v670, %v669
        %v754 = vpack.c.b16 %v672, %v671
        %v755 = vpack.c.b16 %v674, %v673
        %v756 = vpack.c.b16 %v676, %v675
        %v757 = vpack.c.b16 %v678, %v677
        %v758 = vpack.c.b16 %v680, %v679
        %v759 = vpack.c.b16 %v682, %v681
        %v760 = vpack.c.b16 %v684, %v683
        %v761 = vpack.c.b16 %v686, %v685
        %v762 = vpack.c.b16 %v688, %v687
        %v763 = vpack.c.b16 %v690, %v689
        %v764 = vpack.c.b16 %v692, %v691
        %v765 = vpack.c.b16 %v694, %v693
        %v766 = vpack.c.b16 %v696, %v695
        %v767 = vpack.c.b16 %v698, %v697
        %v768 = vpack.c.b16 %v700, %v699
        %v769 = vpack.c.b16 %v702, %v701
        %v770 = vpack.c.b16 %v704, %v703
        %v771 = vpack.c.b16 %v706, %v705
        %v772 = vpack.c.b16 %v708, %v707
        %837 = vmatprep.subr.bf16.mxu0 0
        %838 = vmatpush1.bf16.msra.mxu0 %v709
        %839 = vmatprep.subr.bf16.mxu0 0
        %840 = vmatpush1.bf16.msra.mxu0 %v710
        %841 = vmatprep.subr.bf16.mxu0 0
        %842 = vmatpush1.bf16.msra.mxu0 %v711
        %843 = vmatprep.subr.bf16.mxu0 0
        %844 = vmatpush1.bf16.msra.mxu0 %v712
        %845 = vmatprep.subr.bf16.mxu0 0
        %846 = vmatpush1.bf16.msra.mxu0 %v713
        %847 = vmatprep.subr.bf16.mxu0 0
        %848 = vmatpush1.bf16.msra.mxu0 %v714
        %849 = vmatprep.subr.bf16.mxu0 0
        %850 = vmatpush1.bf16.msra.mxu0 %v715
        %851 = vmatprep.subr.bf16.mxu0 0
        %852 = vmatpush1.bf16.msra.mxu0 %v716
        %853 = vmatprep.subr.bf16.mxu0 0
        %854 = vmatpush1.bf16.msra.mxu0 %v717
        %855 = vmatprep.subr.bf16.mxu0 0
        %856 = vmatpush1.bf16.msra.mxu0 %v718
        %857 = vmatprep.subr.bf16.mxu0 0
        %858 = vmatpush1.bf16.msra.mxu0 %v719
        %859 = vmatprep.subr.bf16.mxu0 0
        %860 = vmatpush1.bf16.msra.mxu0 %v720
        %861 = vmatprep.subr.bf16.mxu0 0
        %862 = vmatpush1.bf16.msra.mxu0 %v721
        %863 = vmatprep.subr.bf16.mxu0 0
        %864 = vmatpush1.bf16.msra.mxu0 %v722
        %865 = vmatprep.subr.bf16.mxu0 0
        %866 = vmatpush1.bf16.msra.mxu0 %v723
        %867 = vmatprep.subr.bf16.mxu0 0
        %868 = vmatpush1.bf16.msra.mxu0 %v724
        %869 = vmatprep.mubr.bf16.mxu0 %v433
        %870 = vmatmul.mubr.bf16.gmra.mrb[0].mxu0 %v419
        %v871 = vpop.f32.mrb[0].mxu0
        %v872 = vadd.f32 0.0, %v871
        %v873 = vpop.f32.mrb[0].mxu0
        %v874 = vpop.f32.mrb[0].mxu0
        %v875 = vpop.f32.mrb[0].mxu0
        %876 = vdwg.mxu0
        %877 = vmatprep.subr.bf16.mxu0 0
        %878 = vmatpush1.bf16.msra.mxu0 %v725
        %879 = vmatprep.subr.bf16.mxu0 0
        %880 = vmatpush1.bf16.msra.mxu0 %v726
        %881 = vmatprep.subr.bf16.mxu0 0
        %882 = vmatpush1.bf16.msra.mxu0 %v727
        %883 = vmatprep.subr.bf16.mxu0 0
        %884 = vmatpush1.bf16.msra.mxu0 %v728
        %885 = vmatprep.subr.bf16.mxu0 0
        %886 = vmatpush1.bf16.msra.mxu0 %v729
        %887 = vmatprep.subr.bf16.mxu0 0
        %888 = vmatpush1.bf16.msra.mxu0 %v730
        %889 = vmatprep.subr.bf16.mxu0 0
        %890 = vmatpush1.bf16.msra.mxu0 %v731
        %891 = vmatprep.subr.bf16.mxu0 0
        %892 = vmatpush1.bf16.msra.mxu0 %v732
        %893 = vmatprep.subr.bf16.mxu0 0
        %894 = vmatpush1.bf16.msra.mxu0 %v733
        %895 = vmatprep.subr.bf16.mxu0 0
        %896 = vmatpush1.bf16.msra.mxu0 %v734
        %897 = vmatprep.subr.bf16.mxu0 0
        %898 = vmatpush1.bf16.msra.mxu0 %v735
        %899 = vmatprep.subr.bf16.mxu0 0
        %900 = vmatpush1.bf16.msra.mxu0 %v736
        %901 = vmatprep.subr.bf16.mxu0 0
        %902 = vmatpush1.bf16.msra.mxu0 %v737
        %903 = vmatprep.subr.bf16.mxu0 0
        %904 = vmatpush1.bf16.msra.mxu0 %v738
        %905 = vmatprep.subr.bf16.mxu0 0
        %906 = vmatpush1.bf16.msra.mxu0 %v739
        %907 = vmatprep.subr.bf16.mxu0 0
        %908 = vmatpush1.bf16.msra.mxu0 %v740
        %909 = vmatprep.mubr.bf16.mxu0 %v443
        %910 = vmatmul.mubr.bf16.gmra.mrb[0].mxu0 %v441
        %v911 = vpop.f32.mrb[0].mxu0
        %v912 = vadd.f32 %v872, %v911
        %v913 = vpop.f32.mrb[0].mxu0
        %v914 = vpop.f32.mrb[0].mxu0
        %v915 = vpop.f32.mrb[0].mxu0
        %916 = vdwg.mxu0
        %917 = vmatprep.subr.bf16.mxu0 0
        %918 = vmatpush1.bf16.msra.mxu0 %v741
        %919 = vmatprep.subr.bf16.mxu0 0
        %920 = vmatpush1.bf16.msra.mxu0 %v742
        %921 = vmatprep.subr.bf16.mxu0 0
        %922 = vmatpush1.bf16.msra.mxu0 %v743
        %923 = vmatprep.subr.bf16.mxu0 0
        %924 = vmatpush1.bf16.msra.mxu0 %v744
        %925 = vmatprep.subr.bf16.mxu0 0
        %926 = vmatpush1.bf16.msra.mxu0 %v745
        %927 = vmatprep.subr.bf16.mxu0 0
        %928 = vmatpush1.bf16.msra.mxu0 %v746
        %929 = vmatprep.subr.bf16.mxu0 0
        %930 = vmatpush1.bf16.msra.mxu0 %v747
        %931 = vmatprep.subr.bf16.mxu0 0
        %932 = vmatpush1.bf16.msra.mxu0 %v748
        %933 = vmatprep.subr.bf16.mxu0 0
        %934 = vmatpush1.bf16.msra.mxu0 %v749
        %935 = vmatprep.subr.bf16.mxu0 0
        %936 = vmatpush1.bf16.msra.mxu0 %v750
        %937 = vmatprep.subr.bf16.mxu0 0
        %938 = vmatpush1.bf16.msra.mxu0 %v751
        %939 = vmatprep.subr.bf16.mxu0 0
        %940 = vmatpush1.bf16.msra.mxu0 %v752
        %941 = vmatprep.subr.bf16.mxu0 0
        %942 = vmatpush1.bf16.msra.mxu0 %v753
        %943 = vmatprep.subr.bf16.mxu0 0
        %944 = vmatpush1.bf16.msra.mxu0 %v754
        %945 = vmatprep.subr.bf16.mxu0 0
        %946 = vmatpush1.bf16.msra.mxu0 %v755
        %947 = vmatprep.subr.bf16.mxu0 0
        %948 = vmatpush1.bf16.msra.mxu0 %v756
        %949 = vmatprep.mubr.bf16.mxu0 %v440
        %950 = vmatmul.mubr.bf16.gmra.mrb[0].mxu0 %v426
        %v951 = vpop.f32.mrb[0].mxu0
        %v952 = vadd.f32 %v912, %v951
        %v953 = vpop.f32.mrb[0].mxu0
        %v954 = vpop.f32.mrb[0].mxu0
        %v955 = vpop.f32.mrb[0].mxu0
        %956 = vdwg.mxu0
        %957 = vmatprep.subr.bf16.mxu0 0
        %958 = vmatpush1.bf16.msra.mxu0 %v757
        %959 = vmatprep.subr.bf16.mxu0 0
        %960 = vmatpush1.bf16.msra.mxu0 %v758
        %961 = vmatprep.subr.bf16.mxu0 0
        %962 = vmatpush1.bf16.msra.mxu0 %v759
        %963 = vmatprep.subr.bf16.mxu0 0
        %964 = vmatpush1.bf16.msra.mxu0 %v760
        %965 = vmatprep.subr.bf16.mxu0 0
        %966 = vmatpush1.bf16.msra.mxu0 %v761
        %967 = vmatprep.subr.bf16.mxu0 0
        %968 = vmatpush1.bf16.msra.mxu0 %v762
        %969 = vmatprep.subr.bf16.mxu0 0
        %970 = vmatpush1.bf16.msra.mxu0 %v763
        %971 = vmatprep.subr.bf16.mxu0 0
        %972 = vmatpush1.bf16.msra.mxu0 %v764
        %973 = vmatprep.subr.bf16.mxu0 0
        %974 = vmatpush1.bf16.msra.mxu0 %v765
        %975 = vmatprep.subr.bf16.mxu0 0
        %976 = vmatpush1.bf16.msra.mxu0 %v766
        %977 = vmatprep.subr.bf16.mxu0 0
        %978 = vmatpush1.bf16.msra.mxu0 %v767
        %979 = vmatprep.subr.bf16.mxu0 0
        %980 = vmatpush1.bf16.msra.mxu0 %v768
        %981 = vmatprep.subr.bf16.mxu0 0
        %982 = vmatpush1.bf16.msra.mxu0 %v769
        %983 = vmatprep.subr.bf16.mxu0 0
        %984 = vmatpush1.bf16.msra.mxu0 %v770
        %985 = vmatprep.subr.bf16.mxu0 0
        %986 = vmatpush1.bf16.msra.mxu0 %v771
        %987 = vmatprep.subr.bf16.mxu0 0
        %988 = vmatpush1.bf16.msra.mxu0 %v772
        %989 = vmatprep.mubr.bf16.mxu0 %v444
        %990 = vmatmul.mubr.bf16.gmra.mrb[0].mxu0 %v442
        %v991 = vpop.f32.mrb[0].mxu0
        %v992 = vadd.f32 %v952, %v991
        %v993 = vpop.f32.mrb[0].mxu0
        %v994 = vpop.f32.mrb[0].mxu0
        %v995 = vpop.f32.mrb[0].mxu0
        %996 = vdwg.mxu0
        %v997 = vadd.f32 %v265, %v992
        %998 = vst [vmem:[#allocation2] sm:$0x3] %v997
        // Predicated region
        $region49: #{cnn_feature_extractor.5} parent=31 // pred_check
          %p999 = pneg %p260
        $region50: #{cnn_feature_extractor.5} parent=31 // pred_check_branch
          %1001 = sbr.rel (%p999) target = $region52
        $region51: #{cnn_feature_extractor.5} parent=31 // pred_region
          %v1002 = vld [vmem:[#allocation2] sm:$0x3]
          %v1003 = vld [vmem:[%s230] sm:$0x1]
          %v1005 = vlaneseq
          %v1006 = vshrl.u32 %v1005, 7
          %v1007 = vsub.s32 0, %v1006
          %v1008 = vrot.slane %v1003, %v1007
          %v1010 = vadd.f32 %v1002, %v1008
          %v1011 = vmax.f32 %v1010, 0.0
          %1012 = vst [vmem:[%s256] sm:$0x3] %v1011
        $region52: #{cnn_feature_extractor.5} parent=31 // pred_fallthru
          _
        %s1013 = sand.u32 %s121, 1
        %s1014 = scalar_lea.sflag [#allocation5], %s1013
        %s1015 = sand.u32 %s121, 1
        %s1016 = smul.addr %s1015, 2
        %s1017 = scalar_lea.vmem [#allocation9], %s1016
        // Predicated region
        $region53: #{cnn_feature_extractor.5} parent=31 // pred_check
          %p1018 = pneg %p131
        $region54: #{cnn_feature_extractor.5} parent=31 // pred_check_branch
          %1020 = sbr.rel (%p1018) target = $region56
        $region55: #{cnn_feature_extractor.5} parent=31 // pred_region
          %s1022 = ssub.s32 32, 32
          %1023 = vsyncadd %s1014, %s1022
          %s1024 = smul.addr %s25, 32
          %s1025 = scalar_lea.hbm %s3, %s1024
          %s1027 = sshll.u32 %s1017, 4
          %s1028 = int_to_ptr.vmem [resolvable:$true] %s1027
          %1030 = dma.vmem_to_hbm [thread:$0]  %s1028, 32, %s1025, %s1014
        $region56: #{cnn_feature_extractor.5} parent=31 // pred_fallthru
          _
      $region32: #{cnn_feature_extractor.5} parent=5 // pred_fallthru
        _
      %p1031 = scmp.le.s32.totalorder 2, %s16
      // Predicated region
      $region57: #{cnn_feature_extractor.5} parent=5 // pred_check
        %p1032 = pneg %p1031
      $region58: #{cnn_feature_extractor.5} parent=5 // pred_check_branch
        %1034 = sbr.rel (%p1032) target = $region60
      $region59: #{cnn_feature_extractor.5} parent=5 // pred_region
        %s1035 = ssub.s32 %s16, 2
        // Predicated region
        $region61: #{cnn_feature_extractor.5} parent=59 // pred_check
          %p1036 = pneg %p137
        $region62: #{cnn_feature_extractor.5} parent=59 // pred_check_branch
          %1038 = sbr.rel (%p1036) target = $region64
        $region63: #{cnn_feature_extractor.5} parent=59 // pred_region
          %s1039 = sand.u32 %s122, 1
          %s1040 = scalar_lea.sflag [#allocation5], %s1039
          %s1041 = sand.u32 %s122, 1
          %s1042 = smul.addr %s1041, 2
          %s1043 = scalar_lea.vmem [#allocation9], %s1042
          %1044 = dma.done %s1040, 32
        $region64: #{cnn_feature_extractor.5} parent=59 // pred_fallthru
          _
      $region60: #{cnn_feature_extractor.5} parent=5 // pred_fallthru
        _
    $region6: #{cnn_feature_extractor.5} parent=1 // loop_footer
      %s20 = sadd.s32 1, %s16
    $region7: #{cnn_feature_extractor.5} parent=1 // loop_footer_branch
      %15 = sbr.rel target = $region3
    $region8: #{cnn_feature_extractor.5} parent=1 // loop_exit
      _
    %1045 = vsyncpa [#allocation4], 1
    %s1046 = scalar_lea.sflag [#allocation4], 1
    %1047 = vsyncpa %s1046, 1
    %1048 = vsyncpa [#allocation7], 1
    %s1049 = scalar_lea.sflag [#allocation7], 1
    %1050 = vsyncpa %s1049, 1
    %1051 = vsyncpa [#allocation5], 1
    %s1052 = scalar_lea.sflag [#allocation5], 1
    %1053 = vsyncpa %s1052, 1

// kernel: cnn_feature_extractor.4
$region0: #{cnn_feature_extractor.4}
  #allocation0 [shape = 'u32[]', space=smem, size = 0x4, offset = 0x4, fixed_abs, tag = 'smem constant byte address 0x4 - core index']
  #allocation1 [shape = 'u32[144,128]{1,0:T(1,128)}', space=vmem, size = 0x12000, scoped, tag = 'internal scratch']
  %s0 = inlined_call_operand.vmem [shape: bf16[2,2,160,7], index: 0, kind: input, shape index: {}]
  %s1 = inlined_call_operand.vmem [shape: bf16[3,256,160], index: 1, kind: input, shape index: {}]
  %s2 = inlined_call_operand.vmem [shape: f32[128,1], index: 2, kind: input, shape index: {}]
  %s3 = inlined_call_operand.vmem [shape: bf16[2,128,6], index: 3, kind: output, shape index: {}]
  %s4 = sld [smem:[#allocation0]]
  $region45: #{cnn_feature_extractor.4} parent=0
    _
  %s6 = ssub.s32 1, %s4
  %s7 = scalar_select 0, %s6, %s4
  loop: start=0, step=1, limit=4
  $region2: #{cnn_feature_extractor.4} parent=0 // loop_pre_header
    _
  $region3: #{cnn_feature_extractor.4} parent=0 // loop_header
    %s9 = sphi 0, %s13
    %p10 = scmp.ge.s32.totalorder %s9, 4
    %s16 = sphi 0, %s28
    %s17 = sphi 0, %s24
    %s18 = sphi 0, %s16
    %s19 = sphi 0, %s17
    %s20 = sphi 0, %s18
    %s21 = sphi 0, %s19
    %s31 = sphi 0, %s33
    %s34 = sphi 0, %s31
    %s35 = sphi 0, %s34
    %s51 = sphi 0, %s35
    %s55 = sphi 0, %s55
    %s57 = sphi 0, %s55
    %s58 = sphi 0, %s57
    %s72 = sphi 0, %s58
    %s76 = sphi 0, %s76
    %s78 = sphi 0, %s76
    %s79 = sphi 0, %s78
    %s93 = sphi 0, %s79
    %s101 = sphi 0, %s103
    %s104 = sphi 0, %s101
    %s105 = sphi 0, %s104
    %s121 = sphi 0, %s105
  $region4: #{cnn_feature_extractor.4} parent=0 // loop_header_branch
    %12 = sbr.rel (%p10) target = $region8
  $region5: #{cnn_feature_extractor.4} parent=0 // loop_body
    %s14 = ssub.s32 %s9, 1
    %s15 = ssub.s32 %s9, 2
    %s22 = sadd.s32 1, %s17
    %p23 = scmp.ge.s32.totalorder %s22, 1
    %s24 = scalar_select %p23, 0, %s22
    %s25 = sadd.s32 1, %s16
    %s26 = scalar_select %p23, %s25, %s16
    %p27 = scmp.ge.s32.totalorder %s26, 2
    %s28 = scalar_select %p27, 0, %s26
    %s29 = ssub.s32 %s16, %s28
    %p30 = scmp.eq.s32.totalorder %s29, 0
    %s32 = sadd.s32 %s31, 1
    %s33 = scalar_select %p30, %s31, %s32
    %p36 = pneg %p30
    %p37 = scmp.eq.s32.totalorder %s9, 1
    %p38 = por %p36, %p37
    %p39 = scmp.ne.s32.totalorder %s31, %s34
    %p40 = scmp.eq.s32.totalorder %s9, 0
    %p41 = por %p39, %p40
    %p42 = scmp.ne.s32.totalorder %s31, %s34
    %p43 = scmp.eq.s32.totalorder %s14, 1
    %p44 = por %p42, %p43
    %p45 = scmp.ne.s32.totalorder %s34, %s35
    %p46 = scmp.eq.s32.totalorder %s14, 0
    %p47 = por %p45, %p46
    %p48 = scmp.ne.s32.totalorder %s34, %s35
    %p49 = scmp.eq.s32.totalorder %s15, 1
    %p50 = por %p48, %p49
    %p52 = scmp.ne.s32.totalorder %s35, %s51
    %p53 = scmp.eq.s32.totalorder %s15, 0
    %p54 = por %p52, %p53
    %s56 = sadd.s32 %s55, 1
    %p59 = scmp.eq.s32.totalorder %s9, 1
    %p60 = scmp.ne.s32.totalorder %s55, %s57
    %p61 = scmp.eq.s32.totalorder %s9, 0
    %p62 = por %p60, %p61
    %p63 = scmp.ne.s32.totalorder %s55, %s57
    %p64 = scmp.eq.s32.totalorder %s14, 1
    %p65 = por %p63, %p64
    %p66 = scmp.ne.s32.totalorder %s57, %s58
    %p67 = scmp.eq.s32.totalorder %s14, 0
    %p68 = por %p66, %p67
    %p69 = scmp.ne.s32.totalorder %s57, %s58
    %p70 = scmp.eq.s32.totalorder %s15, 1
    %p71 = por %p69, %p70
    %p73 = scmp.ne.s32.totalorder %s58, %s72
    %p74 = scmp.eq.s32.totalorder %s15, 0
    %p75 = por %p73, %p74
    %s77 = sadd.s32 %s76, 1
    %p80 = scmp.eq.s32.totalorder %s9, 1
    %p81 = scmp.ne.s32.totalorder %s76, %s78
    %p82 = scmp.eq.s32.totalorder %s9, 0
    %p83 = por %p81, %p82
    %p84 = scmp.ne.s32.totalorder %s76, %s78
    %p85 = scmp.eq.s32.totalorder %s14, 1
    %p86 = por %p84, %p85
    %p87 = scmp.ne.s32.totalorder %s78, %s79
    %p88 = scmp.eq.s32.totalorder %s14, 0
    %p89 = por %p87, %p88
    %p90 = scmp.ne.s32.totalorder %s78, %s79
    %p91 = scmp.eq.s32.totalorder %s15, 1
    %p92 = por %p90, %p91
    %p94 = scmp.ne.s32.totalorder %s79, %s93
    %p95 = scmp.eq.s32.totalorder %s15, 0
    %p96 = por %p94, %p95
    %s97 = ssub.s32 %s16, %s28
    %s98 = ssub.s32 %s17, %s24
    %s99 = sor.u32 %s97, %s98
    %p100 = scmp.eq.s32.totalorder %s99, 0
    %s102 = sadd.s32 %s101, 1
    %s103 = scalar_select %p100, %s101, %s102
    %p106 = pneg %p100
    %p107 = scmp.eq.s32.totalorder %s9, 1
    %p108 = por %p106, %p107
    %p109 = scmp.ne.s32.totalorder %s101, %s104
    %p110 = scmp.eq.s32.totalorder %s9, 0
    %p111 = por %p109, %p110
    %p112 = scmp.ne.s32.totalorder %s101, %s104
    %p113 = scmp.eq.s32.totalorder %s14, 1
    %p114 = por %p112, %p113
    %p115 = scmp.ne.s32.totalorder %s104, %s105
    %p116 = scmp.eq.s32.totalorder %s14, 0
    %p117 = por %p115, %p116
    %p118 = scmp.ne.s32.totalorder %s104, %s105
    %p119 = scmp.eq.s32.totalorder %s15, 1
    %p120 = por %p118, %p119
    %p122 = scmp.ne.s32.totalorder %s105, %s121
    %p123 = scmp.eq.s32.totalorder %s15, 0
    %p124 = por %p122, %p123
    %p125 = scmp.le.s32.totalorder 1, %s9
    %p126 = scmp.lt.s32.totalorder %s9, 3
    %p127 = pnand %p125, %p126
    %p128 = pneg %p127
    // Predicated region
    $region9: #{cnn_feature_extractor.4} parent=5 // pred_check
      _
    $region10: #{cnn_feature_extractor.4} parent=5 // pred_check_branch
      %130 = sbr.rel (%p127) target = $region12
    $region11: #{cnn_feature_extractor.4} parent=5 // pred_region
      %s131 = ssub.s32 %s9, 1
      // Predicated region
      $region13: #{cnn_feature_extractor.4} parent=11 // pred_check
        %p132 = pneg %p68
      $region14: #{cnn_feature_extractor.4} parent=11 // pred_check_branch
        %134 = sbr.rel (%p132) target = $region16
      $region15: #{cnn_feature_extractor.4} parent=11 // pred_region
        _
      $region16: #{cnn_feature_extractor.4} parent=11 // pred_fallthru
        _
      // Predicated region
      $region17: #{cnn_feature_extractor.4} parent=11 // pred_check
        %p135 = pneg %p89
      $region18: #{cnn_feature_extractor.4} parent=11 // pred_check_branch
        %137 = sbr.rel (%p135) target = $region20
      $region19: #{cnn_feature_extractor.4} parent=11 // pred_region
        _
      $region20: #{cnn_feature_extractor.4} parent=11 // pred_fallthru
        _
    $region12: #{cnn_feature_extractor.4} parent=5 // pred_fallthru
      _
    %p138 = scmp.lt.s32.totalorder %s9, 2
    // Predicated region
    $region21: #{cnn_feature_extractor.4} parent=5 // pred_check
      %p139 = pneg %p138
    $region22: #{cnn_feature_extractor.4} parent=5 // pred_check_branch
      %141 = sbr.rel (%p139) target = $region24
    $region23: #{cnn_feature_extractor.4} parent=5 // pred_region
      // Predicated region
      $region25: #{cnn_feature_extractor.4} parent=23 // pred_check
        %p142 = pneg %p41
      $region26: #{cnn_feature_extractor.4} parent=23 // pred_check_branch
        %144 = sbr.rel (%p142) target = $region28
      $region27: #{cnn_feature_extractor.4} parent=23 // pred_region
        %p145 = scmp.lt.s32.totalorder %s16, 1
        %s146 = scalar_select %p145, %s16, 1
        %s147 = smul.addr %s146, 40
        %s148 = smul.addr %s147, 4
        %s149 = scalar_lea.vmem %s0, %s148
      $region28: #{cnn_feature_extractor.4} parent=23 // pred_fallthru
        _
    $region24: #{cnn_feature_extractor.4} parent=5 // pred_fallthru
      _
    %p150 = scmp.le.s32.totalorder 1, %s9
    %p151 = scmp.lt.s32.totalorder %s9, 3
    %p152 = pnand %p150, %p151
    %p153 = pneg %p152
    // Predicated region
    $region29: #{cnn_feature_extractor.4} parent=5 // pred_check
      _
    $region30: #{cnn_feature_extractor.4} parent=5 // pred_check_branch
      %155 = sbr.rel (%p152) target = $region32
    $region31: #{cnn_feature_extractor.4} parent=5 // pred_region
      %s156 = ssub.s32 %s9, 1
      %p157 = scmp.lt.s32.totalorder %s18, 1
      %s158 = scalar_select %p157, %s18, 1
      %s159 = smul.addr %s158, 40
      %s160 = smul.addr %s159, 4
      %s161 = scalar_lea.vmem %s0, %s160
      %p162 = pneg %p47
      %p163 = pneg %p44
      %p164 = pneg %p68
      %p165 = pneg %p65
      %p166 = pneg %p89
      %p167 = pneg %p86
      %p168 = pneg %p117
      %p169 = pneg %p114
      %s170 = smul.u32 16, %s19
      %p171 = scmp.lt.s32.totalorder %s18, 1
      %s172 = scalar_select %p171, %s18, 1
      %p173 = scmp.lt.s32.totalorder %s170, 15
      %s174 = scalar_select %p173, %s170, 15
      %s175 = smul.addr %s172, 16
      %s176 = sadd.s32 %s174, %s175
      %s177 = smul.addr %s176, 4
      %s178 = scalar_lea.vmem %s3, %s177
      %p179 = scmp.lt.s32.totalorder %s18, 1
      %s180 = scalar_select %p179, %s18, 1
      %s181 = smul.addr %s180, 40
      %s182 = smul.addr %s181, 4
      %s183 = scalar_lea.vmem %s0, %s182
      %s184 = smul.u32 16, %s19
      %p185 = scmp.lt.s32.totalorder %s18, 1
      %s186 = scalar_select %p185, %s18, 1
      %p187 = scmp.lt.s32.totalorder %s184, 15
      %s188 = scalar_select %p187, %s184, 15
      %s189 = smul.addr %s186, 16
      %s190 = sadd.s32 %s188, %s189
      %s191 = smul.addr %s190, 4
      %s192 = scalar_lea.vmem %s3, %s191
      %s193 = smul.u32 16, %s19
      %s195 = smul.u32 %s19, 128
      %s196 = sshra.s32 %s195, 3
      %s197 = sand.u32 %s195, 7
      %s198 = smul.addr %s196, 4
      %s199 = scalar_lea.vmem %s183, %s198
      %v200 = vld [vmem:[%s199] sm:$0xf]
      %v201 = vld [vmem:[%s199 + $0x4] sm:$0xf]
      %v202 = vld [vmem:[%s199 + $0x8] sm:$0xf]
      %v203 = vld [vmem:[%s199 + $0xc] sm:$0xf]
      %v204 = vld [vmem:[%s199 + $0x10] sm:$0xf]
      %v205 = vld [vmem:[%s199 + $0x14] sm:$0xf]
      %v206 = vld [vmem:[%s199 + $0x18] sm:$0xf]
      %v207 = vld [vmem:[%s199 + $0x1c] sm:$0xf]
      %v208 = vld [vmem:[%s199 + $0x20] sm:$0xf]
      %v209 = vld [vmem:[%s199 + $0x24] sm:$0xf]
      %v210 = vld [vmem:[%s199 + $0x28] sm:$0xf]
      %v211 = vld [vmem:[%s199 + $0x2c] sm:$0xf]
      %v212 = vld [vmem:[%s199 + $0x30] sm:$0xf]
      %v213 = vld [vmem:[%s199 + $0x34] sm:$0xf]
      %v214 = vld [vmem:[%s199 + $0x38] sm:$0xf]
      %v215 = vld [vmem:[%s199 + $0x3c] sm:$0xf]
      %v216 = vld [vmem:[%s199 + $0x40] sm:$0xf]
      %v217 = vld [vmem:[%s199 + $0x44] sm:$0xf]
      %v218 = vld [vmem:[%s199 + $0x48] sm:$0xf]
      %v219 = vld [vmem:[%s199 + $0x4c] sm:$0xf]
      %s220 = sadd.s32 %s196, 20
      %s221 = smul.addr %s220, 4
      %s222 = scalar_lea.vmem %s183, %s221
      %v223 = vld [vmem:[%s222] sm:$0xf]
      %v224 = vld [vmem:[%s222 + $0x4] sm:$0xf]
      %v225 = vld [vmem:[%s222 + $0x8] sm:$0xf]
      %v226 = vld [vmem:[%s222 + $0xc] sm:$0xf]
      %v227 = vld [vmem:[%s222 + $0x10] sm:$0xf]
      %v228 = vld [vmem:[%s222 + $0x14] sm:$0xf]
      %v229 = vld [vmem:[%s222 + $0x18] sm:$0xf]
      %v230 = vld [vmem:[%s222 + $0x1c] sm:$0xf]
      %v231 = vld [vmem:[%s222 + $0x20] sm:$0xf]
      %v232 = vld [vmem:[%s222 + $0x24] sm:$0xf]
      %v233 = vld [vmem:[%s222 + $0x28] sm:$0xf]
      %v234 = vld [vmem:[%s222 + $0x2c] sm:$0xf]
      %v235 = vld [vmem:[%s222 + $0x30] sm:$0xf]
      %v236 = vld [vmem:[%s222 + $0x34] sm:$0xf]
      %v237 = vld [vmem:[%s222 + $0x38] sm:$0xf]
      %v238 = vld [vmem:[%s222 + $0x3c] sm:$0xf]
      %v239 = vld [vmem:[%s222 + $0x40] sm:$0xf]
      %v240 = vld [vmem:[%s222 + $0x44] sm:$0xf]
      %v241 = vld [vmem:[%s222 + $0x48] sm:$0xf]
      %v242 = vld [vmem:[%s222 + $0x4c] sm:$0xf]
      %v243 = vld [vmem:[%s1] sm:$0xff]
      %v244 = vld [vmem:[%s1 + $0x8] sm:$0xff]
      %v245 = vld [vmem:[%s1 + $0x10] sm:$0xff]
      %v246 = vld [vmem:[%s1 + $0x18] sm:$0xff]
      %v247 = vld [vmem:[%s1 + $0x20] sm:$0xff]
      %v248 = vld [vmem:[%s1 + $0x28] sm:$0xff]
      %v249 = vld [vmem:[%s1 + $0x30] sm:$0xff]
      %v250 = vld [vmem:[%s1 + $0x38] sm:$0xff]
      %v251 = vld [vmem:[%s1 + $0x40] sm:$0xff]
      %v252 = vld [vmem:[%s1 + $0x48] sm:$0xff]
      %v253 = vld [vmem:[%s1 + $0x50] sm:$0xff]
      %v254 = vld [vmem:[%s1 + $0x58] sm:$0xff]
      %v255 = vld [vmem:[%s1 + $0x60] sm:$0xff]
      %v256 = vld [vmem:[%s1 + $0x68] sm:$0xff]
      %v257 = vld [vmem:[%s1 + $0x70] sm:$0xff]
      %v258 = vld [vmem:[%s1 + $0x78] sm:$0xff]
      %v259 = vld [vmem:[%s1 + $0x80] sm:$0xff]
      %v260 = vld [vmem:[%s1 + $0x88] sm:$0xff]
      %v261 = vld [vmem:[%s1 + $0x90] sm:$0xff]
      %v262 = vld [vmem:[%s1 + $0x98] sm:$0xff]
      %v263 = vld [vmem:[%s1 + $0xa0] sm:$0xff]
      %v264 = vld [vmem:[%s1 + $0xa8] sm:$0xff]
      %v265 = vld [vmem:[%s1 + $0xb0] sm:$0xff]
      %v266 = vld [vmem:[%s1 + $0xb8] sm:$0xff]
      %v267 = vld [vmem:[%s1 + $0xc0] sm:$0xff]
      %v268 = vld [vmem:[%s1 + $0xc8] sm:$0xff]
      %v269 = vld [vmem:[%s1 + $0xd0] sm:$0xff]
      %v270 = vld [vmem:[%s1 + $0xd8] sm:$0xff]
      %v271 = vld [vmem:[%s1 + $0xe0] sm:$0xff]
      %v272 = vld [vmem:[%s1 + $0xe8] sm:$0xff]
      %v273 = vld [vmem:[%s1 + $0xf0] sm:$0xff]
      %v274 = vld [vmem:[%s1 + $0xf8] sm:$0xff]
      %s275 = scalar_lea.vmem %s1, 256
      %v276 = vld [vmem:[%s275] sm:$0xff]
      %v277 = vld [vmem:[%s275 + $0x8] sm:$0xff]
      %v278 = vld [vmem:[%s275 + $0x10] sm:$0xff]
      %v279 = vld [vmem:[%s275 + $0x18] sm:$0xff]
      %v280 = vld [vmem:[%s275 + $0x20] sm:$0xff]
      %v281 = vld [vmem:[%s275 + $0x28] sm:$0xff]
      %v282 = vld [vmem:[%s275 + $0x30] sm:$0xff]
      %v283 = vld [vmem:[%s275 + $0x38] sm:$0xff]
      %v284 = vld [vmem:[%s275 + $0x40] sm:$0xff]
      %v285 = vld [vmem:[%s275 + $0x48] sm:$0xff]
      %v286 = vld [vmem:[%s275 + $0x50] sm:$0xff]
      %v287 = vld [vmem:[%s275 + $0x58] sm:$0xff]
      %v288 = vld [vmem:[%s275 + $0x60] sm:$0xff]
      %v289 = vld [vmem:[%s275 + $0x68] sm:$0xff]
      %v290 = vld [vmem:[%s275 + $0x70] sm:$0xff]
      %v291 = vld [vmem:[%s275 + $0x78] sm:$0xff]
      %v292 = vld [vmem:[%s275 + $0x80] sm:$0xff]
      %v293 = vld [vmem:[%s275 + $0x88] sm:$0xff]
      %v294 = vld [vmem:[%s275 + $0x90] sm:$0xff]
      %v295 = vld [vmem:[%s275 + $0x98] sm:$0xff]
      %v296 = vld [vmem:[%s275 + $0xa0] sm:$0xff]
      %v297 = vld [vmem:[%s275 + $0xa8] sm:$0xff]
      %v298 = vld [vmem:[%s275 + $0xb0] sm:$0xff]
      %v299 = vld [vmem:[%s275 + $0xb8] sm:$0xff]
      %v300 = vld [vmem:[%s275 + $0xc0] sm:$0xff]
      %v301 = vld [vmem:[%s275 + $0xc8] sm:$0xff]
      %v302 = vld [vmem:[%s275 + $0xd0] sm:$0xff]
      %v303 = vld [vmem:[%s275 + $0xd8] sm:$0xff]
      %v304 = vld [vmem:[%s275 + $0xe0] sm:$0xff]
      %v305 = vld [vmem:[%s275 + $0xe8] sm:$0xff]
      %v306 = vld [vmem:[%s275 + $0xf0] sm:$0xff]
      %v307 = vld [vmem:[%s275 + $0xf8] sm:$0xff]
      %s308 = scalar_lea.vmem %s1, 512
      %v309 = vld [vmem:[%s308] sm:$0xff]
      %v310 = vld [vmem:[%s308 + $0x8] sm:$0xff]
      %v311 = vld [vmem:[%s308 + $0x10] sm:$0xff]
      %v312 = vld [vmem:[%s308 + $0x18] sm:$0xff]
      %v313 = vld [vmem:[%s308 + $0x20] sm:$0xff]
      %v314 = vld [vmem:[%s308 + $0x28] sm:$0xff]
      %v315 = vld [vmem:[%s308 + $0x30] sm:$0xff]
      %v316 = vld [vmem:[%s308 + $0x38] sm:$0xff]
      %v317 = vld [vmem:[%s308 + $0x40] sm:$0xff]
      %v318 = vld [vmem:[%s308 + $0x48] sm:$0xff]
      %v319 = vld [vmem:[%s308 + $0x50] sm:$0xff]
      %v320 = vld [vmem:[%s308 + $0x58] sm:$0xff]
      %v321 = vld [vmem:[%s308 + $0x60] sm:$0xff]
      %v322 = vld [vmem:[%s308 + $0x68] sm:$0xff]
      %v323 = vld [vmem:[%s308 + $0x70] sm:$0xff]
      %v324 = vld [vmem:[%s308 + $0x78] sm:$0xff]
      %v325 = vld [vmem:[%s308 + $0x80] sm:$0xff]
      %v326 = vld [vmem:[%s308 + $0x88] sm:$0xff]
      %v327 = vld [vmem:[%s308 + $0x90] sm:$0xff]
      %v328 = vld [vmem:[%s308 + $0x98] sm:$0xff]
      %v329 = vld [vmem:[%s308 + $0xa0] sm:$0xff]
      %v330 = vld [vmem:[%s308 + $0xa8] sm:$0xff]
      %v331 = vld [vmem:[%s308 + $0xb0] sm:$0xff]
      %v332 = vld [vmem:[%s308 + $0xb8] sm:$0xff]
      %v333 = vld [vmem:[%s308 + $0xc0] sm:$0xff]
      %v334 = vld [vmem:[%s308 + $0xc8] sm:$0xff]
      %v335 = vld [vmem:[%s308 + $0xd0] sm:$0xff]
      %v336 = vld [vmem:[%s308 + $0xd8] sm:$0xff]
      %v337 = vld [vmem:[%s308 + $0xe0] sm:$0xff]
      %v338 = vld [vmem:[%s308 + $0xe8] sm:$0xff]
      %v339 = vld [vmem:[%s308 + $0xf0] sm:$0xff]
      %v340 = vld [vmem:[%s308 + $0xf8] sm:$0xff]
      %v373 = vunpack.c.l.b16 %v276
      %v374 = vunpack.c.h.b16 %v276
      %v375 = vunpack.c.l.b16 %v277
      %v376 = vunpack.c.h.b16 %v277
      %v377 = vunpack.c.l.b16 %v278
      %v378 = vunpack.c.h.b16 %v278
      %v379 = vunpack.c.l.b16 %v279
      %v380 = vunpack.c.h.b16 %v279
      %v381 = vunpack.c.l.b16 %v280
      %v382 = vunpack.c.h.b16 %v280
      %v383 = vunpack.c.l.b16 %v281
      %v384 = vunpack.c.h.b16 %v281
      %v385 = vunpack.c.l.b16 %v282
      %v386 = vunpack.c.h.b16 %v282
      %v387 = vunpack.c.l.b16 %v283
      %v388 = vunpack.c.h.b16 %v283
      %v389 = vunpack.c.l.b16 %v284
      %v390 = vunpack.c.h.b16 %v284
      %v391 = vunpack.c.l.b16 %v285
      %v392 = vunpack.c.h.b16 %v285
      %v393 = vunpack.c.l.b16 %v286
      %v394 = vunpack.c.h.b16 %v286
      %v395 = vunpack.c.l.b16 %v287
      %v396 = vunpack.c.h.b16 %v287
      %v397 = vunpack.c.l.b16 %v288
      %v398 = vunpack.c.h.b16 %v288
      %v399 = vunpack.c.l.b16 %v289
      %v400 = vunpack.c.h.b16 %v289
      %v401 = vunpack.c.l.b16 %v290
      %v402 = vunpack.c.h.b16 %v290
      %v403 = vunpack.c.l.b16 %v291
      %v404 = vunpack.c.h.b16 %v291
      %v405 = vunpack.c.l.b16 %v292
      %v406 = vunpack.c.h.b16 %v292
      %v407 = vunpack.c.l.b16 %v293
      %v408 = vunpack.c.h.b16 %v293
      %v409 = vunpack.c.l.b16 %v294
      %v410 = vunpack.c.h.b16 %v294
      %v411 = vunpack.c.l.b16 %v295
      %v412 = vunpack.c.h.b16 %v295
      %v413 = vunpack.c.l.b16 %v296
      %v414 = vunpack.c.h.b16 %v296
      %v415 = vunpack.c.l.b16 %v297
      %v416 = vunpack.c.h.b16 %v297
      %v417 = vunpack.c.l.b16 %v298
      %v418 = vunpack.c.h.b16 %v298
      %v419 = vunpack.c.l.b16 %v299
      %v420 = vunpack.c.h.b16 %v299
      %v421 = vunpack.c.l.b16 %v300
      %v422 = vunpack.c.h.b16 %v300
      %v423 = vunpack.c.l.b16 %v301
      %v424 = vunpack.c.h.b16 %v301
      %v425 = vunpack.c.l.b16 %v302
      %v426 = vunpack.c.h.b16 %v302
      %v427 = vunpack.c.l.b16 %v303
      %v428 = vunpack.c.h.b16 %v303
      %v429 = vunpack.c.l.b16 %v304
      %v430 = vunpack.c.h.b16 %v304
      %v431 = vunpack.c.l.b16 %v305
      %v432 = vunpack.c.h.b16 %v305
      %v433 = vunpack.c.l.b16 %v306
      %v434 = vunpack.c.h.b16 %v306
      %v435 = vunpack.c.l.b16 %v307
      %v436 = vunpack.c.h.b16 %v307
      %v437 = vpack.c.b16 %v375, %v373
      %v438 = vpack.c.b16 %v376, %v374
      %v439 = vpack.c.b16 %v379, %v377
      %v440 = vpack.c.b16 %v380, %v378
      %v441 = vpack.c.b16 %v383, %v381
      %v442 = vpack.c.b16 %v384, %v382
      %v443 = vpack.c.b16 %v387, %v385
      %v444 = vpack.c.b16 %v388, %v386
      %v445 = vpack.c.b16 %v391, %v389
      %v446 = vpack.c.b16 %v392, %v390
      %v447 = vpack.c.b16 %v395, %v393
      %v448 = vpack.c.b16 %v396, %v394
      %v449 = vpack.c.b16 %v399, %v397
      %v450 = vpack.c.b16 %v400, %v398
      %v451 = vpack.c.b16 %v403, %v401
      %v452 = vpack.c.b16 %v404, %v402
      %v453 = vpack.c.b16 %v407, %v405
      %v454 = vpack.c.b16 %v408, %v406
      %v455 = vpack.c.b16 %v411, %v409
      %v456 = vpack.c.b16 %v412, %v410
      %v457 = vpack.c.b16 %v415, %v413
      %v458 = vpack.c.b16 %v416, %v414
      %v459 = vpack.c.b16 %v419, %v417
      %v460 = vpack.c.b16 %v420, %v418
      %v461 = vpack.c.b16 %v423, %v421
      %v462 = vpack.c.b16 %v424, %v422
      %v463 = vpack.c.b16 %v427, %v425
      %v464 = vpack.c.b16 %v428, %v426
      %v465 = vpack.c.b16 %v431, %v429
      %v466 = vpack.c.b16 %v432, %v430
      %v467 = vpack.c.b16 %v435, %v433
      %v468 = vpack.c.b16 %v436, %v434
      %v505 = vunpack.c.l.b16 %v223
      %v506 = vunpack.c.l.b16 %v224
      %v507 = vunpack.c.l.b16 %v225
      %v508 = vunpack.c.l.b16 %v226
      %v509 = vunpack.c.l.b16 %v227
      %v510 = vunpack.c.l.b16 %v228
      %v511 = vunpack.c.l.b16 %v229
      %v512 = vunpack.c.l.b16 %v230
      %v513 = vunpack.c.l.b16 %v231
      %v514 = vunpack.c.l.b16 %v232
      %v515 = vunpack.c.l.b16 %v233
      %v516 = vunpack.c.l.b16 %v234
      %v517 = vunpack.c.l.b16 %v235
      %v518 = vunpack.c.l.b16 %v236
      %v519 = vunpack.c.l.b16 %v237
      %v520 = vunpack.c.l.b16 %v238
      %v521 = vunpack.c.l.b16 %v239
      %v522 = vunpack.c.l.b16 %v240
      %v523 = vunpack.c.l.b16 %v241
      %v524 = vunpack.c.l.b16 %v242
      %v525 = vpack.c.b16 %v506, %v505
      %v526 = vpack.c.b16 %v508, %v507
      %v527 = vpack.c.b16 %v510, %v509
      %v528 = vpack.c.b16 %v512, %v511
      %v529 = vpack.c.b16 %v514, %v513
      %v530 = vpack.c.b16 %v516, %v515
      %v531 = vpack.c.b16 %v518, %v517
      %v532 = vpack.c.b16 %v520, %v519
      %v533 = vpack.c.b16 %v522, %v521
      %v534 = vpack.c.b16 %v524, %v523
      %vm545 = vcmask 261120
      %v547 = vsel %vm545, %v438, 0
      %v550 = vsel %vm545, %v440, 0
      %v553 = vsel %vm545, %v442, 0
      %v556 = vsel %vm545, %v444, 0
      %v559 = vsel %vm545, %v446, 0
      %v562 = vsel %vm545, %v448, 0
      %v565 = vsel %vm545, %v450, 0
      %v568 = vsel %vm545, %v452, 0
      %v571 = vsel %vm545, %v454, 0
      %v574 = vsel %vm545, %v456, 0
      %v577 = vsel %vm545, %v458, 0
      %v580 = vsel %vm545, %v460, 0
      %v583 = vsel %vm545, %v462, 0
      %v586 = vsel %vm545, %v464, 0
      %v589 = vsel %vm545, %v466, 0
      %v592 = vsel %vm545, %v468, 0
      %594 = vmatprep.subr.bf16.mxu0 0
      %595 = vmatpush1.bf16.msra.mxu0 %v525
      %596 = vmatprep.subr.bf16.mxu0 0
      %597 = vmatpush1.bf16.msra.mxu0 %v526
      %598 = vmatprep.subr.bf16.mxu0 0
      %599 = vmatpush1.bf16.msra.mxu0 %v527
      %600 = vmatprep.subr.bf16.mxu0 0
      %601 = vmatpush1.bf16.msra.mxu0 %v528
      %602 = vmatprep.subr.bf16.mxu0 0
      %603 = vmatpush1.bf16.msra.mxu0 %v529
      %604 = vmatprep.subr.bf16.mxu0 0
      %605 = vmatpush1.bf16.msra.mxu0 %v530
      %606 = vmatprep.subr.bf16.mxu0 0
      %607 = vmatpush1.bf16.msra.mxu0 %v531
      %608 = vmatprep.subr.bf16.mxu0 0
      %609 = vmatpush1.bf16.msra.mxu0 %v532
      %610 = vmatprep.subr.bf16.mxu0 0
      %611 = vmatpush1.bf16.msra.mxu0 %v533
      %612 = vmatprep.subr.bf16.mxu0 0
      %613 = vmatpush1.bf16.msra.mxu0 %v534
      %614 = vmatprep.subr.bf16.mxu0 0
      %615 = vmatpush1.bf16.msra.mxu0 0
      %616 = vmatprep.subr.bf16.mxu0 0
      %617 = vmatpush1.bf16.msra.mxu0 0
      %618 = vmatprep.subr.bf16.mxu0 0
      %619 = vmatpush1.bf16.msra.mxu0 0
      %620 = vmatprep.subr.bf16.mxu0 0
      %621 = vmatpush1.bf16.msra.mxu0 0
      %622 = vmatprep.subr.bf16.mxu0 0
      %623 = vmatpush1.bf16.msra.mxu0 0
      %624 = vmatprep.subr.bf16.mxu0 0
      %625 = vmatpush1.bf16.msra.mxu0 0
      %626 = vmatprep.mubr.bf16.mxu0 %v547
      %627 = vmatmul.mubr.bf16.gmra.mrb[0].mxu0 %v437
      %v628 = vpop.f32.mrb[0].mxu0
      %v629 = vadd.f32 0.0, %v628
      %v630 = vpop.f32.mrb[0].mxu0
      %v631 = vpop.f32.mrb[0].mxu0
      %v632 = vadd.f32 0.0, %v631
      %v633 = vpop.f32.mrb[0].mxu0
      %634 = vmatprep.mubr.bf16.mxu0 %v550
      %635 = vmatmul.mubr.bf16.gmra.mrb[0].mxu0 %v439
      %v636 = vpop.f32.mrb[0].mxu0
      %v637 = vadd.f32 0.0, %v636
      %v638 = vpop.f32.mrb[0].mxu0
      %v639 = vpop.f32.mrb[0].mxu0
      %v640 = vadd.f32 0.0, %v639
      %v641 = vpop.f32.mrb[0].mxu0
      %642 = vmatprep.mubr.bf16.mxu0 %v553
      %643 = vmatmul.mubr.bf16.gmra.mrb[0].mxu0 %v441
      %v644 = vpop.f32.mrb[0].mxu0
      %v645 = vadd.f32 0.0, %v644
      %v646 = vpop.f32.mrb[0].mxu0
      %v647 = vpop.f32.mrb[0].mxu0
      %v648 = vadd.f32 0.0, %v647
      %v649 = vpop.f32.mrb[0].mxu0
      %650 = vmatprep.mubr.bf16.mxu0 %v556
      %651 = vmatmul.mubr.bf16.gmra.mrb[0].mxu0 %v443
      %v652 = vpop.f32.mrb[0].mxu0
      %v653 = vadd.f32 0.0, %v652
      %v654 = vpop.f32.mrb[0].mxu0
      %v655 = vpop.f32.mrb[0].mxu0
      %v656 = vadd.f32 0.0, %v655
      %v657 = vpop.f32.mrb[0].mxu0
      %658 = vmatprep.mubr.bf16.mxu0 %v559
      %659 = vmatmul.mubr.bf16.gmra.mrb[0].mxu0 %v445
      %v660 = vpop.f32.mrb[0].mxu0
      %v661 = vadd.f32 0.0, %v660
      %v662 = vpop.f32.mrb[0].mxu0
      %v663 = vpop.f32.mrb[0].mxu0
      %v664 = vadd.f32 0.0, %v663
      %v665 = vpop.f32.mrb[0].mxu0
      %666 = vmatprep.mubr.bf16.mxu0 %v562
      %667 = vmatmul.mubr.bf16.gmra.mrb[0].mxu0 %v447
      %v668 = vpop.f32.mrb[0].mxu0
      %v669 = vadd.f32 0.0, %v668
      %v670 = vpop.f32.mrb[0].mxu0
      %v671 = vpop.f32.mrb[0].mxu0
      %v672 = vadd.f32 0.0, %v671
      %v673 = vpop.f32.mrb[0].mxu0
      %674 = vmatprep.mubr.bf16.mxu0 %v565
      %675 = vmatmul.mubr.bf16.gmra.mrb[0].mxu0 %v449
      %v676 = vpop.f32.mrb[0].mxu0
      %v677 = vadd.f32 0.0, %v676
      %v678 = vpop.f32.mrb[0].mxu0
      %v679 = vpop.f32.mrb[0].mxu0
      %v680 = vadd.f32 0.0, %v679
      %v681 = vpop.f32.mrb[0].mxu0
      %682 = vmatprep.mubr.bf16.mxu0 %v568
      %683 = vmatmul.mubr.bf16.gmra.mrb[0].mxu0 %v451
      %v684 = vpop.f32.mrb[0].mxu0
      %v685 = vadd.f32 0.0, %v684
      %v686 = vpop.f32.mrb[0].mxu0
      %v687 = vpop.f32.mrb[0].mxu0
      %v688 = vadd.f32 0.0, %v687
      %v689 = vpop.f32.mrb[0].mxu0
      %690 = vmatprep.mubr.bf16.mxu0 %v571
      %691 = vmatmul.mubr.bf16.gmra.mrb[0].mxu0 %v453
      %v692 = vpop.f32.mrb[0].mxu0
      %v693 = vadd.f32 0.0, %v692
      %v694 = vpop.f32.mrb[0].mxu0
      %v695 = vpop.f32.mrb[0].mxu0
      %v696 = vadd.f32 0.0, %v695
      %v697 = vpop.f32.mrb[0].mxu0
      %698 = vmatprep.mubr.bf16.mxu0 %v574
      %699 = vmatmul.mubr.bf16.gmra.mrb[0].mxu0 %v455
      %v700 = vpop.f32.mrb[0].mxu0
      %v701 = vadd.f32 0.0, %v700
      %v702 = vpop.f32.mrb[0].mxu0
      %v703 = vpop.f32.mrb[0].mxu0
      %v704 = vadd.f32 0.0, %v703
      %v705 = vpop.f32.mrb[0].mxu0
      %706 = vmatprep.mubr.bf16.mxu0 %v577
      %707 = vmatmul.mubr.bf16.gmra.mrb[0].mxu0 %v457
      %v708 = vpop.f32.mrb[0].mxu0
      %v709 = vadd.f32 0.0, %v708
      %v710 = vpop.f32.mrb[0].mxu0
      %v711 = vpop.f32.mrb[0].mxu0
      %v712 = vadd.f32 0.0, %v711
      %v713 = vpop.f32.mrb[0].mxu0
      %714 = vmatprep.mubr.bf16.mxu0 %v580
      %715 = vmatmul.mubr.bf16.gmra.mrb[0].mxu0 %v459
      %v716 = vpop.f32.mrb[0].mxu0
      %v717 = vadd.f32 0.0, %v716
      %v718 = vpop.f32.mrb[0].mxu0
      %v719 = vpop.f32.mrb[0].mxu0
      %v720 = vadd.f32 0.0, %v719
      %v721 = vpop.f32.mrb[0].mxu0
      %722 = vmatprep.mubr.bf16.mxu0 %v583
      %723 = vmatmul.mubr.bf16.gmra.mrb[0].mxu0 %v461
      %v724 = vpop.f32.mrb[0].mxu0
      %v725 = vadd.f32 0.0, %v724
      %v726 = vpop.f32.mrb[0].mxu0
      %v727 = vpop.f32.mrb[0].mxu0
      %v728 = vadd.f32 0.0, %v727
      %v729 = vpop.f32.mrb[0].mxu0
      %730 = vmatprep.mubr.bf16.mxu0 %v586
      %731 = vmatmul.mubr.bf16.gmra.mrb[0].mxu0 %v463
      %v732 = vpop.f32.mrb[0].mxu0
      %v733 = vadd.f32 0.0, %v732
      %v734 = vpop.f32.mrb[0].mxu0
      %v735 = vpop.f32.mrb[0].mxu0
      %v736 = vadd.f32 0.0, %v735
      %v737 = vpop.f32.mrb[0].mxu0
      %738 = vmatprep.mubr.bf16.mxu0 %v589
      %739 = vmatmul.mubr.bf16.gmra.mrb[0].mxu0 %v465
      %v740 = vpop.f32.mrb[0].mxu0
      %v741 = vadd.f32 0.0, %v740
      %v742 = vpop.f32.mrb[0].mxu0
      %v743 = vpop.f32.mrb[0].mxu0
      %v744 = vadd.f32 0.0, %v743
      %v745 = vpop.f32.mrb[0].mxu0
      %746 = vmatprep.mubr.bf16.mxu0 %v592
      %747 = vmatmul.mubr.bf16.gmra.mrb[0].mxu0 %v467
      %v748 = vpop.f32.mrb[0].mxu0
      %v749 = vadd.f32 0.0, %v748
      %v750 = vpop.f32.mrb[0].mxu0
      %v751 = vpop.f32.mrb[0].mxu0
      %v752 = vadd.f32 0.0, %v751
      %v753 = vpop.f32.mrb[0].mxu0
      %754 = vdwg.mxu0
      %v787 = vunpack.c.l.b16 %v243
      %v788 = vunpack.c.h.b16 %v243
      %v789 = vunpack.c.l.b16 %v244
      %v790 = vunpack.c.h.b16 %v244
      %v791 = vunpack.c.l.b16 %v245
      %v792 = vunpack.c.h.b16 %v245
      %v793 = vunpack.c.l.b16 %v246
      %v794 = vunpack.c.h.b16 %v246
      %v795 = vunpack.c.l.b16 %v247
      %v796 = vunpack.c.h.b16 %v247
      %v797 = vunpack.c.l.b16 %v248
      %v798 = vunpack.c.h.b16 %v248
      %v799 = vunpack.c.l.b16 %v249
      %v800 = vunpack.c.h.b16 %v249
      %v801 = vunpack.c.l.b16 %v250
      %v802 = vunpack.c.h.b16 %v250
      %v803 = vunpack.c.l.b16 %v251
      %v804 = vunpack.c.h.b16 %v251
      %v805 = vunpack.c.l.b16 %v252
      %v806 = vunpack.c.h.b16 %v252
      %v807 = vunpack.c.l.b16 %v253
      %v808 = vunpack.c.h.b16 %v253
      %v809 = vunpack.c.l.b16 %v254
      %v810 = vunpack.c.h.b16 %v254
      %v811 = vunpack.c.l.b16 %v255
      %v812 = vunpack.c.h.b16 %v255
      %v813 = vunpack.c.l.b16 %v256
      %v814 = vunpack.c.h.b16 %v256
      %v815 = vunpack.c.l.b16 %v257
      %v816 = vunpack.c.h.b16 %v257
      %v817 = vunpack.c.l.b16 %v258
      %v818 = vunpack.c.h.b16 %v258
      %v819 = vunpack.c.l.b16 %v259
      %v820 = vunpack.c.h.b16 %v259
      %v821 = vunpack.c.l.b16 %v260
      %v822 = vunpack.c.h.b16 %v260
      %v823 = vunpack.c.l.b16 %v261
      %v824 = vunpack.c.h.b16 %v261
      %v825 = vunpack.c.l.b16 %v262
      %v826 = vunpack.c.h.b16 %v262
      %v827 = vunpack.c.l.b16 %v263
      %v828 = vunpack.c.h.b16 %v263
      %v829 = vunpack.c.l.b16 %v264
      %v830 = vunpack.c.h.b16 %v264
      %v831 = vunpack.c.l.b16 %v265
      %v832 = vunpack.c.h.b16 %v265
      %v833 = vunpack.c.l.b16 %v266
      %v834 = vunpack.c.h.b16 %v266
      %v835 = vunpack.c.l.b16 %v267
      %v836 = vunpack.c.h.b16 %v267
      %v837 = vunpack.c.l.b16 %v268
      %v838 = vunpack.c.h.b16 %v268
      %v839 = vunpack.c.l.b16 %v269
      %v840 = vunpack.c.h.b16 %v269
      %v841 = vunpack.c.l.b16 %v270
      %v842 = vunpack.c.h.b16 %v270
      %v843 = vunpack.c.l.b16 %v271
      %v844 = vunpack.c.h.b16 %v271
      %v845 = vunpack.c.l.b16 %v272
      %v846 = vunpack.c.h.b16 %v272
      %v847 = vunpack.c.l.b16 %v273
      %v848 = vunpack.c.h.b16 %v273
      %v849 = vunpack.c.l.b16 %v274
      %v850 = vunpack.c.h.b16 %v274
      %v851 = vpack.c.b16 %v789, %v787
      %v852 = vpack.c.b16 %v790, %v788
      %v853 = vpack.c.b16 %v793, %v791
      %v854 = vpack.c.b16 %v794, %v792
      %v855 = vpack.c.b16 %v797, %v795
      %v856 = vpack.c.b16 %v798, %v796
      %v857 = vpack.c.b16 %v801, %v799
      %v858 = vpack.c.b16 %v802, %v800
      %v859 = vpack.c.b16 %v805, %v803
      %v860 = vpack.c.b16 %v806, %v804
      %v861 = vpack.c.b16 %v809, %v807
      %v862 = vpack.c.b16 %v810, %v808
      %v863 = vpack.c.b16 %v813, %v811
      %v864 = vpack.c.b16 %v814, %v812
      %v865 = vpack.c.b16 %v817, %v815
      %v866 = vpack.c.b16 %v818, %v816
      %v867 = vpack.c.b16 %v821, %v819
      %v868 = vpack.c.b16 %v822, %v820
      %v869 = vpack.c.b16 %v825, %v823
      %v870 = vpack.c.b16 %v826, %v824
      %v871 = vpack.c.b16 %v829, %v827
      %v872 = vpack.c.b16 %v830, %v828
      %v873 = vpack.c.b16 %v833, %v831
      %v874 = vpack.c.b16 %v834, %v832
      %v875 = vpack.c.b16 %v837, %v835
      %v876 = vpack.c.b16 %v838, %v836
      %v877 = vpack.c.b16 %v841, %v839
      %v878 = vpack.c.b16 %v842, %v840
      %v879 = vpack.c.b16 %v845, %v843
      %v880 = vpack.c.b16 %v846, %v844
      %v881 = vpack.c.b16 %v849, %v847
      %v882 = vpack.c.b16 %v850, %v848
      %v919 = vunpack.c.l.b16 %v200
      %v920 = vunpack.c.l.b16 %v201
      %v921 = vunpack.c.l.b16 %v202
      %v922 = vunpack.c.l.b16 %v203
      %v923 = vunpack.c.l.b16 %v204
      %v924 = vunpack.c.l.b16 %v205
      %v925 = vunpack.c.l.b16 %v206
      %v926 = vunpack.c.l.b16 %v207
      %v927 = vunpack.c.l.b16 %v208
      %v928 = vunpack.c.l.b16 %v209
      %v929 = vunpack.c.l.b16 %v210
      %v930 = vunpack.c.l.b16 %v211
      %v931 = vunpack.c.l.b16 %v212
      %v932 = vunpack.c.l.b16 %v213
      %v933 = vunpack.c.l.b16 %v214
      %v934 = vunpack.c.l.b16 %v215
      %v935 = vunpack.c.l.b16 %v216
      %v936 = vunpack.c.l.b16 %v217
      %v937 = vunpack.c.l.b16 %v218
      %v938 = vunpack.c.l.b16 %v219
      %v939 = vpack.c.b16 %v920, %v919
      %v940 = vpack.c.b16 %v922, %v921
      %v941 = vpack.c.b16 %v924, %v923
      %v942 = vpack.c.b16 %v926, %v925
      %v943 = vpack.c.b16 %v928, %v927
      %v944 = vpack.c.b16 %v930, %v929
      %v945 = vpack.c.b16 %v932, %v931
      %v946 = vpack.c.b16 %v934, %v933
      %v947 = vpack.c.b16 %v936, %v935
      %v948 = vpack.c.b16 %v938, %v937
      %v960 = vsel %vm545, %v852, 0
      %v963 = vsel %vm545, %v854, 0
      %v966 = vsel %vm545, %v856, 0
      %v969 = vsel %vm545, %v858, 0
      %v972 = vsel %vm545, %v860, 0
      %v975 = vsel %vm545, %v862, 0
      %v978 = vsel %vm545, %v864, 0
      %v981 = vsel %vm545, %v866, 0
      %v984 = vsel %vm545, %v868, 0
      %v987 = vsel %vm545, %v870, 0
      %v990 = vsel %vm545, %v872, 0
      %v993 = vsel %vm545, %v874, 0
      %v996 = vsel %vm545, %v876, 0
      %v999 = vsel %vm545, %v878, 0
      %v1002 = vsel %vm545, %v880, 0
      %v1005 = vsel %vm545, %v882, 0
      %1007 = vmatprep.subr.bf16.mxu0 0
      %1008 = vmatpush1.bf16.msra.mxu0 %v939
      %1009 = vmatprep.subr.bf16.mxu0 0
      %1010 = vmatpush1.bf16.msra.mxu0 %v940
      %1011 = vmatprep.subr.bf16.mxu0 0
      %1012 = vmatpush1.bf16.msra.mxu0 %v941
      %1013 = vmatprep.subr.bf16.mxu0 0
      %1014 = vmatpush1.bf16.msra.mxu0 %v942
      %1015 = vmatprep.subr.bf16.mxu0 0
      %1016 = vmatpush1.bf16.msra.mxu0 %v943
      %1017 = vmatprep.subr.bf16.mxu0 0
      %1018 = vmatpush1.bf16.msra.mxu0 %v944
      %1019 = vmatprep.subr.bf16.mxu0 0
      %1020 = vmatpush1.bf16.msra.mxu0 %v945
      %1021 = vmatprep.subr.bf16.mxu0 0
      %1022 = vmatpush1.bf16.msra.mxu0 %v946
      %1023 = vmatprep.subr.bf16.mxu0 0
      %1024 = vmatpush1.bf16.msra.mxu0 %v947
      %1025 = vmatprep.subr.bf16.mxu0 0
      %1026 = vmatpush1.bf16.msra.mxu0 %v948
      %1027 = vmatprep.subr.bf16.mxu0 0
      %1028 = vmatpush1.bf16.msra.mxu0 0
      %1029 = vmatprep.subr.bf16.mxu0 0
      %1030 = vmatpush1.bf16.msra.mxu0 0
      %1031 = vmatprep.subr.bf16.mxu0 0
      %1032 = vmatpush1.bf16.msra.mxu0 0
      %1033 = vmatprep.subr.bf16.mxu0 0
      %1034 = vmatpush1.bf16.msra.mxu0 0
      %1035 = vmatprep.subr.bf16.mxu0 0
      %1036 = vmatpush1.bf16.msra.mxu0 0
      %1037 = vmatprep.subr.bf16.mxu0 0
      %1038 = vmatpush1.bf16.msra.mxu0 0
      %1039 = vmatprep.mubr.bf16.mxu0 %v960
      %1040 = vmatmul.mubr.bf16.gmra.mrb[0].mxu0 %v851
      %v1041 = vpop.f32.mrb[0].mxu0
      %v1042 = vadd.f32 %v629, %v1041
      %v1043 = vpop.f32.mrb[0].mxu0
      %v1044 = vpop.f32.mrb[0].mxu0
      %v1045 = vadd.f32 %v632, %v1044
      %v1046 = vpop.f32.mrb[0].mxu0
      %1047 = vmatprep.mubr.bf16.mxu0 %v963
      %1048 = vmatmul.mubr.bf16.gmra.mrb[0].mxu0 %v853
      %v1049 = vpop.f32.mrb[0].mxu0
      %v1050 = vadd.f32 %v637, %v1049
      %v1051 = vpop.f32.mrb[0].mxu0
      %v1052 = vpop.f32.mrb[0].mxu0
      %v1053 = vadd.f32 %v640, %v1052
      %v1054 = vpop.f32.mrb[0].mxu0
      %1055 = vmatprep.mubr.bf16.mxu0 %v966
      %1056 = vmatmul.mubr.bf16.gmra.mrb[0].mxu0 %v855
      %v1057 = vpop.f32.mrb[0].mxu0
      %v1058 = vadd.f32 %v645, %v1057
      %v1059 = vpop.f32.mrb[0].mxu0
      %v1060 = vpop.f32.mrb[0].mxu0
      %v1061 = vadd.f32 %v648, %v1060
      %v1062 = vpop.f32.mrb[0].mxu0
      %1063 = vmatprep.mubr.bf16.mxu0 %v969
      %1064 = vmatmul.mubr.bf16.gmra.mrb[0].mxu0 %v857
      %v1065 = vpop.f32.mrb[0].mxu0
      %v1066 = vadd.f32 %v653, %v1065
      %v1067 = vpop.f32.mrb[0].mxu0
      %v1068 = vpop.f32.mrb[0].mxu0
      %v1069 = vadd.f32 %v656, %v1068
      %v1070 = vpop.f32.mrb[0].mxu0
      %1071 = vmatprep.mubr.bf16.mxu0 %v972
      %1072 = vmatmul.mubr.bf16.gmra.mrb[0].mxu0 %v859
      %v1073 = vpop.f32.mrb[0].mxu0
      %v1074 = vadd.f32 %v661, %v1073
      %v1075 = vpop.f32.mrb[0].mxu0
      %v1076 = vpop.f32.mrb[0].mxu0
      %v1077 = vadd.f32 %v664, %v1076
      %v1078 = vpop.f32.mrb[0].mxu0
      %1079 = vmatprep.mubr.bf16.mxu0 %v975
      %1080 = vmatmul.mubr.bf16.gmra.mrb[0].mxu0 %v861
      %v1081 = vpop.f32.mrb[0].mxu0
      %v1082 = vadd.f32 %v669, %v1081
      %v1083 = vpop.f32.mrb[0].mxu0
      %v1084 = vpop.f32.mrb[0].mxu0
      %v1085 = vadd.f32 %v672, %v1084
      %v1086 = vpop.f32.mrb[0].mxu0
      %1087 = vmatprep.mubr.bf16.mxu0 %v978
      %1088 = vmatmul.mubr.bf16.gmra.mrb[0].mxu0 %v863
      %v1089 = vpop.f32.mrb[0].mxu0
      %v1090 = vadd.f32 %v677, %v1089
      %v1091 = vpop.f32.mrb[0].mxu0
      %v1092 = vpop.f32.mrb[0].mxu0
      %v1093 = vadd.f32 %v680, %v1092
      %v1094 = vpop.f32.mrb[0].mxu0
      %1095 = vmatprep.mubr.bf16.mxu0 %v981
      %1096 = vmatmul.mubr.bf16.gmra.mrb[0].mxu0 %v865
      %v1097 = vpop.f32.mrb[0].mxu0
      %v1098 = vadd.f32 %v685, %v1097
      %v1099 = vpop.f32.mrb[0].mxu0
      %v1100 = vpop.f32.mrb[0].mxu0
      %v1101 = vadd.f32 %v688, %v1100
      %v1102 = vpop.f32.mrb[0].mxu0
      %1103 = vmatprep.mubr.bf16.mxu0 %v984
      %1104 = vmatmul.mubr.bf16.gmra.mrb[0].mxu0 %v867
      %v1105 = vpop.f32.mrb[0].mxu0
      %v1106 = vadd.f32 %v693, %v1105
      %v1107 = vpop.f32.mrb[0].mxu0
      %v1108 = vpop.f32.mrb[0].mxu0
      %v1109 = vadd.f32 %v696, %v1108
      %v1110 = vpop.f32.mrb[0].mxu0
      %1111 = vmatprep.mubr.bf16.mxu0 %v987
      %1112 = vmatmul.mubr.bf16.gmra.mrb[0].mxu0 %v869
      %v1113 = vpop.f32.mrb[0].mxu0
      %v1114 = vadd.f32 %v701, %v1113
      %v1115 = vpop.f32.mrb[0].mxu0
      %v1116 = vpop.f32.mrb[0].mxu0
      %v1117 = vadd.f32 %v704, %v1116
      %v1118 = vpop.f32.mrb[0].mxu0
      %1119 = vmatprep.mubr.bf16.mxu0 %v990
      %1120 = vmatmul.mubr.bf16.gmra.mrb[0].mxu0 %v871
      %v1121 = vpop.f32.mrb[0].mxu0
      %v1122 = vadd.f32 %v709, %v1121
      %v1123 = vpop.f32.mrb[0].mxu0
      %v1124 = vpop.f32.mrb[0].mxu0
      %v1125 = vadd.f32 %v712, %v1124
      %v1126 = vpop.f32.mrb[0].mxu0
      %1127 = vmatprep.mubr.bf16.mxu0 %v993
      %1128 = vmatmul.mubr.bf16.gmra.mrb[0].mxu0 %v873
      %v1129 = vpop.f32.mrb[0].mxu0
      %v1130 = vadd.f32 %v717, %v1129
      %v1131 = vpop.f32.mrb[0].mxu0
      %v1132 = vpop.f32.mrb[0].mxu0
      %v1133 = vadd.f32 %v720, %v1132
      %v1134 = vpop.f32.mrb[0].mxu0
      %1135 = vmatprep.mubr.bf16.mxu0 %v996
      %1136 = vmatmul.mubr.bf16.gmra.mrb[0].mxu0 %v875
      %v1137 = vpop.f32.mrb[0].mxu0
      %v1138 = vadd.f32 %v725, %v1137
      %v1139 = vpop.f32.mrb[0].mxu0
      %v1140 = vpop.f32.mrb[0].mxu0
      %v1141 = vadd.f32 %v728, %v1140
      %v1142 = vpop.f32.mrb[0].mxu0
      %1143 = vmatprep.mubr.bf16.mxu0 %v999
      %1144 = vmatmul.mubr.bf16.gmra.mrb[0].mxu0 %v877
      %v1145 = vpop.f32.mrb[0].mxu0
      %v1146 = vadd.f32 %v733, %v1145
      %v1147 = vpop.f32.mrb[0].mxu0
      %v1148 = vpop.f32.mrb[0].mxu0
      %v1149 = vadd.f32 %v736, %v1148
      %v1150 = vpop.f32.mrb[0].mxu0
      %1151 = vmatprep.mubr.bf16.mxu0 %v1002
      %1152 = vmatmul.mubr.bf16.gmra.mrb[0].mxu0 %v879
      %v1153 = vpop.f32.mrb[0].mxu0
      %v1154 = vadd.f32 %v741, %v1153
      %v1155 = vpop.f32.mrb[0].mxu0
      %v1156 = vpop.f32.mrb[0].mxu0
      %v1157 = vadd.f32 %v744, %v1156
      %v1158 = vpop.f32.mrb[0].mxu0
      %1159 = vmatprep.mubr.bf16.mxu0 %v1005
      %1160 = vmatmul.mubr.bf16.gmra.mrb[0].mxu0 %v881
      %v1161 = vpop.f32.mrb[0].mxu0
      %v1162 = vadd.f32 %v749, %v1161
      %v1163 = vpop.f32.mrb[0].mxu0
      %v1164 = vpop.f32.mrb[0].mxu0
      %v1165 = vadd.f32 %v752, %v1164
      %v1166 = vpop.f32.mrb[0].mxu0
      %1167 = vdwg.mxu0
      %v1200 = vunpack.c.l.b16 %v309
      %v1201 = vunpack.c.h.b16 %v309
      %v1202 = vunpack.c.l.b16 %v310
      %v1203 = vunpack.c.h.b16 %v310
      %v1204 = vunpack.c.l.b16 %v311
      %v1205 = vunpack.c.h.b16 %v311
      %v1206 = vunpack.c.l.b16 %v312
      %v1207 = vunpack.c.h.b16 %v312
      %v1208 = vunpack.c.l.b16 %v313
      %v1209 = vunpack.c.h.b16 %v313
      %v1210 = vunpack.c.l.b16 %v314
      %v1211 = vunpack.c.h.b16 %v314
      %v1212 = vunpack.c.l.b16 %v315
      %v1213 = vunpack.c.h.b16 %v315
      %v1214 = vunpack.c.l.b16 %v316
      %v1215 = vunpack.c.h.b16 %v316
      %v1216 = vunpack.c.l.b16 %v317
      %v1217 = vunpack.c.h.b16 %v317
      %v1218 = vunpack.c.l.b16 %v318
      %v1219 = vunpack.c.h.b16 %v318
      %v1220 = vunpack.c.l.b16 %v319
      %v1221 = vunpack.c.h.b16 %v319
      %v1222 = vunpack.c.l.b16 %v320
      %v1223 = vunpack.c.h.b16 %v320
      %v1224 = vunpack.c.l.b16 %v321
      %v1225 = vunpack.c.h.b16 %v321
      %v1226 = vunpack.c.l.b16 %v322
      %v1227 = vunpack.c.h.b16 %v322
      %v1228 = vunpack.c.l.b16 %v323
      %v1229 = vunpack.c.h.b16 %v323
      %v1230 = vunpack.c.l.b16 %v324
      %v1231 = vunpack.c.h.b16 %v324
      %v1232 = vunpack.c.l.b16 %v325
      %v1233 = vunpack.c.h.b16 %v325
      %v1234 = vunpack.c.l.b16 %v326
      %v1235 = vunpack.c.h.b16 %v326
      %v1236 = vunpack.c.l.b16 %v327
      %v1237 = vunpack.c.h.b16 %v327
      %v1238 = vunpack.c.l.b16 %v328
      %v1239 = vunpack.c.h.b16 %v328
      %v1240 = vunpack.c.l.b16 %v329
      %v1241 = vunpack.c.h.b16 %v329
      %v1242 = vunpack.c.l.b16 %v330
      %v1243 = vunpack.c.h.b16 %v330
      %v1244 = vunpack.c.l.b16 %v331
      %v1245 = vunpack.c.h.b16 %v331
      %v1246 = vunpack.c.l.b16 %v332
      %v1247 = vunpack.c.h.b16 %v332
      %v1248 = vunpack.c.l.b16 %v333
      %v1249 = vunpack.c.h.b16 %v333
      %v1250 = vunpack.c.l.b16 %v334
      %v1251 = vunpack.c.h.b16 %v334
      %v1252 = vunpack.c.l.b16 %v335
      %v1253 = vunpack.c.h.b16 %v335
      %v1254 = vunpack.c.l.b16 %v336
      %v1255 = vunpack.c.h.b16 %v336
      %v1256 = vunpack.c.l.b16 %v337
      %v1257 = vunpack.c.h.b16 %v337
      %v1258 = vunpack.c.l.b16 %v338
      %v1259 = vunpack.c.h.b16 %v338
      %v1260 = vunpack.c.l.b16 %v339
      %v1261 = vunpack.c.h.b16 %v339
      %v1262 = vunpack.c.l.b16 %v340
      %v1263 = vunpack.c.h.b16 %v340
      %v1264 = vpack.c.b16 %v1202, %v1200
      %v1265 = vpack.c.b16 %v1203, %v1201
      %v1266 = vpack.c.b16 %v1206, %v1204
      %v1267 = vpack.c.b16 %v1207, %v1205
      %v1268 = vpack.c.b16 %v1210, %v1208
      %v1269 = vpack.c.b16 %v1211, %v1209
      %v1270 = vpack.c.b16 %v1214, %v1212
      %v1271 = vpack.c.b16 %v1215, %v1213
      %v1272 = vpack.c.b16 %v1218, %v1216
      %v1273 = vpack.c.b16 %v1219, %v1217
      %v1274 = vpack.c.b16 %v1222, %v1220
      %v1275 = vpack.c.b16 %v1223, %v1221
      %v1276 = vpack.c.b16 %v1226, %v1224
      %v1277 = vpack.c.b16 %v1227, %v1225
      %v1278 = vpack.c.b16 %v1230, %v1228
      %v1279 = vpack.c.b16 %v1231, %v1229
      %v1280 = vpack.c.b16 %v1234, %v1232
      %v1281 = vpack.c.b16 %v1235, %v1233
      %v1282 = vpack.c.b16 %v1238, %v1236
      %v1283 = vpack.c.b16 %v1239, %v1237
      %v1284 = vpack.c.b16 %v1242, %v1240
      %v1285 = vpack.c.b16 %v1243, %v1241
      %v1286 = vpack.c.b16 %v1246, %v1244
      %v1287 = vpack.c.b16 %v1247, %v1245
      %v1288 = vpack.c.b16 %v1250, %v1248
      %v1289 = vpack.c.b16 %v1251, %v1249
      %v1290 = vpack.c.b16 %v1254, %v1252
      %v1291 = vpack.c.b16 %v1255, %v1253
      %v1292 = vpack.c.b16 %v1258, %v1256
      %v1293 = vpack.c.b16 %v1259, %v1257
      %v1294 = vpack.c.b16 %v1262, %v1260
      %v1295 = vpack.c.b16 %v1263, %v1261
      %1312 = vrot.lane.b32.xlu0 %v939, 127
      %v1313 = vpop.permute.xlu0 %1312
      %1314 = vrot.lane.b32.xlu0 %v940, 127
      %v1315 = vpop.permute.xlu0 %1314
      %1316 = vrot.lane.b32.xlu0 %v941, 127
      %v1317 = vpop.permute.xlu0 %1316
      %1318 = vrot.lane.b32.xlu0 %v942, 127
      %v1319 = vpop.permute.xlu0 %1318
      %1320 = vrot.lane.b32.xlu0 %v943, 127
      %v1321 = vpop.permute.xlu0 %1320
      %1322 = vrot.lane.b32.xlu0 %v944, 127
      %v1323 = vpop.permute.xlu0 %1322
      %1324 = vrot.lane.b32.xlu0 %v945, 127
      %v1325 = vpop.permute.xlu0 %1324
      %1326 = vrot.lane.b32.xlu0 %v946, 127
      %v1327 = vpop.permute.xlu0 %1326
      %1328 = vrot.lane.b32.xlu0 %v947, 127
      %v1329 = vpop.permute.xlu0 %1328
      %1330 = vrot.lane.b32.xlu0 %v948, 127
      %v1331 = vpop.permute.xlu0 %1330
      %v1343 = vsel %vm545, %v1265, 0
      %v1346 = vsel %vm545, %v1267, 0
      %v1349 = vsel %vm545, %v1269, 0
      %v1352 = vsel %vm545, %v1271, 0
      %v1355 = vsel %vm545, %v1273, 0
      %v1358 = vsel %vm545, %v1275, 0
      %v1361 = vsel %vm545, %v1277, 0
      %v1364 = vsel %vm545, %v1279, 0
      %v1367 = vsel %vm545, %v1281, 0
      %v1370 = vsel %vm545, %v1283, 0
      %v1373 = vsel %vm545, %v1285, 0
      %v1376 = vsel %vm545, %v1287, 0
      %v1379 = vsel %vm545, %v1289, 0
      %v1382 = vsel %vm545, %v1291, 0
      %v1385 = vsel %vm545, %v1293, 0
      %v1388 = vsel %vm545, %v1295, 0
      %1390 = vmatprep.subr.bf16.mxu0 0
      %1391 = vmatpush1.bf16.msra.mxu0 %v1313
      %1392 = vmatprep.subr.bf16.mxu0 0
      %1393 = vmatpush1.bf16.msra.mxu0 %v1315
      %1394 = vmatprep.subr.bf16.mxu0 0
      %1395 = vmatpush1.bf16.msra.mxu0 %v1317
      %1396 = vmatprep.subr.bf16.mxu0 0
      %1397 = vmatpush1.bf16.msra.mxu0 %v1319
      %1398 = vmatprep.subr.bf16.mxu0 0
      %1399 = vmatpush1.bf16.msra.mxu0 %v1321
      %1400 = vmatprep.subr.bf16.mxu0 0
      %1401 = vmatpush1.bf16.msra.mxu0 %v1323
      %1402 = vmatprep.subr.bf16.mxu0 0
      %1403 = vmatpush1.bf16.msra.mxu0 %v1325
      %1404 = vmatprep.subr.bf16.mxu0 0
      %1405 = vmatpush1.bf16.msra.mxu0 %v1327
      %1406 = vmatprep.subr.bf16.mxu0 0
      %1407 = vmatpush1.bf16.msra.mxu0 %v1329
      %1408 = vmatprep.subr.bf16.mxu0 0
      %1409 = vmatpush1.bf16.msra.mxu0 %v1331
      %1410 = vmatprep.subr.bf16.mxu0 0
      %1411 = vmatpush1.bf16.msra.mxu0 0
      %1412 = vmatprep.subr.bf16.mxu0 0
      %1413 = vmatpush1.bf16.msra.mxu0 0
      %1414 = vmatprep.subr.bf16.mxu0 0
      %1415 = vmatpush1.bf16.msra.mxu0 0
      %1416 = vmatprep.subr.bf16.mxu0 0
      %1417 = vmatpush1.bf16.msra.mxu0 0
      %1418 = vmatprep.subr.bf16.mxu0 0
      %1419 = vmatpush1.bf16.msra.mxu0 0
      %1420 = vmatprep.subr.bf16.mxu0 0
      %1421 = vmatpush1.bf16.msra.mxu0 0
      %1422 = vmatprep.mubr.bf16.mxu0 %v1343
      %1423 = vmatmul.mubr.bf16.gmra.mrb[0].mxu0 %v1264
      %v1424 = vpop.f32.mrb[0].mxu0
      %v1425 = vadd.f32 0.0, %v1424
      %v1426 = vpop.f32.mrb[0].mxu0
      %v1427 = vpop.f32.mrb[0].mxu0
      %v1428 = vadd.f32 0.0, %v1427
      %v1429 = vpop.f32.mrb[0].mxu0
      %1430 = vmatprep.mubr.bf16.mxu0 %v1346
      %1431 = vmatmul.mubr.bf16.gmra.mrb[0].mxu0 %v1266
      %v1432 = vpop.f32.mrb[0].mxu0
      %v1433 = vadd.f32 0.0, %v1432
      %v1434 = vpop.f32.mrb[0].mxu0
      %v1435 = vpop.f32.mrb[0].mxu0
      %v1436 = vadd.f32 0.0, %v1435
      %v1437 = vpop.f32.mrb[0].mxu0
      %1438 = vmatprep.mubr.bf16.mxu0 %v1349
      %1439 = vmatmul.mubr.bf16.gmra.mrb[0].mxu0 %v1268
      %v1440 = vpop.f32.mrb[0].mxu0
      %v1441 = vadd.f32 0.0, %v1440
      %v1442 = vpop.f32.mrb[0].mxu0
      %v1443 = vpop.f32.mrb[0].mxu0
      %v1444 = vadd.f32 0.0, %v1443
      %v1445 = vpop.f32.mrb[0].mxu0
      %1446 = vmatprep.mubr.bf16.mxu0 %v1352
      %1447 = vmatmul.mubr.bf16.gmra.mrb[0].mxu0 %v1270
      %v1448 = vpop.f32.mrb[0].mxu0
      %v1449 = vadd.f32 0.0, %v1448
      %v1450 = vpop.f32.mrb[0].mxu0
      %v1451 = vpop.f32.mrb[0].mxu0
      %v1452 = vadd.f32 0.0, %v1451
      %v1453 = vpop.f32.mrb[0].mxu0
      %1454 = vmatprep.mubr.bf16.mxu0 %v1355
      %1455 = vmatmul.mubr.bf16.gmra.mrb[0].mxu0 %v1272
      %v1456 = vpop.f32.mrb[0].mxu0
      %v1457 = vadd.f32 0.0, %v1456
      %v1458 = vpop.f32.mrb[0].mxu0
      %v1459 = vpop.f32.mrb[0].mxu0
      %v1460 = vadd.f32 0.0, %v1459
      %v1461 = vpop.f32.mrb[0].mxu0
      %1462 = vmatprep.mubr.bf16.mxu0 %v1358
      %1463 = vmatmul.mubr.bf16.gmra.mrb[0].mxu0 %v1274
      %v1464 = vpop.f32.mrb[0].mxu0
      %v1465 = vadd.f32 0.0, %v1464
      %v1466 = vpop.f32.mrb[0].mxu0
      %v1467 = vpop.f32.mrb[0].mxu0
      %v1468 = vadd.f32 0.0, %v1467
      %v1469 = vpop.f32.mrb[0].mxu0
      %1470 = vmatprep.mubr.bf16.mxu0 %v1361
      %1471 = vmatmul.mubr.bf16.gmra.mrb[0].mxu0 %v1276
      %v1472 = vpop.f32.mrb[0].mxu0
      %v1473 = vadd.f32 0.0, %v1472
      %v1474 = vpop.f32.mrb[0].mxu0
      %v1475 = vpop.f32.mrb[0].mxu0
      %v1476 = vadd.f32 0.0, %v1475
      %v1477 = vpop.f32.mrb[0].mxu0
      %1478 = vmatprep.mubr.bf16.mxu0 %v1364
      %1479 = vmatmul.mubr.bf16.gmra.mrb[0].mxu0 %v1278
      %v1480 = vpop.f32.mrb[0].mxu0
      %v1481 = vadd.f32 0.0, %v1480
      %v1482 = vpop.f32.mrb[0].mxu0
      %v1483 = vpop.f32.mrb[0].mxu0
      %v1484 = vadd.f32 0.0, %v1483
      %v1485 = vpop.f32.mrb[0].mxu0
      %1486 = vmatprep.mubr.bf16.mxu0 %v1367
      %1487 = vmatmul.mubr.bf16.gmra.mrb[0].mxu0 %v1280
      %v1488 = vpop.f32.mrb[0].mxu0
      %v1489 = vadd.f32 0.0, %v1488
      %v1490 = vpop.f32.mrb[0].mxu0
      %v1491 = vpop.f32.mrb[0].mxu0
      %v1492 = vadd.f32 0.0, %v1491
      %v1493 = vpop.f32.mrb[0].mxu0
      %1494 = vmatprep.mubr.bf16.mxu0 %v1370
      %1495 = vmatmul.mubr.bf16.gmra.mrb[0].mxu0 %v1282
      %v1496 = vpop.f32.mrb[0].mxu0
      %v1497 = vadd.f32 0.0, %v1496
      %v1498 = vpop.f32.mrb[0].mxu0
      %v1499 = vpop.f32.mrb[0].mxu0
      %v1500 = vadd.f32 0.0, %v1499
      %v1501 = vpop.f32.mrb[0].mxu0
      %1502 = vmatprep.mubr.bf16.mxu0 %v1373
      %1503 = vmatmul.mubr.bf16.gmra.mrb[0].mxu0 %v1284
      %v1504 = vpop.f32.mrb[0].mxu0
      %v1505 = vadd.f32 0.0, %v1504
      %v1506 = vpop.f32.mrb[0].mxu0
      %v1507 = vpop.f32.mrb[0].mxu0
      %v1508 = vadd.f32 0.0, %v1507
      %v1509 = vpop.f32.mrb[0].mxu0
      %1510 = vmatprep.mubr.bf16.mxu0 %v1376
      %1511 = vmatmul.mubr.bf16.gmra.mrb[0].mxu0 %v1286
      %v1512 = vpop.f32.mrb[0].mxu0
      %v1513 = vadd.f32 0.0, %v1512
      %v1514 = vpop.f32.mrb[0].mxu0
      %v1515 = vpop.f32.mrb[0].mxu0
      %v1516 = vadd.f32 0.0, %v1515
      %v1517 = vpop.f32.mrb[0].mxu0
      %1518 = vmatprep.mubr.bf16.mxu0 %v1379
      %1519 = vmatmul.mubr.bf16.gmra.mrb[0].mxu0 %v1288
      %v1520 = vpop.f32.mrb[0].mxu0
      %v1521 = vadd.f32 0.0, %v1520
      %v1522 = vpop.f32.mrb[0].mxu0
      %v1523 = vpop.f32.mrb[0].mxu0
      %v1524 = vadd.f32 0.0, %v1523
      %v1525 = vpop.f32.mrb[0].mxu0
      %1526 = vmatprep.mubr.bf16.mxu0 %v1382
      %1527 = vmatmul.mubr.bf16.gmra.mrb[0].mxu0 %v1290
      %v1528 = vpop.f32.mrb[0].mxu0
      %v1529 = vadd.f32 0.0, %v1528
      %v1530 = vpop.f32.mrb[0].mxu0
      %v1531 = vpop.f32.mrb[0].mxu0
      %v1532 = vadd.f32 0.0, %v1531
      %v1533 = vpop.f32.mrb[0].mxu0
      %1534 = vmatprep.mubr.bf16.mxu0 %v1385
      %1535 = vmatmul.mubr.bf16.gmra.mrb[0].mxu0 %v1292
      %v1536 = vpop.f32.mrb[0].mxu0
      %v1537 = vadd.f32 0.0, %v1536
      %v1538 = vpop.f32.mrb[0].mxu0
      %v1539 = vpop.f32.mrb[0].mxu0
      %v1540 = vadd.f32 0.0, %v1539
      %v1541 = vpop.f32.mrb[0].mxu0
      %1542 = vmatprep.mubr.bf16.mxu0 %v1388
      %1543 = vmatmul.mubr.bf16.gmra.mrb[0].mxu0 %v1294
      %v1544 = vpop.f32.mrb[0].mxu0
      %v1545 = vadd.f32 0.0, %v1544
      %v1546 = vpop.f32.mrb[0].mxu0
      %v1547 = vpop.f32.mrb[0].mxu0
      %v1548 = vadd.f32 0.0, %v1547
      %v1549 = vpop.f32.mrb[0].mxu0
      %1550 = vdwg.mxu0
      %v1551 = vadd.f32 %v1042, %v1425
      %v1552 = vadd.f32 %v1045, %v1428
      %v1553 = vadd.f32 %v1050, %v1433
      %v1554 = vadd.f32 %v1053, %v1436
      %v1555 = vadd.f32 %v1058, %v1441
      %v1556 = vadd.f32 %v1061, %v1444
      %v1557 = vadd.f32 %v1066, %v1449
      %v1558 = vadd.f32 %v1069, %v1452
      %v1559 = vadd.f32 %v1074, %v1457
      %v1560 = vadd.f32 %v1077, %v1460
      %v1561 = vadd.f32 %v1082, %v1465
      %v1562 = vadd.f32 %v1085, %v1468
      %v1563 = vadd.f32 %v1090, %v1473
      %v1564 = vadd.f32 %v1093, %v1476
      %v1565 = vadd.f32 %v1098, %v1481
      %v1566 = vadd.f32 %v1101, %v1484
      %v1567 = vadd.f32 %v1106, %v1489
      %v1568 = vadd.f32 %v1109, %v1492
      %v1569 = vadd.f32 %v1114, %v1497
      %v1570 = vadd.f32 %v1117, %v1500
      %v1571 = vadd.f32 %v1122, %v1505
      %v1572 = vadd.f32 %v1125, %v1508
      %v1573 = vadd.f32 %v1130, %v1513
      %v1574 = vadd.f32 %v1133, %v1516
      %v1575 = vadd.f32 %v1138, %v1521
      %v1576 = vadd.f32 %v1141, %v1524
      %v1577 = vadd.f32 %v1146, %v1529
      %v1578 = vadd.f32 %v1149, %v1532
      %v1579 = vadd.f32 %v1154, %v1537
      %v1580 = vadd.f32 %v1157, %v1540
      %v1581 = vadd.f32 %v1162, %v1545
      %v1582 = vadd.f32 %v1165, %v1548
      %1583 = vmatprep.subr.bf16.mxu0 0
      %1584 = vmatpush1.bf16.msra.mxu0 %v1313
      %1585 = vmatprep.subr.bf16.mxu0 0
      %1586 = vmatpush1.bf16.msra.mxu0 %v1315
      %1587 = vmatprep.subr.bf16.mxu0 0
      %1588 = vmatpush1.bf16.msra.mxu0 %v1317
      %1589 = vmatprep.subr.bf16.mxu0 0
      %1590 = vmatpush1.bf16.msra.mxu0 %v1319
      %1591 = vmatprep.subr.bf16.mxu0 0
      %1592 = vmatpush1.bf16.msra.mxu0 %v1321
      %1593 = vmatprep.subr.bf16.mxu0 0
      %1594 = vmatpush1.bf16.msra.mxu0 %v1323
      %1595 = vmatprep.subr.bf16.mxu0 0
      %1596 = vmatpush1.bf16.msra.mxu0 %v1325
      %1597 = vmatprep.subr.bf16.mxu0 0
      %1598 = vmatpush1.bf16.msra.mxu0 %v1327
      %1599 = vmatprep.subr.bf16.mxu0 0
      %1600 = vmatpush1.bf16.msra.mxu0 %v1329
      %1601 = vmatprep.subr.bf16.mxu0 0
      %1602 = vmatpush1.bf16.msra.mxu0 %v1331
      %1603 = vmatprep.subr.bf16.mxu0 0
      %1604 = vmatpush1.bf16.msra.mxu0 0
      %1605 = vmatprep.subr.bf16.mxu0 0
      %1606 = vmatpush1.bf16.msra.mxu0 0
      %1607 = vmatprep.subr.bf16.mxu0 0
      %1608 = vmatpush1.bf16.msra.mxu0 0
      %1609 = vmatprep.subr.bf16.mxu0 0
      %1610 = vmatpush1.bf16.msra.mxu0 0
      %1611 = vmatprep.subr.bf16.mxu0 0
      %1612 = vmatpush1.bf16.msra.mxu0 0
      %1613 = vmatprep.subr.bf16.mxu0 0
      %1614 = vmatpush1.bf16.msra.mxu0 0
      %1615 = vmatprep.mubr.bf16.mxu0 %v547
      %1616 = vmatmul.mubr.bf16.gmra.mrb[0].mxu0 %v437
      %v1617 = vpop.f32.mrb[0].mxu0
      %v1618 = vadd.f32 0.0, %v1617
      %v1619 = vpop.f32.mrb[0].mxu0
      %v1620 = vpop.f32.mrb[0].mxu0
      %v1621 = vadd.f32 0.0, %v1620
      %v1622 = vpop.f32.mrb[0].mxu0
      %1623 = vmatprep.mubr.bf16.mxu0 %v550
      %1624 = vmatmul.mubr.bf16.gmra.mrb[0].mxu0 %v439
      %v1625 = vpop.f32.mrb[0].mxu0
      %v1626 = vadd.f32 0.0, %v1625
      %v1627 = vpop.f32.mrb[0].mxu0
      %v1628 = vpop.f32.mrb[0].mxu0
      %v1629 = vadd.f32 0.0, %v1628
      %v1630 = vpop.f32.mrb[0].mxu0
      %1631 = vmatprep.mubr.bf16.mxu0 %v553
      %1632 = vmatmul.mubr.bf16.gmra.mrb[0].mxu0 %v441
      %v1633 = vpop.f32.mrb[0].mxu0
      %v1634 = vadd.f32 0.0, %v1633
      %v1635 = vpop.f32.mrb[0].mxu0
      %v1636 = vpop.f32.mrb[0].mxu0
      %v1637 = vadd.f32 0.0, %v1636
      %v1638 = vpop.f32.mrb[0].mxu0
      %1639 = vmatprep.mubr.bf16.mxu0 %v556
      %1640 = vmatmul.mubr.bf16.gmra.mrb[0].mxu0 %v443
      %v1641 = vpop.f32.mrb[0].mxu0
      %v1642 = vadd.f32 0.0, %v1641
      %v1643 = vpop.f32.mrb[0].mxu0
      %v1644 = vpop.f32.mrb[0].mxu0
      %v1645 = vadd.f32 0.0, %v1644
      %v1646 = vpop.f32.mrb[0].mxu0
      %1647 = vmatprep.mubr.bf16.mxu0 %v559
      %1648 = vmatmul.mubr.bf16.gmra.mrb[0].mxu0 %v445
      %v1649 = vpop.f32.mrb[0].mxu0
      %v1650 = vadd.f32 0.0, %v1649
      %v1651 = vpop.f32.mrb[0].mxu0
      %v1652 = vpop.f32.mrb[0].mxu0
      %v1653 = vadd.f32 0.0, %v1652
      %v1654 = vpop.f32.mrb[0].mxu0
      %1655 = vmatprep.mubr.bf16.mxu0 %v562
      %1656 = vmatmul.mubr.bf16.gmra.mrb[0].mxu0 %v447
      %v1657 = vpop.f32.mrb[0].mxu0
      %v1658 = vadd.f32 0.0, %v1657
      %v1659 = vpop.f32.mrb[0].mxu0
      %v1660 = vpop.f32.mrb[0].mxu0
      %v1661 = vadd.f32 0.0, %v1660
      %v1662 = vpop.f32.mrb[0].mxu0
      %1663 = vmatprep.mubr.bf16.mxu0 %v565
      %1664 = vmatmul.mubr.bf16.gmra.mrb[0].mxu0 %v449
      %v1665 = vpop.f32.mrb[0].mxu0
      %v1666 = vadd.f32 0.0, %v1665
      %v1667 = vpop.f32.mrb[0].mxu0
      %v1668 = vpop.f32.mrb[0].mxu0
      %v1669 = vadd.f32 0.0, %v1668
      %v1670 = vpop.f32.mrb[0].mxu0
      %1671 = vmatprep.mubr.bf16.mxu0 %v568
      %1672 = vmatmul.mubr.bf16.gmra.mrb[0].mxu0 %v451
      %v1673 = vpop.f32.mrb[0].mxu0
      %v1674 = vadd.f32 0.0, %v1673
      %v1675 = vpop.f32.mrb[0].mxu0
      %v1676 = vpop.f32.mrb[0].mxu0
      %v1677 = vadd.f32 0.0, %v1676
      %v1678 = vpop.f32.mrb[0].mxu0
      %1679 = vmatprep.mubr.bf16.mxu0 %v571
      %1680 = vmatmul.mubr.bf16.gmra.mrb[0].mxu0 %v453
      %v1681 = vpop.f32.mrb[0].mxu0
      %v1682 = vadd.f32 0.0, %v1681
      %v1683 = vpop.f32.mrb[0].mxu0
      %v1684 = vpop.f32.mrb[0].mxu0
      %v1685 = vadd.f32 0.0, %v1684
      %v1686 = vpop.f32.mrb[0].mxu0
      %1687 = vmatprep.mubr.bf16.mxu0 %v574
      %1688 = vmatmul.mubr.bf16.gmra.mrb[0].mxu0 %v455
      %v1689 = vpop.f32.mrb[0].mxu0
      %v1690 = vadd.f32 0.0, %v1689
      %v1691 = vpop.f32.mrb[0].mxu0
      %v1692 = vpop.f32.mrb[0].mxu0
      %v1693 = vadd.f32 0.0, %v1692
      %v1694 = vpop.f32.mrb[0].mxu0
      %1695 = vmatprep.mubr.bf16.mxu0 %v577
      %1696 = vmatmul.mubr.bf16.gmra.mrb[0].mxu0 %v457
      %v1697 = vpop.f32.mrb[0].mxu0
      %v1698 = vadd.f32 0.0, %v1697
      %v1699 = vpop.f32.mrb[0].mxu0
      %v1700 = vpop.f32.mrb[0].mxu0
      %v1701 = vadd.f32 0.0, %v1700
      %v1702 = vpop.f32.mrb[0].mxu0
      %1703 = vmatprep.mubr.bf16.mxu0 %v580
      %1704 = vmatmul.mubr.bf16.gmra.mrb[0].mxu0 %v459
      %v1705 = vpop.f32.mrb[0].mxu0
      %v1706 = vadd.f32 0.0, %v1705
      %v1707 = vpop.f32.mrb[0].mxu0
      %v1708 = vpop.f32.mrb[0].mxu0
      %v1709 = vadd.f32 0.0, %v1708
      %v1710 = vpop.f32.mrb[0].mxu0
      %1711 = vmatprep.mubr.bf16.mxu0 %v583
      %1712 = vmatmul.mubr.bf16.gmra.mrb[0].mxu0 %v461
      %v1713 = vpop.f32.mrb[0].mxu0
      %v1714 = vadd.f32 0.0, %v1713
      %v1715 = vpop.f32.mrb[0].mxu0
      %v1716 = vpop.f32.mrb[0].mxu0
      %v1717 = vadd.f32 0.0, %v1716
      %v1718 = vpop.f32.mrb[0].mxu0
      %1719 = vmatprep.mubr.bf16.mxu0 %v586
      %1720 = vmatmul.mubr.bf16.gmra.mrb[0].mxu0 %v463
      %v1721 = vpop.f32.mrb[0].mxu0
      %v1722 = vadd.f32 0.0, %v1721
      %v1723 = vpop.f32.mrb[0].mxu0
      %v1724 = vpop.f32.mrb[0].mxu0
      %v1725 = vadd.f32 0.0, %v1724
      %v1726 = vpop.f32.mrb[0].mxu0
      %1727 = vmatprep.mubr.bf16.mxu0 %v589
      %1728 = vmatmul.mubr.bf16.gmra.mrb[0].mxu0 %v465
      %v1729 = vpop.f32.mrb[0].mxu0
      %v1730 = vadd.f32 0.0, %v1729
      %v1731 = vpop.f32.mrb[0].mxu0
      %v1732 = vpop.f32.mrb[0].mxu0
      %v1733 = vadd.f32 0.0, %v1732
      %v1734 = vpop.f32.mrb[0].mxu0
      %1735 = vmatprep.mubr.bf16.mxu0 %v592
      %1736 = vmatmul.mubr.bf16.gmra.mrb[0].mxu0 %v467
      %v1737 = vpop.f32.mrb[0].mxu0
      %v1738 = vadd.f32 0.0, %v1737
      %v1739 = vpop.f32.mrb[0].mxu0
      %v1740 = vpop.f32.mrb[0].mxu0
      %v1741 = vadd.f32 0.0, %v1740
      %v1742 = vpop.f32.mrb[0].mxu0
      %1743 = vdwg.mxu0
      %1744 = vmatprep.subr.bf16.mxu0 0
      %1745 = vmatpush1.bf16.msra.mxu0 %v525
      %1746 = vmatprep.subr.bf16.mxu0 0
      %1747 = vmatpush1.bf16.msra.mxu0 %v526
      %1748 = vmatprep.subr.bf16.mxu0 0
      %1749 = vmatpush1.bf16.msra.mxu0 %v527
      %1750 = vmatprep.subr.bf16.mxu0 0
      %1751 = vmatpush1.bf16.msra.mxu0 %v528
      %1752 = vmatprep.subr.bf16.mxu0 0
      %1753 = vmatpush1.bf16.msra.mxu0 %v529
      %1754 = vmatprep.subr.bf16.mxu0 0
      %1755 = vmatpush1.bf16.msra.mxu0 %v530
      %1756 = vmatprep.subr.bf16.mxu0 0
      %1757 = vmatpush1.bf16.msra.mxu0 %v531
      %1758 = vmatprep.subr.bf16.mxu0 0
      %1759 = vmatpush1.bf16.msra.mxu0 %v532
      %1760 = vmatprep.subr.bf16.mxu0 0
      %1761 = vmatpush1.bf16.msra.mxu0 %v533
      %1762 = vmatprep.subr.bf16.mxu0 0
      %1763 = vmatpush1.bf16.msra.mxu0 %v534
      %1764 = vmatprep.subr.bf16.mxu0 0
      %1765 = vmatpush1.bf16.msra.mxu0 0
      %1766 = vmatprep.subr.bf16.mxu0 0
      %1767 = vmatpush1.bf16.msra.mxu0 0
      %1768 = vmatprep.subr.bf16.mxu0 0
      %1769 = vmatpush1.bf16.msra.mxu0 0
      %1770 = vmatprep.subr.bf16.mxu0 0
      %1771 = vmatpush1.bf16.msra.mxu0 0
      %1772 = vmatprep.subr.bf16.mxu0 0
      %1773 = vmatpush1.bf16.msra.mxu0 0
      %1774 = vmatprep.subr.bf16.mxu0 0
      %1775 = vmatpush1.bf16.msra.mxu0 0
      %1776 = vmatprep.mubr.bf16.mxu0 %v960
      %1777 = vmatmul.mubr.bf16.gmra.mrb[0].mxu0 %v851
      %v1778 = vpop.f32.mrb[0].mxu0
      %v1779 = vadd.f32 %v1618, %v1778
      %v1780 = vpop.f32.mrb[0].mxu0
      %v1781 = vpop.f32.mrb[0].mxu0
      %v1782 = vadd.f32 %v1621, %v1781
      %v1783 = vpop.f32.mrb[0].mxu0
      %1784 = vmatprep.mubr.bf16.mxu0 %v963
      %1785 = vmatmul.mubr.bf16.gmra.mrb[0].mxu0 %v853
      %v1786 = vpop.f32.mrb[0].mxu0
      %v1787 = vadd.f32 %v1626, %v1786
      %v1788 = vpop.f32.mrb[0].mxu0
      %v1789 = vpop.f32.mrb[0].mxu0
      %v1790 = vadd.f32 %v1629, %v1789
      %v1791 = vpop.f32.mrb[0].mxu0
      %1792 = vmatprep.mubr.bf16.mxu0 %v966
      %1793 = vmatmul.mubr.bf16.gmra.mrb[0].mxu0 %v855
      %v1794 = vpop.f32.mrb[0].mxu0
      %v1795 = vadd.f32 %v1634, %v1794
      %v1796 = vpop.f32.mrb[0].mxu0
      %v1797 = vpop.f32.mrb[0].mxu0
      %v1798 = vadd.f32 %v1637, %v1797
      %v1799 = vpop.f32.mrb[0].mxu0
      %1800 = vmatprep.mubr.bf16.mxu0 %v969
      %1801 = vmatmul.mubr.bf16.gmra.mrb[0].mxu0 %v857
      %v1802 = vpop.f32.mrb[0].mxu0
      %v1803 = vadd.f32 %v1642, %v1802
      %v1804 = vpop.f32.mrb[0].mxu0
      %v1805 = vpop.f32.mrb[0].mxu0
      %v1806 = vadd.f32 %v1645, %v1805
      %v1807 = vpop.f32.mrb[0].mxu0
      %1808 = vmatprep.mubr.bf16.mxu0 %v972
      %1809 = vmatmul.mubr.bf16.gmra.mrb[0].mxu0 %v859
      %v1810 = vpop.f32.mrb[0].mxu0
      %v1811 = vadd.f32 %v1650, %v1810
      %v1812 = vpop.f32.mrb[0].mxu0
      %v1813 = vpop.f32.mrb[0].mxu0
      %v1814 = vadd.f32 %v1653, %v1813
      %v1815 = vpop.f32.mrb[0].mxu0
      %1816 = vmatprep.mubr.bf16.mxu0 %v975
      %1817 = vmatmul.mubr.bf16.gmra.mrb[0].mxu0 %v861
      %v1818 = vpop.f32.mrb[0].mxu0
      %v1819 = vadd.f32 %v1658, %v1818
      %v1820 = vpop.f32.mrb[0].mxu0
      %v1821 = vpop.f32.mrb[0].mxu0
      %v1822 = vadd.f32 %v1661, %v1821
      %v1823 = vpop.f32.mrb[0].mxu0
      %1824 = vmatprep.mubr.bf16.mxu0 %v978
      %1825 = vmatmul.mubr.bf16.gmra.mrb[0].mxu0 %v863
      %v1826 = vpop.f32.mrb[0].mxu0
      %v1827 = vadd.f32 %v1666, %v1826
      %v1828 = vpop.f32.mrb[0].mxu0
      %v1829 = vpop.f32.mrb[0].mxu0
      %v1830 = vadd.f32 %v1669, %v1829
      %v1831 = vpop.f32.mrb[0].mxu0
      %1832 = vmatprep.mubr.bf16.mxu0 %v981
      %1833 = vmatmul.mubr.bf16.gmra.mrb[0].mxu0 %v865
      %v1834 = vpop.f32.mrb[0].mxu0
      %v1835 = vadd.f32 %v1674, %v1834
      %v1836 = vpop.f32.mrb[0].mxu0
      %v1837 = vpop.f32.mrb[0].mxu0
      %v1838 = vadd.f32 %v1677, %v1837
      %v1839 = vpop.f32.mrb[0].mxu0
      %1840 = vmatprep.mubr.bf16.mxu0 %v984
      %1841 = vmatmul.mubr.bf16.gmra.mrb[0].mxu0 %v867
      %v1842 = vpop.f32.mrb[0].mxu0
      %v1843 = vadd.f32 %v1682, %v1842
      %v1844 = vpop.f32.mrb[0].mxu0
      %v1845 = vpop.f32.mrb[0].mxu0
      %v1846 = vadd.f32 %v1685, %v1845
      %v1847 = vpop.f32.mrb[0].mxu0
      %1848 = vmatprep.mubr.bf16.mxu0 %v987
      %1849 = vmatmul.mubr.bf16.gmra.mrb[0].mxu0 %v869
      %v1850 = vpop.f32.mrb[0].mxu0
      %v1851 = vadd.f32 %v1690, %v1850
      %v1852 = vpop.f32.mrb[0].mxu0
      %v1853 = vpop.f32.mrb[0].mxu0
      %v1854 = vadd.f32 %v1693, %v1853
      %v1855 = vpop.f32.mrb[0].mxu0
      %1856 = vmatprep.mubr.bf16.mxu0 %v990
      %1857 = vmatmul.mubr.bf16.gmra.mrb[0].mxu0 %v871
      %v1858 = vpop.f32.mrb[0].mxu0
      %v1859 = vadd.f32 %v1698, %v1858
      %v1860 = vpop.f32.mrb[0].mxu0
      %v1861 = vpop.f32.mrb[0].mxu0
      %v1862 = vadd.f32 %v1701, %v1861
      %v1863 = vpop.f32.mrb[0].mxu0
      %1864 = vmatprep.mubr.bf16.mxu0 %v993
      %1865 = vmatmul.mubr.bf16.gmra.mrb[0].mxu0 %v873
      %v1866 = vpop.f32.mrb[0].mxu0
      %v1867 = vadd.f32 %v1706, %v1866
      %v1868 = vpop.f32.mrb[0].mxu0
      %v1869 = vpop.f32.mrb[0].mxu0
      %v1870 = vadd.f32 %v1709, %v1869
      %v1871 = vpop.f32.mrb[0].mxu0
      %1872 = vmatprep.mubr.bf16.mxu0 %v996
      %1873 = vmatmul.mubr.bf16.gmra.mrb[0].mxu0 %v875
      %v1874 = vpop.f32.mrb[0].mxu0
      %v1875 = vadd.f32 %v1714, %v1874
      %v1876 = vpop.f32.mrb[0].mxu0
      %v1877 = vpop.f32.mrb[0].mxu0
      %v1878 = vadd.f32 %v1717, %v1877
      %v1879 = vpop.f32.mrb[0].mxu0
      %1880 = vmatprep.mubr.bf16.mxu0 %v999
      %1881 = vmatmul.mubr.bf16.gmra.mrb[0].mxu0 %v877
      %v1882 = vpop.f32.mrb[0].mxu0
      %v1883 = vadd.f32 %v1722, %v1882
      %v1884 = vpop.f32.mrb[0].mxu0
      %v1885 = vpop.f32.mrb[0].mxu0
      %v1886 = vadd.f32 %v1725, %v1885
      %v1887 = vpop.f32.mrb[0].mxu0
      %1888 = vmatprep.mubr.bf16.mxu0 %v1002
      %1889 = vmatmul.mubr.bf16.gmra.mrb[0].mxu0 %v879
      %v1890 = vpop.f32.mrb[0].mxu0
      %v1891 = vadd.f32 %v1730, %v1890
      %v1892 = vpop.f32.mrb[0].mxu0
      %v1893 = vpop.f32.mrb[0].mxu0
      %v1894 = vadd.f32 %v1733, %v1893
      %v1895 = vpop.f32.mrb[0].mxu0
      %1896 = vmatprep.mubr.bf16.mxu0 %v1005
      %1897 = vmatmul.mubr.bf16.gmra.mrb[0].mxu0 %v881
      %v1898 = vpop.f32.mrb[0].mxu0
      %v1899 = vadd.f32 %v1738, %v1898
      %v1900 = vpop.f32.mrb[0].mxu0
      %v1901 = vpop.f32.mrb[0].mxu0
      %v1902 = vadd.f32 %v1741, %v1901
      %v1903 = vpop.f32.mrb[0].mxu0
      %1904 = vdwg.mxu0
      %1905 = vrot.lane.b32.xlu0 %v525, 127
      %v1906 = vpop.permute.xlu0 %1905
      %1907 = vrot.lane.b32.xlu0 %v526, 127
      %v1908 = vpop.permute.xlu0 %1907
      %1909 = vrot.lane.b32.xlu0 %v527, 127
      %v1910 = vpop.permute.xlu0 %1909
      %1911 = vrot.lane.b32.xlu0 %v528, 127
      %v1912 = vpop.permute.xlu0 %1911
      %1913 = vrot.lane.b32.xlu0 %v529, 127
      %v1914 = vpop.permute.xlu0 %1913
      %1915 = vrot.lane.b32.xlu0 %v530, 127
      %v1916 = vpop.permute.xlu0 %1915
      %1917 = vrot.lane.b32.xlu0 %v531, 127
      %v1918 = vpop.permute.xlu0 %1917
      %1919 = vrot.lane.b32.xlu0 %v532, 127
      %v1920 = vpop.permute.xlu0 %1919
      %1921 = vrot.lane.b32.xlu0 %v533, 127
      %v1922 = vpop.permute.xlu0 %1921
      %1923 = vrot.lane.b32.xlu0 %v534, 127
      %v1924 = vpop.permute.xlu0 %1923
      %1935 = vmatprep.subr.bf16.mxu0 0
      %1936 = vmatpush1.bf16.msra.mxu0 %v1906
      %1937 = vmatprep.subr.bf16.mxu0 0
      %1938 = vmatpush1.bf16.msra.mxu0 %v1908
      %1939 = vmatprep.subr.bf16.mxu0 0
      %1940 = vmatpush1.bf16.msra.mxu0 %v1910
      %1941 = vmatprep.subr.bf16.mxu0 0
      %1942 = vmatpush1.bf16.msra.mxu0 %v1912
      %1943 = vmatprep.subr.bf16.mxu0 0
      %1944 = vmatpush1.bf16.msra.mxu0 %v1914
      %1945 = vmatprep.subr.bf16.mxu0 0
      %1946 = vmatpush1.bf16.msra.mxu0 %v1916
      %1947 = vmatprep.subr.bf16.mxu0 0
      %1948 = vmatpush1.bf16.msra.mxu0 %v1918
      %1949 = vmatprep.subr.bf16.mxu0 0
      %1950 = vmatpush1.bf16.msra.mxu0 %v1920
      %1951 = vmatprep.subr.bf16.mxu0 0
      %1952 = vmatpush1.bf16.msra.mxu0 %v1922
      %1953 = vmatprep.subr.bf16.mxu0 0
      %1954 = vmatpush1.bf16.msra.mxu0 %v1924
      %1955 = vmatprep.subr.bf16.mxu0 0
      %1956 = vmatpush1.bf16.msra.mxu0 0
      %1957 = vmatprep.subr.bf16.mxu0 0
      %1958 = vmatpush1.bf16.msra.mxu0 0
      %1959 = vmatprep.subr.bf16.mxu0 0
      %1960 = vmatpush1.bf16.msra.mxu0 0
      %1961 = vmatprep.subr.bf16.mxu0 0
      %1962 = vmatpush1.bf16.msra.mxu0 0
      %1963 = vmatprep.subr.bf16.mxu0 0
      %1964 = vmatpush1.bf16.msra.mxu0 0
      %1965 = vmatprep.subr.bf16.mxu0 0
      %1966 = vmatpush1.bf16.msra.mxu0 0
      %1967 = vmatprep.mubr.bf16.mxu0 %v1343
      %1968 = vmatmul.mubr.bf16.gmra.mrb[0].mxu0 %v1264
      %v1969 = vpop.f32.mrb[0].mxu0
      %v1970 = vadd.f32 0.0, %v1969
      %v1971 = vpop.f32.mrb[0].mxu0
      %v1972 = vpop.f32.mrb[0].mxu0
      %v1973 = vadd.f32 0.0, %v1972
      %v1974 = vpop.f32.mrb[0].mxu0
      %1975 = vmatprep.mubr.bf16.mxu0 %v1346
      %1976 = vmatmul.mubr.bf16.gmra.mrb[0].mxu0 %v1266
      %v1977 = vpop.f32.mrb[0].mxu0
      %v1978 = vadd.f32 0.0, %v1977
      %v1979 = vpop.f32.mrb[0].mxu0
      %v1980 = vpop.f32.mrb[0].mxu0
      %v1981 = vadd.f32 0.0, %v1980
      %v1982 = vpop.f32.mrb[0].mxu0
      %1983 = vmatprep.mubr.bf16.mxu0 %v1349
      %1984 = vmatmul.mubr.bf16.gmra.mrb[0].mxu0 %v1268
      %v1985 = vpop.f32.mrb[0].mxu0
      %v1986 = vadd.f32 0.0, %v1985
      %v1987 = vpop.f32.mrb[0].mxu0
      %v1988 = vpop.f32.mrb[0].mxu0
      %v1989 = vadd.f32 0.0, %v1988
      %v1990 = vpop.f32.mrb[0].mxu0
      %1991 = vmatprep.mubr.bf16.mxu0 %v1352
      %1992 = vmatmul.mubr.bf16.gmra.mrb[0].mxu0 %v1270
      %v1993 = vpop.f32.mrb[0].mxu0
      %v1994 = vadd.f32 0.0, %v1993
      %v1995 = vpop.f32.mrb[0].mxu0
      %v1996 = vpop.f32.mrb[0].mxu0
      %v1997 = vadd.f32 0.0, %v1996
      %v1998 = vpop.f32.mrb[0].mxu0
      %1999 = vmatprep.mubr.bf16.mxu0 %v1355
      %2000 = vmatmul.mubr.bf16.gmra.mrb[0].mxu0 %v1272
      %v2001 = vpop.f32.mrb[0].mxu0
      %v2002 = vadd.f32 0.0, %v2001
      %v2003 = vpop.f32.mrb[0].mxu0
      %v2004 = vpop.f32.mrb[0].mxu0
      %v2005 = vadd.f32 0.0, %v2004
      %v2006 = vpop.f32.mrb[0].mxu0
      %2007 = vmatprep.mubr.bf16.mxu0 %v1358
      %2008 = vmatmul.mubr.bf16.gmra.mrb[0].mxu0 %v1274
      %v2009 = vpop.f32.mrb[0].mxu0
      %v2010 = vadd.f32 0.0, %v2009
      %v2011 = vpop.f32.mrb[0].mxu0
      %v2012 = vpop.f32.mrb[0].mxu0
      %v2013 = vadd.f32 0.0, %v2012
      %v2014 = vpop.f32.mrb[0].mxu0
      %2015 = vmatprep.mubr.bf16.mxu0 %v1361
      %2016 = vmatmul.mubr.bf16.gmra.mrb[0].mxu0 %v1276
      %v2017 = vpop.f32.mrb[0].mxu0
      %v2018 = vadd.f32 0.0, %v2017
      %v2019 = vpop.f32.mrb[0].mxu0
      %v2020 = vpop.f32.mrb[0].mxu0
      %v2021 = vadd.f32 0.0, %v2020
      %v2022 = vpop.f32.mrb[0].mxu0
      %2023 = vmatprep.mubr.bf16.mxu0 %v1364
      %2024 = vmatmul.mubr.bf16.gmra.mrb[0].mxu0 %v1278
      %v2025 = vpop.f32.mrb[0].mxu0
      %v2026 = vadd.f32 0.0, %v2025
      %v2027 = vpop.f32.mrb[0].mxu0
      %v2028 = vpop.f32.mrb[0].mxu0
      %v2029 = vadd.f32 0.0, %v2028
      %v2030 = vpop.f32.mrb[0].mxu0
      %2031 = vmatprep.mubr.bf16.mxu0 %v1367
      %2032 = vmatmul.mubr.bf16.gmra.mrb[0].mxu0 %v1280
      %v2033 = vpop.f32.mrb[0].mxu0
      %v2034 = vadd.f32 0.0, %v2033
      %v2035 = vpop.f32.mrb[0].mxu0
      %v2036 = vpop.f32.mrb[0].mxu0
      %v2037 = vadd.f32 0.0, %v2036
      %v2038 = vpop.f32.mrb[0].mxu0
      %2039 = vmatprep.mubr.bf16.mxu0 %v1370
      %2040 = vmatmul.mubr.bf16.gmra.mrb[0].mxu0 %v1282
      %v2041 = vpop.f32.mrb[0].mxu0
      %v2042 = vadd.f32 0.0, %v2041
      %v2043 = vpop.f32.mrb[0].mxu0
      %v2044 = vpop.f32.mrb[0].mxu0
      %v2045 = vadd.f32 0.0, %v2044
      %v2046 = vpop.f32.mrb[0].mxu0
      %2047 = vmatprep.mubr.bf16.mxu0 %v1373
      %2048 = vmatmul.mubr.bf16.gmra.mrb[0].mxu0 %v1284
      %v2049 = vpop.f32.mrb[0].mxu0
      %v2050 = vadd.f32 0.0, %v2049
      %v2051 = vpop.f32.mrb[0].mxu0
      %v2052 = vpop.f32.mrb[0].mxu0
      %v2053 = vadd.f32 0.0, %v2052
      %v2054 = vpop.f32.mrb[0].mxu0
      %2055 = vmatprep.mubr.bf16.mxu0 %v1376
      %2056 = vmatmul.mubr.bf16.gmra.mrb[0].mxu0 %v1286
      %v2057 = vpop.f32.mrb[0].mxu0
      %v2058 = vadd.f32 0.0, %v2057
      %v2059 = vpop.f32.mrb[0].mxu0
      %v2060 = vpop.f32.mrb[0].mxu0
      %v2061 = vadd.f32 0.0, %v2060
      %v2062 = vpop.f32.mrb[0].mxu0
      %2063 = vmatprep.mubr.bf16.mxu0 %v1379
      %2064 = vmatmul.mubr.bf16.gmra.mrb[0].mxu0 %v1288
      %v2065 = vpop.f32.mrb[0].mxu0
      %v2066 = vadd.f32 0.0, %v2065
      %v2067 = vpop.f32.mrb[0].mxu0
      %v2068 = vpop.f32.mrb[0].mxu0
      %v2069 = vadd.f32 0.0, %v2068
      %v2070 = vpop.f32.mrb[0].mxu0
      %2071 = vmatprep.mubr.bf16.mxu0 %v1382
      %2072 = vmatmul.mubr.bf16.gmra.mrb[0].mxu0 %v1290
      %v2073 = vpop.f32.mrb[0].mxu0
      %v2074 = vadd.f32 0.0, %v2073
      %v2075 = vpop.f32.mrb[0].mxu0
      %v2076 = vpop.f32.mrb[0].mxu0
      %v2077 = vadd.f32 0.0, %v2076
      %v2078 = vpop.f32.mrb[0].mxu0
      %2079 = vmatprep.mubr.bf16.mxu0 %v1385
      %2080 = vmatmul.mubr.bf16.gmra.mrb[0].mxu0 %v1292
      %v2081 = vpop.f32.mrb[0].mxu0
      %v2082 = vadd.f32 0.0, %v2081
      %v2083 = vpop.f32.mrb[0].mxu0
      %v2084 = vpop.f32.mrb[0].mxu0
      %v2085 = vadd.f32 0.0, %v2084
      %v2086 = vpop.f32.mrb[0].mxu0
      %2087 = vmatprep.mubr.bf16.mxu0 %v1388
      %2088 = vmatmul.mubr.bf16.gmra.mrb[0].mxu0 %v1294
      %v2089 = vpop.f32.mrb[0].mxu0
      %v2090 = vadd.f32 0.0, %v2089
      %v2091 = vpop.f32.mrb[0].mxu0
      %v2092 = vpop.f32.mrb[0].mxu0
      %v2093 = vadd.f32 0.0, %v2092
      %v2094 = vpop.f32.mrb[0].mxu0
      %2095 = vdwg.mxu0
      %v2096 = vadd.f32 %v1779, %v1970
      %v2097 = vadd.f32 %v1782, %v1973
      %v2098 = vadd.f32 %v1787, %v1978
      %v2099 = vadd.f32 %v1790, %v1981
      %v2100 = vadd.f32 %v1795, %v1986
      %v2101 = vadd.f32 %v1798, %v1989
      %v2102 = vadd.f32 %v1803, %v1994
      %v2103 = vadd.f32 %v1806, %v1997
      %v2104 = vadd.f32 %v1811, %v2002
      %v2105 = vadd.f32 %v1814, %v2005
      %v2106 = vadd.f32 %v1819, %v2010
      %v2107 = vadd.f32 %v1822, %v2013
      %v2108 = vadd.f32 %v1827, %v2018
      %v2109 = vadd.f32 %v1830, %v2021
      %v2110 = vadd.f32 %v1835, %v2026
      %v2111 = vadd.f32 %v1838, %v2029
      %v2112 = vadd.f32 %v1843, %v2034
      %v2113 = vadd.f32 %v1846, %v2037
      %v2114 = vadd.f32 %v1851, %v2042
      %v2115 = vadd.f32 %v1854, %v2045
      %v2116 = vadd.f32 %v1859, %v2050
      %v2117 = vadd.f32 %v1862, %v2053
      %v2118 = vadd.f32 %v1867, %v2058
      %v2119 = vadd.f32 %v1870, %v2061
      %v2120 = vadd.f32 %v1875, %v2066
      %v2121 = vadd.f32 %v1878, %v2069
      %v2122 = vadd.f32 %v1883, %v2074
      %v2123 = vadd.f32 %v1886, %v2077
      %v2124 = vadd.f32 %v1891, %v2082
      %v2125 = vadd.f32 %v1894, %v2085
      %v2126 = vadd.f32 %v1899, %v2090
      %v2127 = vadd.f32 %v1902, %v2093
      %v2128 = vmax.f32 %v1551, %v2096
      %v2129 = vmax.f32 %v1552, %v2097
      %v2130 = vmax.f32 %v1553, %v2098
      %v2131 = vmax.f32 %v1554, %v2099
      %v2132 = vmax.f32 %v1555, %v2100
      %v2133 = vmax.f32 %v1556, %v2101
      %v2134 = vmax.f32 %v1557, %v2102
      %v2135 = vmax.f32 %v1558, %v2103
      %v2136 = vmax.f32 %v1559, %v2104
      %v2137 = vmax.f32 %v1560, %v2105
      %v2138 = vmax.f32 %v1561, %v2106
      %v2139 = vmax.f32 %v1562, %v2107
      %v2140 = vmax.f32 %v1563, %v2108
      %v2141 = vmax.f32 %v1564, %v2109
      %v2142 = vmax.f32 %v1565, %v2110
      %v2143 = vmax.f32 %v1566, %v2111
      %v2144 = vmax.f32 %v1567, %v2112
      %v2145 = vmax.f32 %v1568, %v2113
      %v2146 = vmax.f32 %v1569, %v2114
      %v2147 = vmax.f32 %v1570, %v2115
      %v2148 = vmax.f32 %v1571, %v2116
      %v2149 = vmax.f32 %v1572, %v2117
      %v2150 = vmax.f32 %v1573, %v2118
      %v2151 = vmax.f32 %v1574, %v2119
      %v2152 = vmax.f32 %v1575, %v2120
      %v2153 = vmax.f32 %v1576, %v2121
      %v2154 = vmax.f32 %v1577, %v2122
      %v2155 = vmax.f32 %v1578, %v2123
      %v2156 = vmax.f32 %v1579, %v2124
      %v2157 = vmax.f32 %v1580, %v2125
      %v2158 = vmax.f32 %v1581, %v2126
      %v2159 = vmax.f32 %v1582, %v2127
      %v2160 = vmax.f32 %v2128, %v2132
      %v2161 = vmax.f32 %v2129, %v2133
      %v2162 = vmax.f32 %v2130, %v2134
      %v2163 = vmax.f32 %v2131, %v2135
      %v2164 = vmax.f32 %v2136, %v2140
      %v2165 = vmax.f32 %v2137, %v2141
      %v2166 = vmax.f32 %v2138, %v2142
      %v2167 = vmax.f32 %v2139, %v2143
      %v2168 = vmax.f32 %v2144, %v2148
      %v2169 = vmax.f32 %v2145, %v2149
      %v2170 = vmax.f32 %v2146, %v2150
      %v2171 = vmax.f32 %v2147, %v2151
      %v2172 = vmax.f32 %v2152, %v2156
      %v2173 = vmax.f32 %v2153, %v2157
      %v2174 = vmax.f32 %v2154, %v2158
      %v2175 = vmax.f32 %v2155, %v2159
      %v2176 = vld [vmem:[%s2] sm:$0xff]
      %v2177 = vld [vmem:[%s2 + $0x8] sm:$0xff]
      %v2178 = vld [vmem:[%s2 + $0x10] sm:$0xff]
      %v2179 = vld [vmem:[%s2 + $0x18] sm:$0xff]
      %v2180 = vld [vmem:[%s2 + $0x20] sm:$0xff]
      %v2181 = vld [vmem:[%s2 + $0x28] sm:$0xff]
      %v2182 = vld [vmem:[%s2 + $0x30] sm:$0xff]
      %v2183 = vld [vmem:[%s2 + $0x38] sm:$0xff]
      %v2184 = vld [vmem:[%s2 + $0x40] sm:$0xff]
      %v2185 = vld [vmem:[%s2 + $0x48] sm:$0xff]
      %v2186 = vld [vmem:[%s2 + $0x50] sm:$0xff]
      %v2187 = vld [vmem:[%s2 + $0x58] sm:$0xff]
      %v2188 = vld [vmem:[%s2 + $0x60] sm:$0xff]
      %v2189 = vld [vmem:[%s2 + $0x68] sm:$0xff]
      %v2190 = vld [vmem:[%s2 + $0x70] sm:$0xff]
      %v2191 = vld [vmem:[%s2 + $0x78] sm:$0xff]
      %2193 = vset.pattern.permute.xlu0 0
      %2194 = vperm.xlu0 %2193, %v2176
      %v2195 = vpop.permute.xlu0 %2194
      %2198 = vset.pattern.permute.xlu0 0
      %2199 = vperm.xlu0 %2198, %v2177
      %v2200 = vpop.permute.xlu0 %2199
      %2203 = vset.pattern.permute.xlu0 0
      %2204 = vperm.xlu0 %2203, %v2178
      %v2205 = vpop.permute.xlu0 %2204
      %2208 = vset.pattern.permute.xlu0 0
      %2209 = vperm.xlu0 %2208, %v2179
      %v2210 = vpop.permute.xlu0 %2209
      %2213 = vset.pattern.permute.xlu0 0
      %2214 = vperm.xlu0 %2213, %v2180
      %v2215 = vpop.permute.xlu0 %2214
      %2218 = vset.pattern.permute.xlu0 0
      %2219 = vperm.xlu0 %2218, %v2181
      %v2220 = vpop.permute.xlu0 %2219
      %2223 = vset.pattern.permute.xlu0 0
      %2224 = vperm.xlu0 %2223, %v2182
      %v2225 = vpop.permute.xlu0 %2224
      %2228 = vset.pattern.permute.xlu0 0
      %2229 = vperm.xlu0 %2228, %v2183
      %v2230 = vpop.permute.xlu0 %2229
      %2233 = vset.pattern.permute.xlu0 0
      %2234 = vperm.xlu0 %2233, %v2184
      %v2235 = vpop.permute.xlu0 %2234
      %2238 = vset.pattern.permute.xlu0 0
      %2239 = vperm.xlu0 %2238, %v2185
      %v2240 = vpop.permute.xlu0 %2239
      %2243 = vset.pattern.permute.xlu0 0
      %2244 = vperm.xlu0 %2243, %v2186
      %v2245 = vpop.permute.xlu0 %2244
      %2248 = vset.pattern.permute.xlu0 0
      %2249 = vperm.xlu0 %2248, %v2187
      %v2250 = vpop.permute.xlu0 %2249
      %2253 = vset.pattern.permute.xlu0 0
      %2254 = vperm.xlu0 %2253, %v2188
      %v2255 = vpop.permute.xlu0 %2254
      %2258 = vset.pattern.permute.xlu0 0
      %2259 = vperm.xlu0 %2258, %v2189
      %v2260 = vpop.permute.xlu0 %2259
      %2263 = vset.pattern.permute.xlu0 0
      %2264 = vperm.xlu0 %2263, %v2190
      %v2265 = vpop.permute.xlu0 %2264
      %2268 = vset.pattern.permute.xlu0 0
      %2269 = vperm.xlu0 %2268, %v2191
      %v2270 = vpop.permute.xlu0 %2269
      %v2272 = vadd.f32 %v2160, %v2195
      %v2273 = vadd.f32 %v2161, %v2200
      %v2274 = vadd.f32 %v2162, %v2205
      %v2275 = vadd.f32 %v2163, %v2210
      %v2276 = vadd.f32 %v2164, %v2215
      %v2277 = vadd.f32 %v2165, %v2220
      %v2278 = vadd.f32 %v2166, %v2225
      %v2279 = vadd.f32 %v2167, %v2230
      %v2280 = vadd.f32 %v2168, %v2235
      %v2281 = vadd.f32 %v2169, %v2240
      %v2282 = vadd.f32 %v2170, %v2245
      %v2283 = vadd.f32 %v2171, %v2250
      %v2284 = vadd.f32 %v2172, %v2255
      %v2285 = vadd.f32 %v2173, %v2260
      %v2286 = vadd.f32 %v2174, %v2265
      %v2287 = vadd.f32 %v2175, %v2270
      %v2288 = vmax.f32 %v2272, 0.0
      %v2289 = vmax.f32 %v2273, 0.0
      %v2290 = vmax.f32 %v2274, 0.0
      %v2291 = vmax.f32 %v2275, 0.0
      %v2292 = vmax.f32 %v2276, 0.0
      %v2293 = vmax.f32 %v2277, 0.0
      %v2294 = vmax.f32 %v2278, 0.0
      %v2295 = vmax.f32 %v2279, 0.0
      %v2296 = vmax.f32 %v2280, 0.0
      %v2297 = vmax.f32 %v2281, 0.0
      %v2298 = vmax.f32 %v2282, 0.0
      %v2299 = vmax.f32 %v2283, 0.0
      %v2300 = vmax.f32 %v2284, 0.0
      %v2301 = vmax.f32 %v2285, 0.0
      %v2302 = vmax.f32 %v2286, 0.0
      %v2303 = vmax.f32 %v2287, 0.0
      %v2304 = vpack.c.bf16 %v2289, %v2288
      %v2305 = vpack.c.bf16 %v2291, %v2290
      %v2306 = vpack.c.bf16 %v2293, %v2292
      %v2307 = vpack.c.bf16 %v2295, %v2294
      %v2308 = vpack.c.bf16 %v2297, %v2296
      %v2309 = vpack.c.bf16 %v2299, %v2298
      %v2310 = vpack.c.bf16 %v2301, %v2300
      %v2311 = vpack.c.bf16 %v2303, %v2302
      %v2320 = vunpack.c.l.b16 %v2304
      %v2321 = vunpack.c.h.b16 %v2304
      %v2322 = vunpack.c.l.b16 %v2305
      %v2323 = vunpack.c.h.b16 %v2305
      %v2324 = vunpack.c.l.b16 %v2306
      %v2325 = vunpack.c.h.b16 %v2306
      %v2326 = vunpack.c.l.b16 %v2307
      %v2327 = vunpack.c.h.b16 %v2307
      %v2328 = vunpack.c.l.b16 %v2308
      %v2329 = vunpack.c.h.b16 %v2308
      %v2330 = vunpack.c.l.b16 %v2309
      %v2331 = vunpack.c.h.b16 %v2309
      %v2332 = vunpack.c.l.b16 %v2310
      %v2333 = vunpack.c.h.b16 %v2310
      %v2334 = vunpack.c.l.b16 %v2311
      %v2335 = vunpack.c.h.b16 %v2311
      %v2336 = vpack.c.b16 %v2320, %v2320
      %v2337 = vpack.c.b16 %v2321, %v2321
      %v2338 = vpack.c.b16 %v2322, %v2322
      %v2339 = vpack.c.b16 %v2323, %v2323
      %v2340 = vpack.c.b16 %v2324, %v2324
      %v2341 = vpack.c.b16 %v2325, %v2325
      %v2342 = vpack.c.b16 %v2326, %v2326
      %v2343 = vpack.c.b16 %v2327, %v2327
      %v2344 = vpack.c.b16 %v2328, %v2328
      %v2345 = vpack.c.b16 %v2329, %v2329
      %v2346 = vpack.c.b16 %v2330, %v2330
      %v2347 = vpack.c.b16 %v2331, %v2331
      %v2348 = vpack.c.b16 %v2332, %v2332
      %v2349 = vpack.c.b16 %v2333, %v2333
      %v2350 = vpack.c.b16 %v2334, %v2334
      %v2351 = vpack.c.b16 %v2335, %v2335
      %vm2368 = vcmask 44032
      %2369 = vst.msk [vmem:[%s192] sm:$0xf] %vm2368, %v2336
      %2370 = vst.msk [vmem:[%s192 + $0x4] sm:$0xf] %vm2368, %v2337
      %2371 = vst.msk [vmem:[%s192 + $0x8] sm:$0xf] %vm2368, %v2338
      %2372 = vst.msk [vmem:[%s192 + $0xc] sm:$0xf] %vm2368, %v2339
      %2373 = vst.msk [vmem:[%s192 + $0x10] sm:$0xf] %vm2368, %v2340
      %2374 = vst.msk [vmem:[%s192 + $0x14] sm:$0xf] %vm2368, %v2341
      %2375 = vst.msk [vmem:[%s192 + $0x18] sm:$0xf] %vm2368, %v2342
      %2376 = vst.msk [vmem:[%s192 + $0x1c] sm:$0xf] %vm2368, %v2343
      %2377 = vst.msk [vmem:[%s192 + $0x20] sm:$0xf] %vm2368, %v2344
      %2378 = vst.msk [vmem:[%s192 + $0x24] sm:$0xf] %vm2368, %v2345
      %2379 = vst.msk [vmem:[%s192 + $0x28] sm:$0xf] %vm2368, %v2346
      %2380 = vst.msk [vmem:[%s192 + $0x2c] sm:$0xf] %vm2368, %v2347
      %2381 = vst.msk [vmem:[%s192 + $0x30] sm:$0xf] %vm2368, %v2348
      %2382 = vst.msk [vmem:[%s192 + $0x34] sm:$0xf] %vm2368, %v2349
      %2383 = vst.msk [vmem:[%s192 + $0x38] sm:$0xf] %vm2368, %v2350
      %2384 = vst.msk [vmem:[%s192 + $0x3c] sm:$0xf] %vm2368, %v2351
      %s2385 = smul.u32 16, %s19
      %p2386 = scmp.lt.s32.totalorder %s18, 1
      %s2387 = scalar_select %p2386, %s18, 1
      %p2388 = scmp.lt.s32.totalorder %s2385, 15
      %s2389 = scalar_select %p2388, %s2385, 15
      %s2390 = smul.addr %s2387, 16
      %s2391 = sadd.s32 %s2389, %s2390
      %s2392 = smul.addr %s2391, 4
      %s2393 = scalar_lea.vmem %s3, %s2392
      // Predicated region
      $region33: #{cnn_feature_extractor.4} parent=31 // pred_check
        %p2394 = pneg %p114
      $region34: #{cnn_feature_extractor.4} parent=31 // pred_check_branch
        %2396 = sbr.rel (%p2394) target = $region36
      $region35: #{cnn_feature_extractor.4} parent=31 // pred_region
        %s2397 = smul.u32 16, %s19
      $region36: #{cnn_feature_extractor.4} parent=31 // pred_fallthru
        _
    $region32: #{cnn_feature_extractor.4} parent=5 // pred_fallthru
      _
    %p2398 = scmp.le.s32.totalorder 2, %s9
    // Predicated region
    $region37: #{cnn_feature_extractor.4} parent=5 // pred_check
      %p2399 = pneg %p2398
    $region38: #{cnn_feature_extractor.4} parent=5 // pred_check_branch
      %2401 = sbr.rel (%p2399) target = $region40
    $region39: #{cnn_feature_extractor.4} parent=5 // pred_region
      %s2402 = ssub.s32 %s9, 2
      // Predicated region
      $region41: #{cnn_feature_extractor.4} parent=39 // pred_check
        %p2403 = pneg %p120
      $region42: #{cnn_feature_extractor.4} parent=39 // pred_check_branch
        %2405 = sbr.rel (%p2403) target = $region44
      $region43: #{cnn_feature_extractor.4} parent=39 // pred_region
        %s2406 = smul.u32 16, %s21
        %p2407 = scmp.lt.s32.totalorder %s20, 1
        %s2408 = scalar_select %p2407, %s20, 1
        %p2409 = scmp.lt.s32.totalorder %s2406, 15
        %s2410 = scalar_select %p2409, %s2406, 15
        %s2411 = smul.addr %s2408, 16
        %s2412 = sadd.s32 %s2410, %s2411
        %s2413 = smul.addr %s2412, 4
        %s2414 = scalar_lea.vmem %s3, %s2413
      $region44: #{cnn_feature_extractor.4} parent=39 // pred_fallthru
        _
    $region40: #{cnn_feature_extractor.4} parent=5 // pred_fallthru
      _
  $region6: #{cnn_feature_extractor.4} parent=0 // loop_footer
    %s13 = sadd.s32 1, %s9
  $region7: #{cnn_feature_extractor.4} parent=0 // loop_footer_branch
    %8 = sbr.rel target = $region3
  $region8: #{cnn_feature_extractor.4} parent=0 // loop_exit
    _

</llo_original>
